<compile_context>
chip_gen: v7x
topology: tpu7x:2x2x1
jax: 0.10.0
libtpu: 0.0.40
codegen_flags: <defaults>
</compile_context>

<pallas_src>
import functools

import jax
import jax.numpy as jnp
from jax.experimental import pallas as pl
from jax.experimental.pallas import tpu as pltpu

# ---- tiny model config (consistent with a RoBERTa-for-sequence-classification forward) ----
B, S = 2, 8            # batch, sequence length
H, F = 128, 256        # hidden size, FFN intermediate size
NH = 4                 # attention heads
DH = H // NH           # head dim
NL = 2                 # encoder layers
NLBL = 2               # num labels (binary idiomaticity)
VOCAB, MAXPOS = 128, 32
EPS = 1e-5


# ----------------------------- in-kernel helpers -----------------------------
def _layernorm(x, g, b):
    mu = jnp.mean(x, axis=-1, keepdims=True)
    var = jnp.mean((x - mu) ** 2, axis=-1, keepdims=True)
    return (x - mu) * jax.lax.rsqrt(var + EPS) * g + b


def _gelu_tanh(x):
    # TODO(synk): HF XLM-RoBERTa uses exact erf-GELU; tanh approximation used here (EUP-friendly).
    c = 0.7978845608028654  # sqrt(2/pi)
    return 0.5 * x * (1.0 + jnp.tanh(c * (x + 0.044715 * x * x * x)))


# ----------------------------- fused Pallas kernel -----------------------------
def fused_forward_kernel(ids_ref, mask_ref, labels_ref,
                         wemb_ref, pos_ref, type_ref, embg_ref, embb_ref,
                         wqkv_ref, bqkv_ref, wo_ref, bo_ref, g1_ref, b1_ref,
                         win_ref, bin_ref, wout_ref, bout_ref, g2_ref, b2_ref,
                         wd_ref, bd_ref, wp_ref, bp_ref,
                         logits_ref, loss_ref):
    BS = B * S

    # ---- embeddings: one-hot gather as a matmul + pos/type add + LayerNorm ----
    vocab_iota = jax.lax.broadcasted_iota(jnp.int32, (BS, VOCAB), 1)
    onehot = (vocab_iota == ids_ref[...]).astype(jnp.bfloat16)                 # (BS, VOCAB)
    x = jnp.dot(onehot, wemb_ref[...], preferred_element_type=jnp.float32)     # (BS, H)
    pos = jnp.concatenate([pos_ref[...]] * B, axis=0)                          # (BS, H)
    x = x + pos + type_ref[...]
    x = _layernorm(x, embg_ref[...], embb_ref[...])

    neg_bias = (1.0 - mask_ref[...]) * (-1e9)                                  # (B, S)

    # ---- encoder layers: weights resident in VMEM, static loop over NL ----
    for l in range(NL):
        wqkv = wqkv_ref[l]        # (H, 3H) bf16; 1/sqrt(DH) already folded into the Q slice
        wo = wo_ref[l]            # (H, H)  bf16
        w_in = win_ref[l]         # (H, F)  bf16
        w_out = wout_ref[l]       # (F, H)  bf16

        xb = x.astype(jnp.bfloat16)
        qkv = jnp.dot(xb, wqkv, preferred_element_type=jnp.float32) + bqkv_ref[l]   # (BS, 3H)

        attn_rows = []
        for b in range(B):                       # static unroll: per-batch attention
            r0 = b * S
            nb = neg_bias[b:b + 1, :]            # (1, S), broadcast over query rows
            acc_b = jnp.zeros((S, H), jnp.float32)
            for hh in range(NH):                 # static unroll over heads
                lo = hh * DH
                qh = qkv[r0:r0 + S, lo:lo + DH].astype(jnp.bfloat16)            # (S, DH)
                kh = qkv[r0:r0 + S, H + lo:H + lo + DH].astype(jnp.bfloat16)
                vh = qkv[r0:r0 + S, 2 * H + lo:2 * H + lo + DH].astype(jnp.bfloat16)
                s = jax.lax.dot_general(qh, kh, (((1,), (1,)), ((), ())),
                                        preferred_element_type=jnp.float32)     # (S, S)
                s = s + nb
                s = s - jnp.max(s, axis=-1, keepdims=True)
                p = jnp.exp(s)
                p = p * pl.reciprocal(jnp.sum(p, axis=-1, keepdims=True), approx=True)
                ctx = jnp.dot(p.astype(jnp.bfloat16), vh,
                              preferred_element_type=jnp.float32)               # (S, DH)
                # partial-sum output projection against the K-slice of wo (no head concat)
                acc_b = acc_b + jnp.dot(ctx.astype(jnp.bfloat16), wo[lo:lo + DH, :],
                                        preferred_element_type=jnp.float32)
            attn_rows.append(acc_b)
        attn = jnp.concatenate(attn_rows, axis=0) + bo_ref[l]                   # (BS, H)

        h1 = _layernorm(x + attn, g1_ref[l], b1_ref[l])
        ffn = _gelu_tanh(jnp.dot(h1.astype(jnp.bfloat16), w_in,
                                 preferred_element_type=jnp.float32) + bin_ref[l])
        ffn = jnp.dot(ffn.astype(jnp.bfloat16), w_out,
                      preferred_element_type=jnp.float32) + bout_ref[l]
        x = _layernorm(h1 + ffn, g2_ref[l], b2_ref[l])

    # ---- CLS (<s>) head + cross-entropy loss ----
    cls = jnp.concatenate([x[b * S:b * S + 1, :] for b in range(B)], axis=0)    # (B, H)
    hd = jnp.tanh(jnp.dot(cls.astype(jnp.bfloat16), wd_ref[...],
                          preferred_element_type=jnp.float32) + bd_ref[...])
    logits = jnp.dot(hd.astype(jnp.bfloat16), wp_ref[...],
                     preferred_element_type=jnp.float32) + bp_ref[...]          # (B, NLBL)
    logits_ref[...] = logits

    loss_acc = jnp.zeros((1, 1), jnp.float32)
    classes = jax.lax.broadcasted_iota(jnp.int32, (1, NLBL), 1)
    for b in range(B):                              # labels come from SMEM as scalars
        row = logits[b:b + 1, :]                                                # (1, NLBL)
        m = jnp.max(row, axis=-1, keepdims=True)
        lse = m + jnp.log(jnp.sum(jnp.exp(row - m), axis=-1, keepdims=True))
        onehot_b = (classes == labels_ref[b]).astype(jnp.float32)
        picked = jnp.sum(row * onehot_b, axis=-1, keepdims=True)
        loss_acc = loss_acc + (lse - picked)
    loss_ref[...] = loss_acc * (1.0 / B)            # mean over batch (torch CrossEntropyLoss)


# ----------------------------- pallas_call wrapper -----------------------------
_PACKED_ORDER = ["word_emb", "pos_emb_s", "type_emb", "emb_ln_g", "emb_ln_b",
                 "wqkv", "bqkv", "wo", "bo", "ln1_g", "ln1_b",
                 "w_in", "b_in", "w_out", "b_out", "ln2_g", "ln2_b",
                 "wd", "bd", "wp", "bp"]


def pallas_forward(packed, ids2d, mask, labels1d):
    vm = pl.BlockSpec(memory_space=pltpu.MemorySpace.VMEM)
    sm = pl.BlockSpec(memory_space=pltpu.MemorySpace.SMEM)
    in_specs = [vm, vm, sm] + [vm] * len(_PACKED_ORDER)
    logits, loss = pl.pallas_call(
        fused_forward_kernel,
        out_shape=(jax.ShapeDtypeStruct((B, NLBL), jnp.float32),
                   jax.ShapeDtypeStruct((1, 1), jnp.float32)),
        in_specs=in_specs,
        out_specs=(vm, vm),
    )(ids2d, mask, labels1d, *[packed[k] for k in _PACKED_ORDER])
    return logits, loss


# ----------------------------- parameters & forward -----------------------------
def init_params(key):
    keys = iter(jax.random.split(key, 64))

    def nrm(shape):
        return (0.02 * jax.random.normal(next(keys), shape)).astype(jnp.float32)

    def ones(shape):
        return jnp.ones(shape, jnp.float32)

    def zeros(shape):
        return jnp.zeros(shape, jnp.float32)

    params = {
        "word_emb": nrm((VOCAB, H)),
        "pos_emb": nrm((MAXPOS, H)),
        "type_emb": nrm((1, H)),
        "emb_ln_g": ones((1, H)),
        "emb_ln_b": zeros((1, H)),
        "layers": [],
        "head": {"wd": nrm((H, H)), "bd": zeros((1, H)),
                 "wp": nrm((H, NLBL)), "bp": zeros((1, NLBL))},
    }
    for _ in range(NL):
        params["layers"].append({
            "wq": nrm((H, H)), "bq": zeros((1, H)),
            "wk": nrm((H, H)), "bk": zeros((1, H)),
            "wv": nrm((H, H)), "bv": zeros((1, H)),
            "wo": nrm((H, H)), "bo": zeros((1, H)),
            "ln1_g": ones((1, H)), "ln1_b": zeros((1, H)),
            "w_in": nrm((H, F)), "b_in": zeros((1, F)),
            "w_out": nrm((F, H)), "b_out": zeros((1, H)),
            "ln2_g": ones((1, H)), "ln2_b": zeros((1, H)),
        })
    return params


def pack_params(p):
    """Fuse QKV (folding 1/sqrt(DH) into the Q slice), stack layers on [NL, ...],
    cast matmul weights to bf16 (biases / LN params stay f32)."""
    scale = 1.0 / (DH ** 0.5)

    def stack(fn):
        return jnp.stack([fn(lp) for lp in p["layers"]], axis=0)

    return {
        "word_emb": p["word_emb"].astype(jnp.bfloat16),
        # TODO(synk): real XLM-R builds position ids with create_position_ids_from_input_ids
        # (padding-aware, offset by padding_idx); arange(S) positions are used here.
        "pos_emb_s": p["pos_emb"][:S],
        "type_emb": p["type_emb"],
        "emb_ln_g": p["emb_ln_g"], "emb_ln_b": p["emb_ln_b"],
        "wqkv": stack(lambda lp: jnp.concatenate(
            [lp["wq"] * scale, lp["wk"], lp["wv"]], axis=1)).astype(jnp.bfloat16),
        "bqkv": stack(lambda lp: jnp.concatenate(
            [lp["bq"] * scale, lp["bk"], lp["bv"]], axis=1)),
        "wo": stack(lambda lp: lp["wo"]).astype(jnp.bfloat16),
        "bo": stack(lambda lp: lp["bo"]),
        "ln1_g": stack(lambda lp: lp["ln1_g"]), "ln1_b": stack(lambda lp: lp["ln1_b"]),
        "w_in": stack(lambda lp: lp["w_in"]).astype(jnp.bfloat16),
        "b_in": stack(lambda lp: lp["b_in"]),
        "w_out": stack(lambda lp: lp["w_out"]).astype(jnp.bfloat16),
        "b_out": stack(lambda lp: lp["b_out"]),
        "ln2_g": stack(lambda lp: lp["ln2_g"]), "ln2_b": stack(lambda lp: lp["ln2_b"]),
        "wd": p["head"]["wd"].astype(jnp.bfloat16), "bd": p["head"]["bd"],
        "wp": p["head"]["wp"].astype(jnp.bfloat16), "bp": p["head"]["bp"],
    }


def idiomaticity_classifier_forward(packed, input_ids, attention_mask, labels):
    """Mirrors IdiomaticityClassifier.forward -> (loss, logits). Dropout omitted (eval mode)."""
    ids2d = input_ids.astype(jnp.int32).reshape(B * S, 1)
    mask = attention_mask.astype(jnp.float32).reshape(B, S)
    labels1d = labels.astype(jnp.int32).reshape(B)
    logits, loss = pallas_forward(packed, ids2d, mask, labels1d)
    return loss[0, 0], logits


if __name__ == "__main__":
    key = jax.random.PRNGKey(0)
    pkey, ikey = jax.random.split(key)

    params = init_params(pkey)
    packed = pack_params(params)

    input_ids = jax.random.randint(ikey, (B, S), minval=0, maxval=VOCAB, dtype=jnp.int32)
    attention_mask = jnp.array([[1, 1, 1, 1, 1, 1, 1, 1],
                                [1, 1, 1, 1, 1, 1, 0, 0]], dtype=jnp.int32)
    labels = jnp.array([0, 1], dtype=jnp.int32)

    fwd = jax.jit(functools.partial(idiomaticity_classifier_forward, packed))
    loss, logits = fwd(input_ids, attention_mask, labels)
    jax.block_until_ready((loss, logits))

    assert logits.shape == (B, NLBL) and loss.shape == ()
    assert bool(jnp.isfinite(loss)) and bool(jnp.all(jnp.isfinite(logits)))
    print("KERNEL_OK")
</pallas_src>

<mosaic_0001>
module attributes {stable_mosaic.version = 11 : i64} {
  func.func @fused_forward_kernel(%arg0: memref<16x1xi32, #tpu.memory_space<vmem>>, %arg1: memref<2x8xf32, #tpu.memory_space<vmem>>, %arg2: memref<2xi32, #tpu.memory_space<smem>>, %arg3: memref<128x128xbf16, #tpu.memory_space<vmem>>, %arg4: memref<8x128xf32, #tpu.memory_space<vmem>>, %arg5: memref<1x128xf32, #tpu.memory_space<vmem>>, %arg6: memref<1x128xf32, #tpu.memory_space<vmem>>, %arg7: memref<1x128xf32, #tpu.memory_space<vmem>>, %arg8: memref<2x128x384xbf16, #tpu.memory_space<vmem>>, %arg9: memref<2x1x384xf32, #tpu.memory_space<vmem>>, %arg10: memref<2x128x128xbf16, #tpu.memory_space<vmem>>, %arg11: memref<2x1x128xf32, #tpu.memory_space<vmem>>, %arg12: memref<2x1x128xf32, #tpu.memory_space<vmem>>, %arg13: memref<2x1x128xf32, #tpu.memory_space<vmem>>, %arg14: memref<2x128x256xbf16, #tpu.memory_space<vmem>>, %arg15: memref<2x1x256xf32, #tpu.memory_space<vmem>>, %arg16: memref<2x256x128xbf16, #tpu.memory_space<vmem>>, %arg17: memref<2x1x128xf32, #tpu.memory_space<vmem>>, %arg18: memref<2x1x128xf32, #tpu.memory_space<vmem>>, %arg19: memref<2x1x128xf32, #tpu.memory_space<vmem>>, %arg20: memref<128x128xbf16, #tpu.memory_space<vmem>>, %arg21: memref<1x128xf32, #tpu.memory_space<vmem>>, %arg22: memref<128x2xbf16, #tpu.memory_space<vmem>>, %arg23: memref<1x2xf32, #tpu.memory_space<vmem>>, %arg24: memref<2x2xf32, #tpu.memory_space<vmem>>, %arg25: memref<1x1xf32, #tpu.memory_space<vmem>>) attributes {dimension_semantics = [], scalar_prefetch = 0 : i64, scratch_operands = 0 : i64, tpu.core_type = #tpu.core_type<tc>} {
    %0 = tpu.iota {dimensions = array<i32: 1>} : vector<16x128xi32>
    %c0 = arith.constant 0 : index
    %c0_0 = arith.constant 0 : index
    %1 = vector.load %arg0[%c0, %c0_0] : memref<16x1xi32, #tpu.memory_space<vmem>>, vector<16x1xi32>
    %2 = vector.broadcast %1 : vector<16x1xi32> to vector<16x128xi32>
    %3 = arith.cmpi eq, %0, %2 : vector<16x128xi32>
    %4 = arith.extui %3 : vector<16x128xi1> to vector<16x128xi32>
    %5 = arith.sitofp %4 : vector<16x128xi32> to vector<16x128xf32>
    %6 = arith.truncf %5 : vector<16x128xf32> to vector<16x128xbf16>
    %c0_1 = arith.constant 0 : index
    %c0_2 = arith.constant 0 : index
    %7 = vector.load %arg3[%c0_1, %c0_2] : memref<128x128xbf16, #tpu.memory_space<vmem>>, vector<128x128xbf16>
    %cst = arith.constant dense<0.000000e+00> : vector<16x128xf32>
    %8 = tpu.matmul %6, %7, %cst {dimension_numbers = #tpu.dot_dimension_numbers<[1], [0], [0], [1], [0, 0, 1, 1], [], []>} : vector<16x128xbf16>, vector<128x128xbf16>, vector<16x128xf32> -> vector<16x128xf32>
    %c0_3 = arith.constant 0 : index
    %c0_4 = arith.constant 0 : index
    %9 = vector.load %arg4[%c0_3, %c0_4] : memref<8x128xf32, #tpu.memory_space<vmem>>, vector<8x128xf32>
    %10 = tpu.concatenate %9, %9 in 0 : vector<8x128xf32>, vector<8x128xf32> -> vector<16x128xf32>
    %11 = arith.addf %8, %10 : vector<16x128xf32>
    %c0_5 = arith.constant 0 : index
    %c0_6 = arith.constant 0 : index
    %12 = vector.load %arg5[%c0_5, %c0_6] : memref<1x128xf32, #tpu.memory_space<vmem>>, vector<1x128xf32>
    %13 = vector.broadcast %12 : vector<1x128xf32> to vector<16x128xf32>
    %14 = arith.addf %11, %13 : vector<16x128xf32>
    %c0_7 = arith.constant 0 : index
    %c0_8 = arith.constant 0 : index
    %15 = vector.load %arg6[%c0_7, %c0_8] : memref<1x128xf32, #tpu.memory_space<vmem>>, vector<1x128xf32>
    %c0_9 = arith.constant 0 : index
    %c0_10 = arith.constant 0 : index
    %16 = vector.load %arg7[%c0_9, %c0_10] : memref<1x128xf32, #tpu.memory_space<vmem>>, vector<1x128xf32>
    %cst_11 = arith.constant dense<0.000000e+00> : vector<16xf32>
    %17 = vector.multi_reduction <add>, %14, %cst_11 [1] : vector<16x128xf32> to vector<16xf32>
    %18 = vector.shape_cast %17 : vector<16xf32> to vector<16x1xf32>
    %cst_12 = arith.constant 1.280000e+02 : f32
    %19 = vector.broadcast %cst_12 : f32 to vector<16x1xf32>
    %20 = arith.divf %18, %19 : vector<16x1xf32>
    %21 = vector.broadcast %20 : vector<16x1xf32> to vector<16x128xf32>
    %22 = arith.subf %14, %21 : vector<16x128xf32>
    %23 = arith.mulf %22, %22 : vector<16x128xf32>
    %cst_13 = arith.constant dense<0.000000e+00> : vector<16xf32>
    %24 = vector.multi_reduction <add>, %23, %cst_13 [1] : vector<16x128xf32> to vector<16xf32>
    %25 = vector.shape_cast %24 : vector<16xf32> to vector<16x1xf32>
    %cst_14 = arith.constant 1.280000e+02 : f32
    %26 = vector.broadcast %cst_14 : f32 to vector<16x1xf32>
    %27 = arith.divf %25, %26 : vector<16x1xf32>
    %28 = vector.broadcast %20 : vector<16x1xf32> to vector<16x128xf32>
    %29 = arith.subf %14, %28 : vector<16x128xf32>
    %cst_15 = arith.constant 9.99999974E-6 : f32
    %30 = vector.broadcast %cst_15 : f32 to vector<16x1xf32>
    %31 = arith.addf %27, %30 : vector<16x1xf32>
    %32 = math.rsqrt %31 : vector<16x1xf32>
    %33 = vector.broadcast %32 : vector<16x1xf32> to vector<16x128xf32>
    %34 = arith.mulf %29, %33 : vector<16x128xf32>
    %35 = vector.broadcast %15 : vector<1x128xf32> to vector<16x128xf32>
    %36 = arith.mulf %34, %35 : vector<16x128xf32>
    %37 = vector.broadcast %16 : vector<1x128xf32> to vector<16x128xf32>
    %38 = arith.addf %36, %37 : vector<16x128xf32>
    %c0_16 = arith.constant 0 : index
    %c0_17 = arith.constant 0 : index
    %39 = vector.load %arg1[%c0_16, %c0_17] : memref<2x8xf32, #tpu.memory_space<vmem>>, vector<2x8xf32>
    %cst_18 = arith.constant 1.000000e+00 : f32
    %40 = vector.broadcast %cst_18 : f32 to vector<2x8xf32>
    %41 = arith.subf %40, %39 : vector<2x8xf32>
    %cst_19 = arith.constant -1.000000e+09 : f32
    %42 = vector.broadcast %cst_19 : f32 to vector<2x8xf32>
    %43 = arith.mulf %41, %42 : vector<2x8xf32>
    %c0_20 = arith.constant 0 : index
    %c0_21 = arith.constant 0 : index
    %c0_22 = arith.constant 0 : index
    %44 = vector.load %arg8[%c0_20, %c0_21, %c0_22] : memref<2x128x384xbf16, #tpu.memory_space<vmem>>, vector<1x128x384xbf16>
    %45 = vector.shape_cast %44 : vector<1x128x384xbf16> to vector<128x384xbf16>
    %c0_23 = arith.constant 0 : index
    %c0_24 = arith.constant 0 : index
    %c0_25 = arith.constant 0 : index
    %46 = vector.load %arg10[%c0_23, %c0_24, %c0_25] : memref<2x128x128xbf16, #tpu.memory_space<vmem>>, vector<1x128x128xbf16>
    %47 = vector.shape_cast %46 : vector<1x128x128xbf16> to vector<128x128xbf16>
    %c0_26 = arith.constant 0 : index
    %c0_27 = arith.constant 0 : index
    %c0_28 = arith.constant 0 : index
    %48 = vector.load %arg14[%c0_26, %c0_27, %c0_28] : memref<2x128x256xbf16, #tpu.memory_space<vmem>>, vector<1x128x256xbf16>
    %49 = vector.shape_cast %48 : vector<1x128x256xbf16> to vector<128x256xbf16>
    %c0_29 = arith.constant 0 : index
    %c0_30 = arith.constant 0 : index
    %c0_31 = arith.constant 0 : index
    %50 = vector.load %arg16[%c0_29, %c0_30, %c0_31] : memref<2x256x128xbf16, #tpu.memory_space<vmem>>, vector<1x256x128xbf16>
    %51 = vector.shape_cast %50 : vector<1x256x128xbf16> to vector<256x128xbf16>
    %52 = arith.truncf %38 : vector<16x128xf32> to vector<16x128xbf16>
    %cst_32 = arith.constant dense<0.000000e+00> : vector<16x384xf32>
    %53 = tpu.matmul %52, %45, %cst_32 {dimension_numbers = #tpu.dot_dimension_numbers<[1], [0], [0], [1], [0, 0, 1, 1], [], []>} : vector<16x128xbf16>, vector<128x384xbf16>, vector<16x384xf32> -> vector<16x384xf32>
    %c0_33 = arith.constant 0 : index
    %c0_34 = arith.constant 0 : index
    %c0_35 = arith.constant 0 : index
    %54 = vector.load %arg9[%c0_33, %c0_34, %c0_35] : memref<2x1x384xf32, #tpu.memory_space<vmem>>, vector<1x1x384xf32>
    %55 = vector.shape_cast %54 : vector<1x1x384xf32> to vector<1x384xf32>
    %56 = vector.broadcast %55 : vector<1x384xf32> to vector<16x384xf32>
    %57 = arith.addf %53, %56 : vector<16x384xf32>
    %58 = vector.extract_strided_slice %43 {offsets = [0, 0], sizes = [1, 8], strides = [1, 1]} : vector<2x8xf32> to vector<1x8xf32>
    %cst_36 = arith.constant 0.000000e+00 : f32
    %59 = vector.broadcast %cst_36 : f32 to vector<8x128xf32>
    %60 = vector.extract_strided_slice %57 {offsets = [0, 0], sizes = [8, 32], strides = [1, 1]} : vector<16x384xf32> to vector<8x32xf32>
    %61 = arith.truncf %60 : vector<8x32xf32> to vector<8x32xbf16>
    %62 = vector.extract_strided_slice %57 {offsets = [0, 128], sizes = [8, 32], strides = [1, 1]} : vector<16x384xf32> to vector<8x32xf32>
    %63 = arith.truncf %62 : vector<8x32xf32> to vector<8x32xbf16>
    %64 = vector.extract_strided_slice %57 {offsets = [0, 256], sizes = [8, 32], strides = [1, 1]} : vector<16x384xf32> to vector<8x32xf32>
    %65 = arith.truncf %64 : vector<8x32xf32> to vector<8x32xbf16>
    %cst_37 = arith.constant dense<0.000000e+00> : vector<8x8xf32>
    %66 = tpu.matmul %61, %63, %cst_37 {dimension_numbers = #tpu.dot_dimension_numbers<[1], [1], [0], [0], [0, 0, 1, 0], [], []>} : vector<8x32xbf16>, vector<8x32xbf16>, vector<8x8xf32> -> vector<8x8xf32>
    %67 = vector.broadcast %58 : vector<1x8xf32> to vector<8x8xf32>
    %68 = arith.addf %66, %67 : vector<8x8xf32>
    %cst_38 = arith.constant dense<0xFF800000> : vector<8xf32>
    %69 = vector.multi_reduction <maximumf>, %68, %cst_38 [1] : vector<8x8xf32> to vector<8xf32>
    %70 = vector.shape_cast %69 : vector<8xf32> to vector<8x1xf32>
    %71 = vector.broadcast %70 : vector<8x1xf32> to vector<8x8xf32>
    %72 = arith.subf %68, %71 : vector<8x8xf32>
    %73 = math.exp %72 : vector<8x8xf32>
    %cst_39 = arith.constant dense<0.000000e+00> : vector<8xf32>
    %74 = vector.multi_reduction <add>, %73, %cst_39 [1] : vector<8x8xf32> to vector<8xf32>
    %75 = vector.shape_cast %74 : vector<8xf32> to vector<8x1xf32>
    %76 = tpu.reciprocal %75 {approx = true} : vector<8x1xf32> -> vector<8x1xf32>
    %77 = vector.broadcast %76 : vector<8x1xf32> to vector<8x8xf32>
    %78 = arith.mulf %73, %77 : vector<8x8xf32>
    %79 = arith.truncf %78 : vector<8x8xf32> to vector<8x8xbf16>
    %cst_40 = arith.constant dense<0.000000e+00> : vector<8x32xf32>
    %80 = tpu.matmul %79, %65, %cst_40 {dimension_numbers = #tpu.dot_dimension_numbers<[1], [0], [0], [1], [0, 0, 1, 1], [], []>} : vector<8x8xbf16>, vector<8x32xbf16>, vector<8x32xf32> -> vector<8x32xf32>
    %81 = arith.truncf %80 : vector<8x32xf32> to vector<8x32xbf16>
    %82 = vector.extract_strided_slice %47 {offsets = [0, 0], sizes = [32, 128], strides = [1, 1]} : vector<128x128xbf16> to vector<32x128xbf16>
    %cst_41 = arith.constant dense<0.000000e+00> : vector<8x128xf32>
    %83 = tpu.matmul %81, %82, %cst_41 {dimension_numbers = #tpu.dot_dimension_numbers<[1], [0], [0], [1], [0, 0, 1, 1], [], []>} : vector<8x32xbf16>, vector<32x128xbf16>, vector<8x128xf32> -> vector<8x128xf32>
    %84 = arith.addf %59, %83 : vector<8x128xf32>
    %85 = vector.extract_strided_slice %57 {offsets = [0, 32], sizes = [8, 32], strides = [1, 1]} : vector<16x384xf32> to vector<8x32xf32>
    %86 = arith.truncf %85 : vector<8x32xf32> to vector<8x32xbf16>
    %87 = vector.extract_strided_slice %57 {offsets = [0, 160], sizes = [8, 32], strides = [1, 1]} : vector<16x384xf32> to vector<8x32xf32>
    %88 = arith.truncf %87 : vector<8x32xf32> to vector<8x32xbf16>
    %89 = vector.extract_strided_slice %57 {offsets = [0, 288], sizes = [8, 32], strides = [1, 1]} : vector<16x384xf32> to vector<8x32xf32>
    %90 = arith.truncf %89 : vector<8x32xf32> to vector<8x32xbf16>
    %cst_42 = arith.constant dense<0.000000e+00> : vector<8x8xf32>
    %91 = tpu.matmul %86, %88, %cst_42 {dimension_numbers = #tpu.dot_dimension_numbers<[1], [1], [0], [0], [0, 0, 1, 0], [], []>} : vector<8x32xbf16>, vector<8x32xbf16>, vector<8x8xf32> -> vector<8x8xf32>
    %92 = vector.broadcast %58 : vector<1x8xf32> to vector<8x8xf32>
    %93 = arith.addf %91, %92 : vector<8x8xf32>
    %cst_43 = arith.constant dense<0xFF800000> : vector<8xf32>
    %94 = vector.multi_reduction <maximumf>, %93, %cst_43 [1] : vector<8x8xf32> to vector<8xf32>
    %95 = vector.shape_cast %94 : vector<8xf32> to vector<8x1xf32>
    %96 = vector.broadcast %95 : vector<8x1xf32> to vector<8x8xf32>
    %97 = arith.subf %93, %96 : vector<8x8xf32>
    %98 = math.exp %97 : vector<8x8xf32>
    %cst_44 = arith.constant dense<0.000000e+00> : vector<8xf32>
    %99 = vector.multi_reduction <add>, %98, %cst_44 [1] : vector<8x8xf32> to vector<8xf32>
    %100 = vector.shape_cast %99 : vector<8xf32> to vector<8x1xf32>
    %101 = tpu.reciprocal %100 {approx = true} : vector<8x1xf32> -> vector<8x1xf32>
    %102 = vector.broadcast %101 : vector<8x1xf32> to vector<8x8xf32>
    %103 = arith.mulf %98, %102 : vector<8x8xf32>
    %104 = arith.truncf %103 : vector<8x8xf32> to vector<8x8xbf16>
    %cst_45 = arith.constant dense<0.000000e+00> : vector<8x32xf32>
    %105 = tpu.matmul %104, %90, %cst_45 {dimension_numbers = #tpu.dot_dimension_numbers<[1], [0], [0], [1], [0, 0, 1, 1], [], []>} : vector<8x8xbf16>, vector<8x32xbf16>, vector<8x32xf32> -> vector<8x32xf32>
    %106 = arith.truncf %105 : vector<8x32xf32> to vector<8x32xbf16>
    %107 = vector.extract_strided_slice %47 {offsets = [32, 0], sizes = [32, 128], strides = [1, 1]} : vector<128x128xbf16> to vector<32x128xbf16>
    %cst_46 = arith.constant dense<0.000000e+00> : vector<8x128xf32>
    %108 = tpu.matmul %106, %107, %cst_46 {dimension_numbers = #tpu.dot_dimension_numbers<[1], [0], [0], [1], [0, 0, 1, 1], [], []>} : vector<8x32xbf16>, vector<32x128xbf16>, vector<8x128xf32> -> vector<8x128xf32>
    %109 = arith.addf %84, %108 : vector<8x128xf32>
    %110 = vector.extract_strided_slice %57 {offsets = [0, 64], sizes = [8, 32], strides = [1, 1]} : vector<16x384xf32> to vector<8x32xf32>
    %111 = arith.truncf %110 : vector<8x32xf32> to vector<8x32xbf16>
    %112 = vector.extract_strided_slice %57 {offsets = [0, 192], sizes = [8, 32], strides = [1, 1]} : vector<16x384xf32> to vector<8x32xf32>
    %113 = arith.truncf %112 : vector<8x32xf32> to vector<8x32xbf16>
    %114 = vector.extract_strided_slice %57 {offsets = [0, 320], sizes = [8, 32], strides = [1, 1]} : vector<16x384xf32> to vector<8x32xf32>
    %115 = arith.truncf %114 : vector<8x32xf32> to vector<8x32xbf16>
    %cst_47 = arith.constant dense<0.000000e+00> : vector<8x8xf32>
    %116 = tpu.matmul %111, %113, %cst_47 {dimension_numbers = #tpu.dot_dimension_numbers<[1], [1], [0], [0], [0, 0, 1, 0], [], []>} : vector<8x32xbf16>, vector<8x32xbf16>, vector<8x8xf32> -> vector<8x8xf32>
    %117 = vector.broadcast %58 : vector<1x8xf32> to vector<8x8xf32>
    %118 = arith.addf %116, %117 : vector<8x8xf32>
    %cst_48 = arith.constant dense<0xFF800000> : vector<8xf32>
    %119 = vector.multi_reduction <maximumf>, %118, %cst_48 [1] : vector<8x8xf32> to vector<8xf32>
    %120 = vector.shape_cast %119 : vector<8xf32> to vector<8x1xf32>
    %121 = vector.broadcast %120 : vector<8x1xf32> to vector<8x8xf32>
    %122 = arith.subf %118, %121 : vector<8x8xf32>
    %123 = math.exp %122 : vector<8x8xf32>
    %cst_49 = arith.constant dense<0.000000e+00> : vector<8xf32>
    %124 = vector.multi_reduction <add>, %123, %cst_49 [1] : vector<8x8xf32> to vector<8xf32>
    %125 = vector.shape_cast %124 : vector<8xf32> to vector<8x1xf32>
    %126 = tpu.reciprocal %125 {approx = true} : vector<8x1xf32> -> vector<8x1xf32>
    %127 = vector.broadcast %126 : vector<8x1xf32> to vector<8x8xf32>
    %128 = arith.mulf %123, %127 : vector<8x8xf32>
    %129 = arith.truncf %128 : vector<8x8xf32> to vector<8x8xbf16>
    %cst_50 = arith.constant dense<0.000000e+00> : vector<8x32xf32>
    %130 = tpu.matmul %129, %115, %cst_50 {dimension_numbers = #tpu.dot_dimension_numbers<[1], [0], [0], [1], [0, 0, 1, 1], [], []>} : vector<8x8xbf16>, vector<8x32xbf16>, vector<8x32xf32> -> vector<8x32xf32>
    %131 = arith.truncf %130 : vector<8x32xf32> to vector<8x32xbf16>
    %132 = vector.extract_strided_slice %47 {offsets = [64, 0], sizes = [32, 128], strides = [1, 1]} : vector<128x128xbf16> to vector<32x128xbf16>
    %cst_51 = arith.constant dense<0.000000e+00> : vector<8x128xf32>
    %133 = tpu.matmul %131, %132, %cst_51 {dimension_numbers = #tpu.dot_dimension_numbers<[1], [0], [0], [1], [0, 0, 1, 1], [], []>} : vector<8x32xbf16>, vector<32x128xbf16>, vector<8x128xf32> -> vector<8x128xf32>
    %134 = arith.addf %109, %133 : vector<8x128xf32>
    %135 = vector.extract_strided_slice %57 {offsets = [0, 96], sizes = [8, 32], strides = [1, 1]} : vector<16x384xf32> to vector<8x32xf32>
    %136 = arith.truncf %135 : vector<8x32xf32> to vector<8x32xbf16>
    %137 = vector.extract_strided_slice %57 {offsets = [0, 224], sizes = [8, 32], strides = [1, 1]} : vector<16x384xf32> to vector<8x32xf32>
    %138 = arith.truncf %137 : vector<8x32xf32> to vector<8x32xbf16>
    %139 = vector.extract_strided_slice %57 {offsets = [0, 352], sizes = [8, 32], strides = [1, 1]} : vector<16x384xf32> to vector<8x32xf32>
    %140 = arith.truncf %139 : vector<8x32xf32> to vector<8x32xbf16>
    %cst_52 = arith.constant dense<0.000000e+00> : vector<8x8xf32>
    %141 = tpu.matmul %136, %138, %cst_52 {dimension_numbers = #tpu.dot_dimension_numbers<[1], [1], [0], [0], [0, 0, 1, 0], [], []>} : vector<8x32xbf16>, vector<8x32xbf16>, vector<8x8xf32> -> vector<8x8xf32>
    %142 = vector.broadcast %58 : vector<1x8xf32> to vector<8x8xf32>
    %143 = arith.addf %141, %142 : vector<8x8xf32>
    %cst_53 = arith.constant dense<0xFF800000> : vector<8xf32>
    %144 = vector.multi_reduction <maximumf>, %143, %cst_53 [1] : vector<8x8xf32> to vector<8xf32>
    %145 = vector.shape_cast %144 : vector<8xf32> to vector<8x1xf32>
    %146 = vector.broadcast %145 : vector<8x1xf32> to vector<8x8xf32>
    %147 = arith.subf %143, %146 : vector<8x8xf32>
    %148 = math.exp %147 : vector<8x8xf32>
    %cst_54 = arith.constant dense<0.000000e+00> : vector<8xf32>
    %149 = vector.multi_reduction <add>, %148, %cst_54 [1] : vector<8x8xf32> to vector<8xf32>
    %150 = vector.shape_cast %149 : vector<8xf32> to vector<8x1xf32>
    %151 = tpu.reciprocal %150 {approx = true} : vector<8x1xf32> -> vector<8x1xf32>
    %152 = vector.broadcast %151 : vector<8x1xf32> to vector<8x8xf32>
    %153 = arith.mulf %148, %152 : vector<8x8xf32>
    %154 = arith.truncf %153 : vector<8x8xf32> to vector<8x8xbf16>
    %cst_55 = arith.constant dense<0.000000e+00> : vector<8x32xf32>
    %155 = tpu.matmul %154, %140, %cst_55 {dimension_numbers = #tpu.dot_dimension_numbers<[1], [0], [0], [1], [0, 0, 1, 1], [], []>} : vector<8x8xbf16>, vector<8x32xbf16>, vector<8x32xf32> -> vector<8x32xf32>
    %156 = arith.truncf %155 : vector<8x32xf32> to vector<8x32xbf16>
    %157 = vector.extract_strided_slice %47 {offsets = [96, 0], sizes = [32, 128], strides = [1, 1]} : vector<128x128xbf16> to vector<32x128xbf16>
    %cst_56 = arith.constant dense<0.000000e+00> : vector<8x128xf32>
    %158 = tpu.matmul %156, %157, %cst_56 {dimension_numbers = #tpu.dot_dimension_numbers<[1], [0], [0], [1], [0, 0, 1, 1], [], []>} : vector<8x32xbf16>, vector<32x128xbf16>, vector<8x128xf32> -> vector<8x128xf32>
    %159 = arith.addf %134, %158 : vector<8x128xf32>
    %160 = vector.extract_strided_slice %43 {offsets = [1, 0], sizes = [1, 8], strides = [1, 1]} : vector<2x8xf32> to vector<1x8xf32>
    %cst_57 = arith.constant 0.000000e+00 : f32
    %161 = vector.broadcast %cst_57 : f32 to vector<8x128xf32>
    %162 = vector.extract_strided_slice %57 {offsets = [8, 0], sizes = [8, 32], strides = [1, 1]} : vector<16x384xf32> to vector<8x32xf32>
    %163 = arith.truncf %162 : vector<8x32xf32> to vector<8x32xbf16>
    %164 = vector.extract_strided_slice %57 {offsets = [8, 128], sizes = [8, 32], strides = [1, 1]} : vector<16x384xf32> to vector<8x32xf32>
    %165 = arith.truncf %164 : vector<8x32xf32> to vector<8x32xbf16>
    %166 = vector.extract_strided_slice %57 {offsets = [8, 256], sizes = [8, 32], strides = [1, 1]} : vector<16x384xf32> to vector<8x32xf32>
    %167 = arith.truncf %166 : vector<8x32xf32> to vector<8x32xbf16>
    %cst_58 = arith.constant dense<0.000000e+00> : vector<8x8xf32>
    %168 = tpu.matmul %163, %165, %cst_58 {dimension_numbers = #tpu.dot_dimension_numbers<[1], [1], [0], [0], [0, 0, 1, 0], [], []>} : vector<8x32xbf16>, vector<8x32xbf16>, vector<8x8xf32> -> vector<8x8xf32>
    %169 = vector.broadcast %160 : vector<1x8xf32> to vector<8x8xf32>
    %170 = arith.addf %168, %169 : vector<8x8xf32>
    %cst_59 = arith.constant dense<0xFF800000> : vector<8xf32>
    %171 = vector.multi_reduction <maximumf>, %170, %cst_59 [1] : vector<8x8xf32> to vector<8xf32>
    %172 = vector.shape_cast %171 : vector<8xf32> to vector<8x1xf32>
    %173 = vector.broadcast %172 : vector<8x1xf32> to vector<8x8xf32>
    %174 = arith.subf %170, %173 : vector<8x8xf32>
    %175 = math.exp %174 : vector<8x8xf32>
    %cst_60 = arith.constant dense<0.000000e+00> : vector<8xf32>
    %176 = vector.multi_reduction <add>, %175, %cst_60 [1] : vector<8x8xf32> to vector<8xf32>
    %177 = vector.shape_cast %176 : vector<8xf32> to vector<8x1xf32>
    %178 = tpu.reciprocal %177 {approx = true} : vector<8x1xf32> -> vector<8x1xf32>
    %179 = vector.broadcast %178 : vector<8x1xf32> to vector<8x8xf32>
    %180 = arith.mulf %175, %179 : vector<8x8xf32>
    %181 = arith.truncf %180 : vector<8x8xf32> to vector<8x8xbf16>
    %cst_61 = arith.constant dense<0.000000e+00> : vector<8x32xf32>
    %182 = tpu.matmul %181, %167, %cst_61 {dimension_numbers = #tpu.dot_dimension_numbers<[1], [0], [0], [1], [0, 0, 1, 1], [], []>} : vector<8x8xbf16>, vector<8x32xbf16>, vector<8x32xf32> -> vector<8x32xf32>
    %183 = arith.truncf %182 : vector<8x32xf32> to vector<8x32xbf16>
    %184 = vector.extract_strided_slice %47 {offsets = [0, 0], sizes = [32, 128], strides = [1, 1]} : vector<128x128xbf16> to vector<32x128xbf16>
    %cst_62 = arith.constant dense<0.000000e+00> : vector<8x128xf32>
    %185 = tpu.matmul %183, %184, %cst_62 {dimension_numbers = #tpu.dot_dimension_numbers<[1], [0], [0], [1], [0, 0, 1, 1], [], []>} : vector<8x32xbf16>, vector<32x128xbf16>, vector<8x128xf32> -> vector<8x128xf32>
    %186 = arith.addf %161, %185 : vector<8x128xf32>
    %187 = vector.extract_strided_slice %57 {offsets = [8, 32], sizes = [8, 32], strides = [1, 1]} : vector<16x384xf32> to vector<8x32xf32>
    %188 = arith.truncf %187 : vector<8x32xf32> to vector<8x32xbf16>
    %189 = vector.extract_strided_slice %57 {offsets = [8, 160], sizes = [8, 32], strides = [1, 1]} : vector<16x384xf32> to vector<8x32xf32>
    %190 = arith.truncf %189 : vector<8x32xf32> to vector<8x32xbf16>
    %191 = vector.extract_strided_slice %57 {offsets = [8, 288], sizes = [8, 32], strides = [1, 1]} : vector<16x384xf32> to vector<8x32xf32>
    %192 = arith.truncf %191 : vector<8x32xf32> to vector<8x32xbf16>
    %cst_63 = arith.constant dense<0.000000e+00> : vector<8x8xf32>
    %193 = tpu.matmul %188, %190, %cst_63 {dimension_numbers = #tpu.dot_dimension_numbers<[1], [1], [0], [0], [0, 0, 1, 0], [], []>} : vector<8x32xbf16>, vector<8x32xbf16>, vector<8x8xf32> -> vector<8x8xf32>
    %194 = vector.broadcast %160 : vector<1x8xf32> to vector<8x8xf32>
    %195 = arith.addf %193, %194 : vector<8x8xf32>
    %cst_64 = arith.constant dense<0xFF800000> : vector<8xf32>
    %196 = vector.multi_reduction <maximumf>, %195, %cst_64 [1] : vector<8x8xf32> to vector<8xf32>
    %197 = vector.shape_cast %196 : vector<8xf32> to vector<8x1xf32>
    %198 = vector.broadcast %197 : vector<8x1xf32> to vector<8x8xf32>
    %199 = arith.subf %195, %198 : vector<8x8xf32>
    %200 = math.exp %199 : vector<8x8xf32>
    %cst_65 = arith.constant dense<0.000000e+00> : vector<8xf32>
    %201 = vector.multi_reduction <add>, %200, %cst_65 [1] : vector<8x8xf32> to vector<8xf32>
    %202 = vector.shape_cast %201 : vector<8xf32> to vector<8x1xf32>
    %203 = tpu.reciprocal %202 {approx = true} : vector<8x1xf32> -> vector<8x1xf32>
    %204 = vector.broadcast %203 : vector<8x1xf32> to vector<8x8xf32>
    %205 = arith.mulf %200, %204 : vector<8x8xf32>
    %206 = arith.truncf %205 : vector<8x8xf32> to vector<8x8xbf16>
    %cst_66 = arith.constant dense<0.000000e+00> : vector<8x32xf32>
    %207 = tpu.matmul %206, %192, %cst_66 {dimension_numbers = #tpu.dot_dimension_numbers<[1], [0], [0], [1], [0, 0, 1, 1], [], []>} : vector<8x8xbf16>, vector<8x32xbf16>, vector<8x32xf32> -> vector<8x32xf32>
    %208 = arith.truncf %207 : vector<8x32xf32> to vector<8x32xbf16>
    %209 = vector.extract_strided_slice %47 {offsets = [32, 0], sizes = [32, 128], strides = [1, 1]} : vector<128x128xbf16> to vector<32x128xbf16>
    %cst_67 = arith.constant dense<0.000000e+00> : vector<8x128xf32>
    %210 = tpu.matmul %208, %209, %cst_67 {dimension_numbers = #tpu.dot_dimension_numbers<[1], [0], [0], [1], [0, 0, 1, 1], [], []>} : vector<8x32xbf16>, vector<32x128xbf16>, vector<8x128xf32> -> vector<8x128xf32>
    %211 = arith.addf %186, %210 : vector<8x128xf32>
    %212 = vector.extract_strided_slice %57 {offsets = [8, 64], sizes = [8, 32], strides = [1, 1]} : vector<16x384xf32> to vector<8x32xf32>
    %213 = arith.truncf %212 : vector<8x32xf32> to vector<8x32xbf16>
    %214 = vector.extract_strided_slice %57 {offsets = [8, 192], sizes = [8, 32], strides = [1, 1]} : vector<16x384xf32> to vector<8x32xf32>
    %215 = arith.truncf %214 : vector<8x32xf32> to vector<8x32xbf16>
    %216 = vector.extract_strided_slice %57 {offsets = [8, 320], sizes = [8, 32], strides = [1, 1]} : vector<16x384xf32> to vector<8x32xf32>
    %217 = arith.truncf %216 : vector<8x32xf32> to vector<8x32xbf16>
    %cst_68 = arith.constant dense<0.000000e+00> : vector<8x8xf32>
    %218 = tpu.matmul %213, %215, %cst_68 {dimension_numbers = #tpu.dot_dimension_numbers<[1], [1], [0], [0], [0, 0, 1, 0], [], []>} : vector<8x32xbf16>, vector<8x32xbf16>, vector<8x8xf32> -> vector<8x8xf32>
    %219 = vector.broadcast %160 : vector<1x8xf32> to vector<8x8xf32>
    %220 = arith.addf %218, %219 : vector<8x8xf32>
    %cst_69 = arith.constant dense<0xFF800000> : vector<8xf32>
    %221 = vector.multi_reduction <maximumf>, %220, %cst_69 [1] : vector<8x8xf32> to vector<8xf32>
    %222 = vector.shape_cast %221 : vector<8xf32> to vector<8x1xf32>
    %223 = vector.broadcast %222 : vector<8x1xf32> to vector<8x8xf32>
    %224 = arith.subf %220, %223 : vector<8x8xf32>
    %225 = math.exp %224 : vector<8x8xf32>
    %cst_70 = arith.constant dense<0.000000e+00> : vector<8xf32>
    %226 = vector.multi_reduction <add>, %225, %cst_70 [1] : vector<8x8xf32> to vector<8xf32>
    %227 = vector.shape_cast %226 : vector<8xf32> to vector<8x1xf32>
    %228 = tpu.reciprocal %227 {approx = true} : vector<8x1xf32> -> vector<8x1xf32>
    %229 = vector.broadcast %228 : vector<8x1xf32> to vector<8x8xf32>
    %230 = arith.mulf %225, %229 : vector<8x8xf32>
    %231 = arith.truncf %230 : vector<8x8xf32> to vector<8x8xbf16>
    %cst_71 = arith.constant dense<0.000000e+00> : vector<8x32xf32>
    %232 = tpu.matmul %231, %217, %cst_71 {dimension_numbers = #tpu.dot_dimension_numbers<[1], [0], [0], [1], [0, 0, 1, 1], [], []>} : vector<8x8xbf16>, vector<8x32xbf16>, vector<8x32xf32> -> vector<8x32xf32>
    %233 = arith.truncf %232 : vector<8x32xf32> to vector<8x32xbf16>
    %234 = vector.extract_strided_slice %47 {offsets = [64, 0], sizes = [32, 128], strides = [1, 1]} : vector<128x128xbf16> to vector<32x128xbf16>
    %cst_72 = arith.constant dense<0.000000e+00> : vector<8x128xf32>
    %235 = tpu.matmul %233, %234, %cst_72 {dimension_numbers = #tpu.dot_dimension_numbers<[1], [0], [0], [1], [0, 0, 1, 1], [], []>} : vector<8x32xbf16>, vector<32x128xbf16>, vector<8x128xf32> -> vector<8x128xf32>
    %236 = arith.addf %211, %235 : vector<8x128xf32>
    %237 = vector.extract_strided_slice %57 {offsets = [8, 96], sizes = [8, 32], strides = [1, 1]} : vector<16x384xf32> to vector<8x32xf32>
    %238 = arith.truncf %237 : vector<8x32xf32> to vector<8x32xbf16>
    %239 = vector.extract_strided_slice %57 {offsets = [8, 224], sizes = [8, 32], strides = [1, 1]} : vector<16x384xf32> to vector<8x32xf32>
    %240 = arith.truncf %239 : vector<8x32xf32> to vector<8x32xbf16>
    %241 = vector.extract_strided_slice %57 {offsets = [8, 352], sizes = [8, 32], strides = [1, 1]} : vector<16x384xf32> to vector<8x32xf32>
    %242 = arith.truncf %241 : vector<8x32xf32> to vector<8x32xbf16>
    %cst_73 = arith.constant dense<0.000000e+00> : vector<8x8xf32>
    %243 = tpu.matmul %238, %240, %cst_73 {dimension_numbers = #tpu.dot_dimension_numbers<[1], [1], [0], [0], [0, 0, 1, 0], [], []>} : vector<8x32xbf16>, vector<8x32xbf16>, vector<8x8xf32> -> vector<8x8xf32>
    %244 = vector.broadcast %160 : vector<1x8xf32> to vector<8x8xf32>
    %245 = arith.addf %243, %244 : vector<8x8xf32>
    %cst_74 = arith.constant dense<0xFF800000> : vector<8xf32>
    %246 = vector.multi_reduction <maximumf>, %245, %cst_74 [1] : vector<8x8xf32> to vector<8xf32>
    %247 = vector.shape_cast %246 : vector<8xf32> to vector<8x1xf32>
    %248 = vector.broadcast %247 : vector<8x1xf32> to vector<8x8xf32>
    %249 = arith.subf %245, %248 : vector<8x8xf32>
    %250 = math.exp %249 : vector<8x8xf32>
    %cst_75 = arith.constant dense<0.000000e+00> : vector<8xf32>
    %251 = vector.multi_reduction <add>, %250, %cst_75 [1] : vector<8x8xf32> to vector<8xf32>
    %252 = vector.shape_cast %251 : vector<8xf32> to vector<8x1xf32>
    %253 = tpu.reciprocal %252 {approx = true} : vector<8x1xf32> -> vector<8x1xf32>
    %254 = vector.broadcast %253 : vector<8x1xf32> to vector<8x8xf32>
    %255 = arith.mulf %250, %254 : vector<8x8xf32>
    %256 = arith.truncf %255 : vector<8x8xf32> to vector<8x8xbf16>
    %cst_76 = arith.constant dense<0.000000e+00> : vector<8x32xf32>
    %257 = tpu.matmul %256, %242, %cst_76 {dimension_numbers = #tpu.dot_dimension_numbers<[1], [0], [0], [1], [0, 0, 1, 1], [], []>} : vector<8x8xbf16>, vector<8x32xbf16>, vector<8x32xf32> -> vector<8x32xf32>
    %258 = arith.truncf %257 : vector<8x32xf32> to vector<8x32xbf16>
    %259 = vector.extract_strided_slice %47 {offsets = [96, 0], sizes = [32, 128], strides = [1, 1]} : vector<128x128xbf16> to vector<32x128xbf16>
    %cst_77 = arith.constant dense<0.000000e+00> : vector<8x128xf32>
    %260 = tpu.matmul %258, %259, %cst_77 {dimension_numbers = #tpu.dot_dimension_numbers<[1], [0], [0], [1], [0, 0, 1, 1], [], []>} : vector<8x32xbf16>, vector<32x128xbf16>, vector<8x128xf32> -> vector<8x128xf32>
    %261 = arith.addf %236, %260 : vector<8x128xf32>
    %262 = tpu.concatenate %159, %261 in 0 : vector<8x128xf32>, vector<8x128xf32> -> vector<16x128xf32>
    %c0_78 = arith.constant 0 : index
    %c0_79 = arith.constant 0 : index
    %c0_80 = arith.constant 0 : index
    %263 = vector.load %arg11[%c0_78, %c0_79, %c0_80] : memref<2x1x128xf32, #tpu.memory_space<vmem>>, vector<1x1x128xf32>
    %264 = vector.shape_cast %263 : vector<1x1x128xf32> to vector<1x128xf32>
    %265 = vector.broadcast %264 : vector<1x128xf32> to vector<16x128xf32>
    %266 = arith.addf %262, %265 : vector<16x128xf32>
    %267 = arith.addf %38, %266 : vector<16x128xf32>
    %c0_81 = arith.constant 0 : index
    %c0_82 = arith.constant 0 : index
    %c0_83 = arith.constant 0 : index
    %268 = vector.load %arg12[%c0_81, %c0_82, %c0_83] : memref<2x1x128xf32, #tpu.memory_space<vmem>>, vector<1x1x128xf32>
    %269 = vector.shape_cast %268 : vector<1x1x128xf32> to vector<1x128xf32>
    %c0_84 = arith.constant 0 : index
    %c0_85 = arith.constant 0 : index
    %c0_86 = arith.constant 0 : index
    %270 = vector.load %arg13[%c0_84, %c0_85, %c0_86] : memref<2x1x128xf32, #tpu.memory_space<vmem>>, vector<1x1x128xf32>
    %271 = vector.shape_cast %270 : vector<1x1x128xf32> to vector<1x128xf32>
    %cst_87 = arith.constant dense<0.000000e+00> : vector<16xf32>
    %272 = vector.multi_reduction <add>, %267, %cst_87 [1] : vector<16x128xf32> to vector<16xf32>
    %273 = vector.shape_cast %272 : vector<16xf32> to vector<16x1xf32>
    %cst_88 = arith.constant 1.280000e+02 : f32
    %274 = vector.broadcast %cst_88 : f32 to vector<16x1xf32>
    %275 = arith.divf %273, %274 : vector<16x1xf32>
    %276 = vector.broadcast %275 : vector<16x1xf32> to vector<16x128xf32>
    %277 = arith.subf %267, %276 : vector<16x128xf32>
    %278 = arith.mulf %277, %277 : vector<16x128xf32>
    %cst_89 = arith.constant dense<0.000000e+00> : vector<16xf32>
    %279 = vector.multi_reduction <add>, %278, %cst_89 [1] : vector<16x128xf32> to vector<16xf32>
    %280 = vector.shape_cast %279 : vector<16xf32> to vector<16x1xf32>
    %cst_90 = arith.constant 1.280000e+02 : f32
    %281 = vector.broadcast %cst_90 : f32 to vector<16x1xf32>
    %282 = arith.divf %280, %281 : vector<16x1xf32>
    %283 = vector.broadcast %275 : vector<16x1xf32> to vector<16x128xf32>
    %284 = arith.subf %267, %283 : vector<16x128xf32>
    %cst_91 = arith.constant 9.99999974E-6 : f32
    %285 = vector.broadcast %cst_91 : f32 to vector<16x1xf32>
    %286 = arith.addf %282, %285 : vector<16x1xf32>
    %287 = math.rsqrt %286 : vector<16x1xf32>
    %288 = vector.broadcast %287 : vector<16x1xf32> to vector<16x128xf32>
    %289 = arith.mulf %284, %288 : vector<16x128xf32>
    %290 = vector.broadcast %269 : vector<1x128xf32> to vector<16x128xf32>
    %291 = arith.mulf %289, %290 : vector<16x128xf32>
    %292 = vector.broadcast %271 : vector<1x128xf32> to vector<16x128xf32>
    %293 = arith.addf %291, %292 : vector<16x128xf32>
    %294 = arith.truncf %293 : vector<16x128xf32> to vector<16x128xbf16>
    %cst_92 = arith.constant dense<0.000000e+00> : vector<16x256xf32>
    %295 = tpu.matmul %294, %49, %cst_92 {dimension_numbers = #tpu.dot_dimension_numbers<[1], [0], [0], [1], [0, 0, 1, 1], [], []>} : vector<16x128xbf16>, vector<128x256xbf16>, vector<16x256xf32> -> vector<16x256xf32>
    %c0_93 = arith.constant 0 : index
    %c0_94 = arith.constant 0 : index
    %c0_95 = arith.constant 0 : index
    %296 = vector.load %arg15[%c0_93, %c0_94, %c0_95] : memref<2x1x256xf32, #tpu.memory_space<vmem>>, vector<1x1x256xf32>
    %297 = vector.shape_cast %296 : vector<1x1x256xf32> to vector<1x256xf32>
    %298 = vector.broadcast %297 : vector<1x256xf32> to vector<16x256xf32>
    %299 = arith.addf %295, %298 : vector<16x256xf32>
    %cst_96 = arith.constant 5.000000e-01 : f32
    %300 = vector.broadcast %cst_96 : f32 to vector<16x256xf32>
    %301 = arith.mulf %300, %299 : vector<16x256xf32>
    %cst_97 = arith.constant 4.471500e-02 : f32
    %302 = vector.broadcast %cst_97 : f32 to vector<16x256xf32>
    %303 = arith.mulf %302, %299 : vector<16x256xf32>
    %304 = arith.mulf %303, %299 : vector<16x256xf32>
    %305 = arith.mulf %304, %299 : vector<16x256xf32>
    %306 = arith.addf %299, %305 : vector<16x256xf32>
    %cst_98 = arith.constant 0.797884583 : f32
    %307 = vector.broadcast %cst_98 : f32 to vector<16x256xf32>
    %308 = arith.mulf %307, %306 : vector<16x256xf32>
    %309 = math.tanh %308 : vector<16x256xf32>
    %cst_99 = arith.constant 1.000000e+00 : f32
    %310 = vector.broadcast %cst_99 : f32 to vector<16x256xf32>
    %311 = arith.addf %310, %309 : vector<16x256xf32>
    %312 = arith.mulf %301, %311 : vector<16x256xf32>
    %313 = arith.truncf %312 : vector<16x256xf32> to vector<16x256xbf16>
    %cst_100 = arith.constant dense<0.000000e+00> : vector<16x128xf32>
    %314 = tpu.matmul %313, %51, %cst_100 {dimension_numbers = #tpu.dot_dimension_numbers<[1], [0], [0], [1], [0, 0, 1, 1], [], []>} : vector<16x256xbf16>, vector<256x128xbf16>, vector<16x128xf32> -> vector<16x128xf32>
    %c0_101 = arith.constant 0 : index
    %c0_102 = arith.constant 0 : index
    %c0_103 = arith.constant 0 : index
    %315 = vector.load %arg17[%c0_101, %c0_102, %c0_103] : memref<2x1x128xf32, #tpu.memory_space<vmem>>, vector<1x1x128xf32>
    %316 = vector.shape_cast %315 : vector<1x1x128xf32> to vector<1x128xf32>
    %317 = vector.broadcast %316 : vector<1x128xf32> to vector<16x128xf32>
    %318 = arith.addf %314, %317 : vector<16x128xf32>
    %319 = arith.addf %293, %318 : vector<16x128xf32>
    %c0_104 = arith.constant 0 : index
    %c0_105 = arith.constant 0 : index
    %c0_106 = arith.constant 0 : index
    %320 = vector.load %arg18[%c0_104, %c0_105, %c0_106] : memref<2x1x128xf32, #tpu.memory_space<vmem>>, vector<1x1x128xf32>
    %321 = vector.shape_cast %320 : vector<1x1x128xf32> to vector<1x128xf32>
    %c0_107 = arith.constant 0 : index
    %c0_108 = arith.constant 0 : index
    %c0_109 = arith.constant 0 : index
    %322 = vector.load %arg19[%c0_107, %c0_108, %c0_109] : memref<2x1x128xf32, #tpu.memory_space<vmem>>, vector<1x1x128xf32>
    %323 = vector.shape_cast %322 : vector<1x1x128xf32> to vector<1x128xf32>
    %cst_110 = arith.constant dense<0.000000e+00> : vector<16xf32>
    %324 = vector.multi_reduction <add>, %319, %cst_110 [1] : vector<16x128xf32> to vector<16xf32>
    %325 = vector.shape_cast %324 : vector<16xf32> to vector<16x1xf32>
    %cst_111 = arith.constant 1.280000e+02 : f32
    %326 = vector.broadcast %cst_111 : f32 to vector<16x1xf32>
    %327 = arith.divf %325, %326 : vector<16x1xf32>
    %328 = vector.broadcast %327 : vector<16x1xf32> to vector<16x128xf32>
    %329 = arith.subf %319, %328 : vector<16x128xf32>
    %330 = arith.mulf %329, %329 : vector<16x128xf32>
    %cst_112 = arith.constant dense<0.000000e+00> : vector<16xf32>
    %331 = vector.multi_reduction <add>, %330, %cst_112 [1] : vector<16x128xf32> to vector<16xf32>
    %332 = vector.shape_cast %331 : vector<16xf32> to vector<16x1xf32>
    %cst_113 = arith.constant 1.280000e+02 : f32
    %333 = vector.broadcast %cst_113 : f32 to vector<16x1xf32>
    %334 = arith.divf %332, %333 : vector<16x1xf32>
    %335 = vector.broadcast %327 : vector<16x1xf32> to vector<16x128xf32>
    %336 = arith.subf %319, %335 : vector<16x128xf32>
    %cst_114 = arith.constant 9.99999974E-6 : f32
    %337 = vector.broadcast %cst_114 : f32 to vector<16x1xf32>
    %338 = arith.addf %334, %337 : vector<16x1xf32>
    %339 = math.rsqrt %338 : vector<16x1xf32>
    %340 = vector.broadcast %339 : vector<16x1xf32> to vector<16x128xf32>
    %341 = arith.mulf %336, %340 : vector<16x128xf32>
    %342 = vector.broadcast %321 : vector<1x128xf32> to vector<16x128xf32>
    %343 = arith.mulf %341, %342 : vector<16x128xf32>
    %344 = vector.broadcast %323 : vector<1x128xf32> to vector<16x128xf32>
    %345 = arith.addf %343, %344 : vector<16x128xf32>
    %c1 = arith.constant 1 : index
    %c0_115 = arith.constant 0 : index
    %c0_116 = arith.constant 0 : index
    %346 = vector.load %arg8[%c1, %c0_115, %c0_116] : memref<2x128x384xbf16, #tpu.memory_space<vmem>>, vector<1x128x384xbf16>
    %347 = vector.shape_cast %346 : vector<1x128x384xbf16> to vector<128x384xbf16>
    %c1_117 = arith.constant 1 : index
    %c0_118 = arith.constant 0 : index
    %c0_119 = arith.constant 0 : index
    %348 = vector.load %arg10[%c1_117, %c0_118, %c0_119] : memref<2x128x128xbf16, #tpu.memory_space<vmem>>, vector<1x128x128xbf16>
    %349 = vector.shape_cast %348 : vector<1x128x128xbf16> to vector<128x128xbf16>
    %c1_120 = arith.constant 1 : index
    %c0_121 = arith.constant 0 : index
    %c0_122 = arith.constant 0 : index
    %350 = vector.load %arg14[%c1_120, %c0_121, %c0_122] : memref<2x128x256xbf16, #tpu.memory_space<vmem>>, vector<1x128x256xbf16>
    %351 = vector.shape_cast %350 : vector<1x128x256xbf16> to vector<128x256xbf16>
    %c1_123 = arith.constant 1 : index
    %c0_124 = arith.constant 0 : index
    %c0_125 = arith.constant 0 : index
    %352 = vector.load %arg16[%c1_123, %c0_124, %c0_125] : memref<2x256x128xbf16, #tpu.memory_space<vmem>>, vector<1x256x128xbf16>
    %353 = vector.shape_cast %352 : vector<1x256x128xbf16> to vector<256x128xbf16>
    %354 = arith.truncf %345 : vector<16x128xf32> to vector<16x128xbf16>
    %cst_126 = arith.constant dense<0.000000e+00> : vector<16x384xf32>
    %355 = tpu.matmul %354, %347, %cst_126 {dimension_numbers = #tpu.dot_dimension_numbers<[1], [0], [0], [1], [0, 0, 1, 1], [], []>} : vector<16x128xbf16>, vector<128x384xbf16>, vector<16x384xf32> -> vector<16x384xf32>
    %c1_127 = arith.constant 1 : index
    %c0_128 = arith.constant 0 : index
    %c0_129 = arith.constant 0 : index
    %356 = vector.load %arg9[%c1_127, %c0_128, %c0_129] : memref<2x1x384xf32, #tpu.memory_space<vmem>>, vector<1x1x384xf32>
    %357 = vector.shape_cast %356 : vector<1x1x384xf32> to vector<1x384xf32>
    %358 = vector.broadcast %357 : vector<1x384xf32> to vector<16x384xf32>
    %359 = arith.addf %355, %358 : vector<16x384xf32>
    %360 = vector.extract_strided_slice %43 {offsets = [0, 0], sizes = [1, 8], strides = [1, 1]} : vector<2x8xf32> to vector<1x8xf32>
    %cst_130 = arith.constant 0.000000e+00 : f32
    %361 = vector.broadcast %cst_130 : f32 to vector<8x128xf32>
    %362 = vector.extract_strided_slice %359 {offsets = [0, 0], sizes = [8, 32], strides = [1, 1]} : vector<16x384xf32> to vector<8x32xf32>
    %363 = arith.truncf %362 : vector<8x32xf32> to vector<8x32xbf16>
    %364 = vector.extract_strided_slice %359 {offsets = [0, 128], sizes = [8, 32], strides = [1, 1]} : vector<16x384xf32> to vector<8x32xf32>
    %365 = arith.truncf %364 : vector<8x32xf32> to vector<8x32xbf16>
    %366 = vector.extract_strided_slice %359 {offsets = [0, 256], sizes = [8, 32], strides = [1, 1]} : vector<16x384xf32> to vector<8x32xf32>
    %367 = arith.truncf %366 : vector<8x32xf32> to vector<8x32xbf16>
    %cst_131 = arith.constant dense<0.000000e+00> : vector<8x8xf32>
    %368 = tpu.matmul %363, %365, %cst_131 {dimension_numbers = #tpu.dot_dimension_numbers<[1], [1], [0], [0], [0, 0, 1, 0], [], []>} : vector<8x32xbf16>, vector<8x32xbf16>, vector<8x8xf32> -> vector<8x8xf32>
    %369 = vector.broadcast %360 : vector<1x8xf32> to vector<8x8xf32>
    %370 = arith.addf %368, %369 : vector<8x8xf32>
    %cst_132 = arith.constant dense<0xFF800000> : vector<8xf32>
    %371 = vector.multi_reduction <maximumf>, %370, %cst_132 [1] : vector<8x8xf32> to vector<8xf32>
    %372 = vector.shape_cast %371 : vector<8xf32> to vector<8x1xf32>
    %373 = vector.broadcast %372 : vector<8x1xf32> to vector<8x8xf32>
    %374 = arith.subf %370, %373 : vector<8x8xf32>
    %375 = math.exp %374 : vector<8x8xf32>
    %cst_133 = arith.constant dense<0.000000e+00> : vector<8xf32>
    %376 = vector.multi_reduction <add>, %375, %cst_133 [1] : vector<8x8xf32> to vector<8xf32>
    %377 = vector.shape_cast %376 : vector<8xf32> to vector<8x1xf32>
    %378 = tpu.reciprocal %377 {approx = true} : vector<8x1xf32> -> vector<8x1xf32>
    %379 = vector.broadcast %378 : vector<8x1xf32> to vector<8x8xf32>
    %380 = arith.mulf %375, %379 : vector<8x8xf32>
    %381 = arith.truncf %380 : vector<8x8xf32> to vector<8x8xbf16>
    %cst_134 = arith.constant dense<0.000000e+00> : vector<8x32xf32>
    %382 = tpu.matmul %381, %367, %cst_134 {dimension_numbers = #tpu.dot_dimension_numbers<[1], [0], [0], [1], [0, 0, 1, 1], [], []>} : vector<8x8xbf16>, vector<8x32xbf16>, vector<8x32xf32> -> vector<8x32xf32>
    %383 = arith.truncf %382 : vector<8x32xf32> to vector<8x32xbf16>
    %384 = vector.extract_strided_slice %349 {offsets = [0, 0], sizes = [32, 128], strides = [1, 1]} : vector<128x128xbf16> to vector<32x128xbf16>
    %cst_135 = arith.constant dense<0.000000e+00> : vector<8x128xf32>
    %385 = tpu.matmul %383, %384, %cst_135 {dimension_numbers = #tpu.dot_dimension_numbers<[1], [0], [0], [1], [0, 0, 1, 1], [], []>} : vector<8x32xbf16>, vector<32x128xbf16>, vector<8x128xf32> -> vector<8x128xf32>
    %386 = arith.addf %361, %385 : vector<8x128xf32>
    %387 = vector.extract_strided_slice %359 {offsets = [0, 32], sizes = [8, 32], strides = [1, 1]} : vector<16x384xf32> to vector<8x32xf32>
    %388 = arith.truncf %387 : vector<8x32xf32> to vector<8x32xbf16>
    %389 = vector.extract_strided_slice %359 {offsets = [0, 160], sizes = [8, 32], strides = [1, 1]} : vector<16x384xf32> to vector<8x32xf32>
    %390 = arith.truncf %389 : vector<8x32xf32> to vector<8x32xbf16>
    %391 = vector.extract_strided_slice %359 {offsets = [0, 288], sizes = [8, 32], strides = [1, 1]} : vector<16x384xf32> to vector<8x32xf32>
    %392 = arith.truncf %391 : vector<8x32xf32> to vector<8x32xbf16>
    %cst_136 = arith.constant dense<0.000000e+00> : vector<8x8xf32>
    %393 = tpu.matmul %388, %390, %cst_136 {dimension_numbers = #tpu.dot_dimension_numbers<[1], [1], [0], [0], [0, 0, 1, 0], [], []>} : vector<8x32xbf16>, vector<8x32xbf16>, vector<8x8xf32> -> vector<8x8xf32>
    %394 = vector.broadcast %360 : vector<1x8xf32> to vector<8x8xf32>
    %395 = arith.addf %393, %394 : vector<8x8xf32>
    %cst_137 = arith.constant dense<0xFF800000> : vector<8xf32>
    %396 = vector.multi_reduction <maximumf>, %395, %cst_137 [1] : vector<8x8xf32> to vector<8xf32>
    %397 = vector.shape_cast %396 : vector<8xf32> to vector<8x1xf32>
    %398 = vector.broadcast %397 : vector<8x1xf32> to vector<8x8xf32>
    %399 = arith.subf %395, %398 : vector<8x8xf32>
    %400 = math.exp %399 : vector<8x8xf32>
    %cst_138 = arith.constant dense<0.000000e+00> : vector<8xf32>
    %401 = vector.multi_reduction <add>, %400, %cst_138 [1] : vector<8x8xf32> to vector<8xf32>
    %402 = vector.shape_cast %401 : vector<8xf32> to vector<8x1xf32>
    %403 = tpu.reciprocal %402 {approx = true} : vector<8x1xf32> -> vector<8x1xf32>
    %404 = vector.broadcast %403 : vector<8x1xf32> to vector<8x8xf32>
    %405 = arith.mulf %400, %404 : vector<8x8xf32>
    %406 = arith.truncf %405 : vector<8x8xf32> to vector<8x8xbf16>
    %cst_139 = arith.constant dense<0.000000e+00> : vector<8x32xf32>
    %407 = tpu.matmul %406, %392, %cst_139 {dimension_numbers = #tpu.dot_dimension_numbers<[1], [0], [0], [1], [0, 0, 1, 1], [], []>} : vector<8x8xbf16>, vector<8x32xbf16>, vector<8x32xf32> -> vector<8x32xf32>
    %408 = arith.truncf %407 : vector<8x32xf32> to vector<8x32xbf16>
    %409 = vector.extract_strided_slice %349 {offsets = [32, 0], sizes = [32, 128], strides = [1, 1]} : vector<128x128xbf16> to vector<32x128xbf16>
    %cst_140 = arith.constant dense<0.000000e+00> : vector<8x128xf32>
    %410 = tpu.matmul %408, %409, %cst_140 {dimension_numbers = #tpu.dot_dimension_numbers<[1], [0], [0], [1], [0, 0, 1, 1], [], []>} : vector<8x32xbf16>, vector<32x128xbf16>, vector<8x128xf32> -> vector<8x128xf32>
    %411 = arith.addf %386, %410 : vector<8x128xf32>
    %412 = vector.extract_strided_slice %359 {offsets = [0, 64], sizes = [8, 32], strides = [1, 1]} : vector<16x384xf32> to vector<8x32xf32>
    %413 = arith.truncf %412 : vector<8x32xf32> to vector<8x32xbf16>
    %414 = vector.extract_strided_slice %359 {offsets = [0, 192], sizes = [8, 32], strides = [1, 1]} : vector<16x384xf32> to vector<8x32xf32>
    %415 = arith.truncf %414 : vector<8x32xf32> to vector<8x32xbf16>
    %416 = vector.extract_strided_slice %359 {offsets = [0, 320], sizes = [8, 32], strides = [1, 1]} : vector<16x384xf32> to vector<8x32xf32>
    %417 = arith.truncf %416 : vector<8x32xf32> to vector<8x32xbf16>
    %cst_141 = arith.constant dense<0.000000e+00> : vector<8x8xf32>
    %418 = tpu.matmul %413, %415, %cst_141 {dimension_numbers = #tpu.dot_dimension_numbers<[1], [1], [0], [0], [0, 0, 1, 0], [], []>} : vector<8x32xbf16>, vector<8x32xbf16>, vector<8x8xf32> -> vector<8x8xf32>
    %419 = vector.broadcast %360 : vector<1x8xf32> to vector<8x8xf32>
    %420 = arith.addf %418, %419 : vector<8x8xf32>
    %cst_142 = arith.constant dense<0xFF800000> : vector<8xf32>
    %421 = vector.multi_reduction <maximumf>, %420, %cst_142 [1] : vector<8x8xf32> to vector<8xf32>
    %422 = vector.shape_cast %421 : vector<8xf32> to vector<8x1xf32>
    %423 = vector.broadcast %422 : vector<8x1xf32> to vector<8x8xf32>
    %424 = arith.subf %420, %423 : vector<8x8xf32>
    %425 = math.exp %424 : vector<8x8xf32>
    %cst_143 = arith.constant dense<0.000000e+00> : vector<8xf32>
    %426 = vector.multi_reduction <add>, %425, %cst_143 [1] : vector<8x8xf32> to vector<8xf32>
    %427 = vector.shape_cast %426 : vector<8xf32> to vector<8x1xf32>
    %428 = tpu.reciprocal %427 {approx = true} : vector<8x1xf32> -> vector<8x1xf32>
    %429 = vector.broadcast %428 : vector<8x1xf32> to vector<8x8xf32>
    %430 = arith.mulf %425, %429 : vector<8x8xf32>
    %431 = arith.truncf %430 : vector<8x8xf32> to vector<8x8xbf16>
    %cst_144 = arith.constant dense<0.000000e+00> : vector<8x32xf32>
    %432 = tpu.matmul %431, %417, %cst_144 {dimension_numbers = #tpu.dot_dimension_numbers<[1], [0], [0], [1], [0, 0, 1, 1], [], []>} : vector<8x8xbf16>, vector<8x32xbf16>, vector<8x32xf32> -> vector<8x32xf32>
    %433 = arith.truncf %432 : vector<8x32xf32> to vector<8x32xbf16>
    %434 = vector.extract_strided_slice %349 {offsets = [64, 0], sizes = [32, 128], strides = [1, 1]} : vector<128x128xbf16> to vector<32x128xbf16>
    %cst_145 = arith.constant dense<0.000000e+00> : vector<8x128xf32>
    %435 = tpu.matmul %433, %434, %cst_145 {dimension_numbers = #tpu.dot_dimension_numbers<[1], [0], [0], [1], [0, 0, 1, 1], [], []>} : vector<8x32xbf16>, vector<32x128xbf16>, vector<8x128xf32> -> vector<8x128xf32>
    %436 = arith.addf %411, %435 : vector<8x128xf32>
    %437 = vector.extract_strided_slice %359 {offsets = [0, 96], sizes = [8, 32], strides = [1, 1]} : vector<16x384xf32> to vector<8x32xf32>
    %438 = arith.truncf %437 : vector<8x32xf32> to vector<8x32xbf16>
    %439 = vector.extract_strided_slice %359 {offsets = [0, 224], sizes = [8, 32], strides = [1, 1]} : vector<16x384xf32> to vector<8x32xf32>
    %440 = arith.truncf %439 : vector<8x32xf32> to vector<8x32xbf16>
    %441 = vector.extract_strided_slice %359 {offsets = [0, 352], sizes = [8, 32], strides = [1, 1]} : vector<16x384xf32> to vector<8x32xf32>
    %442 = arith.truncf %441 : vector<8x32xf32> to vector<8x32xbf16>
    %cst_146 = arith.constant dense<0.000000e+00> : vector<8x8xf32>
    %443 = tpu.matmul %438, %440, %cst_146 {dimension_numbers = #tpu.dot_dimension_numbers<[1], [1], [0], [0], [0, 0, 1, 0], [], []>} : vector<8x32xbf16>, vector<8x32xbf16>, vector<8x8xf32> -> vector<8x8xf32>
    %444 = vector.broadcast %360 : vector<1x8xf32> to vector<8x8xf32>
    %445 = arith.addf %443, %444 : vector<8x8xf32>
    %cst_147 = arith.constant dense<0xFF800000> : vector<8xf32>
    %446 = vector.multi_reduction <maximumf>, %445, %cst_147 [1] : vector<8x8xf32> to vector<8xf32>
    %447 = vector.shape_cast %446 : vector<8xf32> to vector<8x1xf32>
    %448 = vector.broadcast %447 : vector<8x1xf32> to vector<8x8xf32>
    %449 = arith.subf %445, %448 : vector<8x8xf32>
    %450 = math.exp %449 : vector<8x8xf32>
    %cst_148 = arith.constant dense<0.000000e+00> : vector<8xf32>
    %451 = vector.multi_reduction <add>, %450, %cst_148 [1] : vector<8x8xf32> to vector<8xf32>
    %452 = vector.shape_cast %451 : vector<8xf32> to vector<8x1xf32>
    %453 = tpu.reciprocal %452 {approx = true} : vector<8x1xf32> -> vector<8x1xf32>
    %454 = vector.broadcast %453 : vector<8x1xf32> to vector<8x8xf32>
    %455 = arith.mulf %450, %454 : vector<8x8xf32>
    %456 = arith.truncf %455 : vector<8x8xf32> to vector<8x8xbf16>
    %cst_149 = arith.constant dense<0.000000e+00> : vector<8x32xf32>
    %457 = tpu.matmul %456, %442, %cst_149 {dimension_numbers = #tpu.dot_dimension_numbers<[1], [0], [0], [1], [0, 0, 1, 1], [], []>} : vector<8x8xbf16>, vector<8x32xbf16>, vector<8x32xf32> -> vector<8x32xf32>
    %458 = arith.truncf %457 : vector<8x32xf32> to vector<8x32xbf16>
    %459 = vector.extract_strided_slice %349 {offsets = [96, 0], sizes = [32, 128], strides = [1, 1]} : vector<128x128xbf16> to vector<32x128xbf16>
    %cst_150 = arith.constant dense<0.000000e+00> : vector<8x128xf32>
    %460 = tpu.matmul %458, %459, %cst_150 {dimension_numbers = #tpu.dot_dimension_numbers<[1], [0], [0], [1], [0, 0, 1, 1], [], []>} : vector<8x32xbf16>, vector<32x128xbf16>, vector<8x128xf32> -> vector<8x128xf32>
    %461 = arith.addf %436, %460 : vector<8x128xf32>
    %462 = vector.extract_strided_slice %43 {offsets = [1, 0], sizes = [1, 8], strides = [1, 1]} : vector<2x8xf32> to vector<1x8xf32>
    %cst_151 = arith.constant 0.000000e+00 : f32
    %463 = vector.broadcast %cst_151 : f32 to vector<8x128xf32>
    %464 = vector.extract_strided_slice %359 {offsets = [8, 0], sizes = [8, 32], strides = [1, 1]} : vector<16x384xf32> to vector<8x32xf32>
    %465 = arith.truncf %464 : vector<8x32xf32> to vector<8x32xbf16>
    %466 = vector.extract_strided_slice %359 {offsets = [8, 128], sizes = [8, 32], strides = [1, 1]} : vector<16x384xf32> to vector<8x32xf32>
    %467 = arith.truncf %466 : vector<8x32xf32> to vector<8x32xbf16>
    %468 = vector.extract_strided_slice %359 {offsets = [8, 256], sizes = [8, 32], strides = [1, 1]} : vector<16x384xf32> to vector<8x32xf32>
    %469 = arith.truncf %468 : vector<8x32xf32> to vector<8x32xbf16>
    %cst_152 = arith.constant dense<0.000000e+00> : vector<8x8xf32>
    %470 = tpu.matmul %465, %467, %cst_152 {dimension_numbers = #tpu.dot_dimension_numbers<[1], [1], [0], [0], [0, 0, 1, 0], [], []>} : vector<8x32xbf16>, vector<8x32xbf16>, vector<8x8xf32> -> vector<8x8xf32>
    %471 = vector.broadcast %462 : vector<1x8xf32> to vector<8x8xf32>
    %472 = arith.addf %470, %471 : vector<8x8xf32>
    %cst_153 = arith.constant dense<0xFF800000> : vector<8xf32>
    %473 = vector.multi_reduction <maximumf>, %472, %cst_153 [1] : vector<8x8xf32> to vector<8xf32>
    %474 = vector.shape_cast %473 : vector<8xf32> to vector<8x1xf32>
    %475 = vector.broadcast %474 : vector<8x1xf32> to vector<8x8xf32>
    %476 = arith.subf %472, %475 : vector<8x8xf32>
    %477 = math.exp %476 : vector<8x8xf32>
    %cst_154 = arith.constant dense<0.000000e+00> : vector<8xf32>
    %478 = vector.multi_reduction <add>, %477, %cst_154 [1] : vector<8x8xf32> to vector<8xf32>
    %479 = vector.shape_cast %478 : vector<8xf32> to vector<8x1xf32>
    %480 = tpu.reciprocal %479 {approx = true} : vector<8x1xf32> -> vector<8x1xf32>
    %481 = vector.broadcast %480 : vector<8x1xf32> to vector<8x8xf32>
    %482 = arith.mulf %477, %481 : vector<8x8xf32>
    %483 = arith.truncf %482 : vector<8x8xf32> to vector<8x8xbf16>
    %cst_155 = arith.constant dense<0.000000e+00> : vector<8x32xf32>
    %484 = tpu.matmul %483, %469, %cst_155 {dimension_numbers = #tpu.dot_dimension_numbers<[1], [0], [0], [1], [0, 0, 1, 1], [], []>} : vector<8x8xbf16>, vector<8x32xbf16>, vector<8x32xf32> -> vector<8x32xf32>
    %485 = arith.truncf %484 : vector<8x32xf32> to vector<8x32xbf16>
    %486 = vector.extract_strided_slice %349 {offsets = [0, 0], sizes = [32, 128], strides = [1, 1]} : vector<128x128xbf16> to vector<32x128xbf16>
    %cst_156 = arith.constant dense<0.000000e+00> : vector<8x128xf32>
    %487 = tpu.matmul %485, %486, %cst_156 {dimension_numbers = #tpu.dot_dimension_numbers<[1], [0], [0], [1], [0, 0, 1, 1], [], []>} : vector<8x32xbf16>, vector<32x128xbf16>, vector<8x128xf32> -> vector<8x128xf32>
    %488 = arith.addf %463, %487 : vector<8x128xf32>
    %489 = vector.extract_strided_slice %359 {offsets = [8, 32], sizes = [8, 32], strides = [1, 1]} : vector<16x384xf32> to vector<8x32xf32>
    %490 = arith.truncf %489 : vector<8x32xf32> to vector<8x32xbf16>
    %491 = vector.extract_strided_slice %359 {offsets = [8, 160], sizes = [8, 32], strides = [1, 1]} : vector<16x384xf32> to vector<8x32xf32>
    %492 = arith.truncf %491 : vector<8x32xf32> to vector<8x32xbf16>
    %493 = vector.extract_strided_slice %359 {offsets = [8, 288], sizes = [8, 32], strides = [1, 1]} : vector<16x384xf32> to vector<8x32xf32>
    %494 = arith.truncf %493 : vector<8x32xf32> to vector<8x32xbf16>
    %cst_157 = arith.constant dense<0.000000e+00> : vector<8x8xf32>
    %495 = tpu.matmul %490, %492, %cst_157 {dimension_numbers = #tpu.dot_dimension_numbers<[1], [1], [0], [0], [0, 0, 1, 0], [], []>} : vector<8x32xbf16>, vector<8x32xbf16>, vector<8x8xf32> -> vector<8x8xf32>
    %496 = vector.broadcast %462 : vector<1x8xf32> to vector<8x8xf32>
    %497 = arith.addf %495, %496 : vector<8x8xf32>
    %cst_158 = arith.constant dense<0xFF800000> : vector<8xf32>
    %498 = vector.multi_reduction <maximumf>, %497, %cst_158 [1] : vector<8x8xf32> to vector<8xf32>
    %499 = vector.shape_cast %498 : vector<8xf32> to vector<8x1xf32>
    %500 = vector.broadcast %499 : vector<8x1xf32> to vector<8x8xf32>
    %501 = arith.subf %497, %500 : vector<8x8xf32>
    %502 = math.exp %501 : vector<8x8xf32>
    %cst_159 = arith.constant dense<0.000000e+00> : vector<8xf32>
    %503 = vector.multi_reduction <add>, %502, %cst_159 [1] : vector<8x8xf32> to vector<8xf32>
    %504 = vector.shape_cast %503 : vector<8xf32> to vector<8x1xf32>
    %505 = tpu.reciprocal %504 {approx = true} : vector<8x1xf32> -> vector<8x1xf32>
    %506 = vector.broadcast %505 : vector<8x1xf32> to vector<8x8xf32>
    %507 = arith.mulf %502, %506 : vector<8x8xf32>
    %508 = arith.truncf %507 : vector<8x8xf32> to vector<8x8xbf16>
    %cst_160 = arith.constant dense<0.000000e+00> : vector<8x32xf32>
    %509 = tpu.matmul %508, %494, %cst_160 {dimension_numbers = #tpu.dot_dimension_numbers<[1], [0], [0], [1], [0, 0, 1, 1], [], []>} : vector<8x8xbf16>, vector<8x32xbf16>, vector<8x32xf32> -> vector<8x32xf32>
    %510 = arith.truncf %509 : vector<8x32xf32> to vector<8x32xbf16>
    %511 = vector.extract_strided_slice %349 {offsets = [32, 0], sizes = [32, 128], strides = [1, 1]} : vector<128x128xbf16> to vector<32x128xbf16>
    %cst_161 = arith.constant dense<0.000000e+00> : vector<8x128xf32>
    %512 = tpu.matmul %510, %511, %cst_161 {dimension_numbers = #tpu.dot_dimension_numbers<[1], [0], [0], [1], [0, 0, 1, 1], [], []>} : vector<8x32xbf16>, vector<32x128xbf16>, vector<8x128xf32> -> vector<8x128xf32>
    %513 = arith.addf %488, %512 : vector<8x128xf32>
    %514 = vector.extract_strided_slice %359 {offsets = [8, 64], sizes = [8, 32], strides = [1, 1]} : vector<16x384xf32> to vector<8x32xf32>
    %515 = arith.truncf %514 : vector<8x32xf32> to vector<8x32xbf16>
    %516 = vector.extract_strided_slice %359 {offsets = [8, 192], sizes = [8, 32], strides = [1, 1]} : vector<16x384xf32> to vector<8x32xf32>
    %517 = arith.truncf %516 : vector<8x32xf32> to vector<8x32xbf16>
    %518 = vector.extract_strided_slice %359 {offsets = [8, 320], sizes = [8, 32], strides = [1, 1]} : vector<16x384xf32> to vector<8x32xf32>
    %519 = arith.truncf %518 : vector<8x32xf32> to vector<8x32xbf16>
    %cst_162 = arith.constant dense<0.000000e+00> : vector<8x8xf32>
    %520 = tpu.matmul %515, %517, %cst_162 {dimension_numbers = #tpu.dot_dimension_numbers<[1], [1], [0], [0], [0, 0, 1, 0], [], []>} : vector<8x32xbf16>, vector<8x32xbf16>, vector<8x8xf32> -> vector<8x8xf32>
    %521 = vector.broadcast %462 : vector<1x8xf32> to vector<8x8xf32>
    %522 = arith.addf %520, %521 : vector<8x8xf32>
    %cst_163 = arith.constant dense<0xFF800000> : vector<8xf32>
    %523 = vector.multi_reduction <maximumf>, %522, %cst_163 [1] : vector<8x8xf32> to vector<8xf32>
    %524 = vector.shape_cast %523 : vector<8xf32> to vector<8x1xf32>
    %525 = vector.broadcast %524 : vector<8x1xf32> to vector<8x8xf32>
    %526 = arith.subf %522, %525 : vector<8x8xf32>
    %527 = math.exp %526 : vector<8x8xf32>
    %cst_164 = arith.constant dense<0.000000e+00> : vector<8xf32>
    %528 = vector.multi_reduction <add>, %527, %cst_164 [1] : vector<8x8xf32> to vector<8xf32>
    %529 = vector.shape_cast %528 : vector<8xf32> to vector<8x1xf32>
    %530 = tpu.reciprocal %529 {approx = true} : vector<8x1xf32> -> vector<8x1xf32>
    %531 = vector.broadcast %530 : vector<8x1xf32> to vector<8x8xf32>
    %532 = arith.mulf %527, %531 : vector<8x8xf32>
    %533 = arith.truncf %532 : vector<8x8xf32> to vector<8x8xbf16>
    %cst_165 = arith.constant dense<0.000000e+00> : vector<8x32xf32>
    %534 = tpu.matmul %533, %519, %cst_165 {dimension_numbers = #tpu.dot_dimension_numbers<[1], [0], [0], [1], [0, 0, 1, 1], [], []>} : vector<8x8xbf16>, vector<8x32xbf16>, vector<8x32xf32> -> vector<8x32xf32>
    %535 = arith.truncf %534 : vector<8x32xf32> to vector<8x32xbf16>
    %536 = vector.extract_strided_slice %349 {offsets = [64, 0], sizes = [32, 128], strides = [1, 1]} : vector<128x128xbf16> to vector<32x128xbf16>
    %cst_166 = arith.constant dense<0.000000e+00> : vector<8x128xf32>
    %537 = tpu.matmul %535, %536, %cst_166 {dimension_numbers = #tpu.dot_dimension_numbers<[1], [0], [0], [1], [0, 0, 1, 1], [], []>} : vector<8x32xbf16>, vector<32x128xbf16>, vector<8x128xf32> -> vector<8x128xf32>
    %538 = arith.addf %513, %537 : vector<8x128xf32>
    %539 = vector.extract_strided_slice %359 {offsets = [8, 96], sizes = [8, 32], strides = [1, 1]} : vector<16x384xf32> to vector<8x32xf32>
    %540 = arith.truncf %539 : vector<8x32xf32> to vector<8x32xbf16>
    %541 = vector.extract_strided_slice %359 {offsets = [8, 224], sizes = [8, 32], strides = [1, 1]} : vector<16x384xf32> to vector<8x32xf32>
    %542 = arith.truncf %541 : vector<8x32xf32> to vector<8x32xbf16>
    %543 = vector.extract_strided_slice %359 {offsets = [8, 352], sizes = [8, 32], strides = [1, 1]} : vector<16x384xf32> to vector<8x32xf32>
    %544 = arith.truncf %543 : vector<8x32xf32> to vector<8x32xbf16>
    %cst_167 = arith.constant dense<0.000000e+00> : vector<8x8xf32>
    %545 = tpu.matmul %540, %542, %cst_167 {dimension_numbers = #tpu.dot_dimension_numbers<[1], [1], [0], [0], [0, 0, 1, 0], [], []>} : vector<8x32xbf16>, vector<8x32xbf16>, vector<8x8xf32> -> vector<8x8xf32>
    %546 = vector.broadcast %462 : vector<1x8xf32> to vector<8x8xf32>
    %547 = arith.addf %545, %546 : vector<8x8xf32>
    %cst_168 = arith.constant dense<0xFF800000> : vector<8xf32>
    %548 = vector.multi_reduction <maximumf>, %547, %cst_168 [1] : vector<8x8xf32> to vector<8xf32>
    %549 = vector.shape_cast %548 : vector<8xf32> to vector<8x1xf32>
    %550 = vector.broadcast %549 : vector<8x1xf32> to vector<8x8xf32>
    %551 = arith.subf %547, %550 : vector<8x8xf32>
    %552 = math.exp %551 : vector<8x8xf32>
    %cst_169 = arith.constant dense<0.000000e+00> : vector<8xf32>
    %553 = vector.multi_reduction <add>, %552, %cst_169 [1] : vector<8x8xf32> to vector<8xf32>
    %554 = vector.shape_cast %553 : vector<8xf32> to vector<8x1xf32>
    %555 = tpu.reciprocal %554 {approx = true} : vector<8x1xf32> -> vector<8x1xf32>
    %556 = vector.broadcast %555 : vector<8x1xf32> to vector<8x8xf32>
    %557 = arith.mulf %552, %556 : vector<8x8xf32>
    %558 = arith.truncf %557 : vector<8x8xf32> to vector<8x8xbf16>
    %cst_170 = arith.constant dense<0.000000e+00> : vector<8x32xf32>
    %559 = tpu.matmul %558, %544, %cst_170 {dimension_numbers = #tpu.dot_dimension_numbers<[1], [0], [0], [1], [0, 0, 1, 1], [], []>} : vector<8x8xbf16>, vector<8x32xbf16>, vector<8x32xf32> -> vector<8x32xf32>
    %560 = arith.truncf %559 : vector<8x32xf32> to vector<8x32xbf16>
    %561 = vector.extract_strided_slice %349 {offsets = [96, 0], sizes = [32, 128], strides = [1, 1]} : vector<128x128xbf16> to vector<32x128xbf16>
    %cst_171 = arith.constant dense<0.000000e+00> : vector<8x128xf32>
    %562 = tpu.matmul %560, %561, %cst_171 {dimension_numbers = #tpu.dot_dimension_numbers<[1], [0], [0], [1], [0, 0, 1, 1], [], []>} : vector<8x32xbf16>, vector<32x128xbf16>, vector<8x128xf32> -> vector<8x128xf32>
    %563 = arith.addf %538, %562 : vector<8x128xf32>
    %564 = tpu.concatenate %461, %563 in 0 : vector<8x128xf32>, vector<8x128xf32> -> vector<16x128xf32>
    %c1_172 = arith.constant 1 : index
    %c0_173 = arith.constant 0 : index
    %c0_174 = arith.constant 0 : index
    %565 = vector.load %arg11[%c1_172, %c0_173, %c0_174] : memref<2x1x128xf32, #tpu.memory_space<vmem>>, vector<1x1x128xf32>
    %566 = vector.shape_cast %565 : vector<1x1x128xf32> to vector<1x128xf32>
    %567 = vector.broadcast %566 : vector<1x128xf32> to vector<16x128xf32>
    %568 = arith.addf %564, %567 : vector<16x128xf32>
    %569 = arith.addf %345, %568 : vector<16x128xf32>
    %c1_175 = arith.constant 1 : index
    %c0_176 = arith.constant 0 : index
    %c0_177 = arith.constant 0 : index
    %570 = vector.load %arg12[%c1_175, %c0_176, %c0_177] : memref<2x1x128xf32, #tpu.memory_space<vmem>>, vector<1x1x128xf32>
    %571 = vector.shape_cast %570 : vector<1x1x128xf32> to vector<1x128xf32>
    %c1_178 = arith.constant 1 : index
    %c0_179 = arith.constant 0 : index
    %c0_180 = arith.constant 0 : index
    %572 = vector.load %arg13[%c1_178, %c0_179, %c0_180] : memref<2x1x128xf32, #tpu.memory_space<vmem>>, vector<1x1x128xf32>
    %573 = vector.shape_cast %572 : vector<1x1x128xf32> to vector<1x128xf32>
    %cst_181 = arith.constant dense<0.000000e+00> : vector<16xf32>
    %574 = vector.multi_reduction <add>, %569, %cst_181 [1] : vector<16x128xf32> to vector<16xf32>
    %575 = vector.shape_cast %574 : vector<16xf32> to vector<16x1xf32>
    %cst_182 = arith.constant 1.280000e+02 : f32
    %576 = vector.broadcast %cst_182 : f32 to vector<16x1xf32>
    %577 = arith.divf %575, %576 : vector<16x1xf32>
    %578 = vector.broadcast %577 : vector<16x1xf32> to vector<16x128xf32>
    %579 = arith.subf %569, %578 : vector<16x128xf32>
    %580 = arith.mulf %579, %579 : vector<16x128xf32>
    %cst_183 = arith.constant dense<0.000000e+00> : vector<16xf32>
    %581 = vector.multi_reduction <add>, %580, %cst_183 [1] : vector<16x128xf32> to vector<16xf32>
    %582 = vector.shape_cast %581 : vector<16xf32> to vector<16x1xf32>
    %cst_184 = arith.constant 1.280000e+02 : f32
    %583 = vector.broadcast %cst_184 : f32 to vector<16x1xf32>
    %584 = arith.divf %582, %583 : vector<16x1xf32>
    %585 = vector.broadcast %577 : vector<16x1xf32> to vector<16x128xf32>
    %586 = arith.subf %569, %585 : vector<16x128xf32>
    %cst_185 = arith.constant 9.99999974E-6 : f32
    %587 = vector.broadcast %cst_185 : f32 to vector<16x1xf32>
    %588 = arith.addf %584, %587 : vector<16x1xf32>
    %589 = math.rsqrt %588 : vector<16x1xf32>
    %590 = vector.broadcast %589 : vector<16x1xf32> to vector<16x128xf32>
    %591 = arith.mulf %586, %590 : vector<16x128xf32>
    %592 = vector.broadcast %571 : vector<1x128xf32> to vector<16x128xf32>
    %593 = arith.mulf %591, %592 : vector<16x128xf32>
    %594 = vector.broadcast %573 : vector<1x128xf32> to vector<16x128xf32>
    %595 = arith.addf %593, %594 : vector<16x128xf32>
    %596 = arith.truncf %595 : vector<16x128xf32> to vector<16x128xbf16>
    %cst_186 = arith.constant dense<0.000000e+00> : vector<16x256xf32>
    %597 = tpu.matmul %596, %351, %cst_186 {dimension_numbers = #tpu.dot_dimension_numbers<[1], [0], [0], [1], [0, 0, 1, 1], [], []>} : vector<16x128xbf16>, vector<128x256xbf16>, vector<16x256xf32> -> vector<16x256xf32>
    %c1_187 = arith.constant 1 : index
    %c0_188 = arith.constant 0 : index
    %c0_189 = arith.constant 0 : index
    %598 = vector.load %arg15[%c1_187, %c0_188, %c0_189] : memref<2x1x256xf32, #tpu.memory_space<vmem>>, vector<1x1x256xf32>
    %599 = vector.shape_cast %598 : vector<1x1x256xf32> to vector<1x256xf32>
    %600 = vector.broadcast %599 : vector<1x256xf32> to vector<16x256xf32>
    %601 = arith.addf %597, %600 : vector<16x256xf32>
    %cst_190 = arith.constant 5.000000e-01 : f32
    %602 = vector.broadcast %cst_190 : f32 to vector<16x256xf32>
    %603 = arith.mulf %602, %601 : vector<16x256xf32>
    %cst_191 = arith.constant 4.471500e-02 : f32
    %604 = vector.broadcast %cst_191 : f32 to vector<16x256xf32>
    %605 = arith.mulf %604, %601 : vector<16x256xf32>
    %606 = arith.mulf %605, %601 : vector<16x256xf32>
    %607 = arith.mulf %606, %601 : vector<16x256xf32>
    %608 = arith.addf %601, %607 : vector<16x256xf32>
    %cst_192 = arith.constant 0.797884583 : f32
    %609 = vector.broadcast %cst_192 : f32 to vector<16x256xf32>
    %610 = arith.mulf %609, %608 : vector<16x256xf32>
    %611 = math.tanh %610 : vector<16x256xf32>
    %cst_193 = arith.constant 1.000000e+00 : f32
    %612 = vector.broadcast %cst_193 : f32 to vector<16x256xf32>
    %613 = arith.addf %612, %611 : vector<16x256xf32>
    %614 = arith.mulf %603, %613 : vector<16x256xf32>
    %615 = arith.truncf %614 : vector<16x256xf32> to vector<16x256xbf16>
    %cst_194 = arith.constant dense<0.000000e+00> : vector<16x128xf32>
    %616 = tpu.matmul %615, %353, %cst_194 {dimension_numbers = #tpu.dot_dimension_numbers<[1], [0], [0], [1], [0, 0, 1, 1], [], []>} : vector<16x256xbf16>, vector<256x128xbf16>, vector<16x128xf32> -> vector<16x128xf32>
    %c1_195 = arith.constant 1 : index
    %c0_196 = arith.constant 0 : index
    %c0_197 = arith.constant 0 : index
    %617 = vector.load %arg17[%c1_195, %c0_196, %c0_197] : memref<2x1x128xf32, #tpu.memory_space<vmem>>, vector<1x1x128xf32>
    %618 = vector.shape_cast %617 : vector<1x1x128xf32> to vector<1x128xf32>
    %619 = vector.broadcast %618 : vector<1x128xf32> to vector<16x128xf32>
    %620 = arith.addf %616, %619 : vector<16x128xf32>
    %621 = arith.addf %595, %620 : vector<16x128xf32>
    %c1_198 = arith.constant 1 : index
    %c0_199 = arith.constant 0 : index
    %c0_200 = arith.constant 0 : index
    %622 = vector.load %arg18[%c1_198, %c0_199, %c0_200] : memref<2x1x128xf32, #tpu.memory_space<vmem>>, vector<1x1x128xf32>
    %623 = vector.shape_cast %622 : vector<1x1x128xf32> to vector<1x128xf32>
    %c1_201 = arith.constant 1 : index
    %c0_202 = arith.constant 0 : index
    %c0_203 = arith.constant 0 : index
    %624 = vector.load %arg19[%c1_201, %c0_202, %c0_203] : memref<2x1x128xf32, #tpu.memory_space<vmem>>, vector<1x1x128xf32>
    %625 = vector.shape_cast %624 : vector<1x1x128xf32> to vector<1x128xf32>
    %cst_204 = arith.constant dense<0.000000e+00> : vector<16xf32>
    %626 = vector.multi_reduction <add>, %621, %cst_204 [1] : vector<16x128xf32> to vector<16xf32>
    %627 = vector.shape_cast %626 : vector<16xf32> to vector<16x1xf32>
    %cst_205 = arith.constant 1.280000e+02 : f32
    %628 = vector.broadcast %cst_205 : f32 to vector<16x1xf32>
    %629 = arith.divf %627, %628 : vector<16x1xf32>
    %630 = vector.broadcast %629 : vector<16x1xf32> to vector<16x128xf32>
    %631 = arith.subf %621, %630 : vector<16x128xf32>
    %632 = arith.mulf %631, %631 : vector<16x128xf32>
    %cst_206 = arith.constant dense<0.000000e+00> : vector<16xf32>
    %633 = vector.multi_reduction <add>, %632, %cst_206 [1] : vector<16x128xf32> to vector<16xf32>
    %634 = vector.shape_cast %633 : vector<16xf32> to vector<16x1xf32>
    %cst_207 = arith.constant 1.280000e+02 : f32
    %635 = vector.broadcast %cst_207 : f32 to vector<16x1xf32>
    %636 = arith.divf %634, %635 : vector<16x1xf32>
    %637 = vector.broadcast %629 : vector<16x1xf32> to vector<16x128xf32>
    %638 = arith.subf %621, %637 : vector<16x128xf32>
    %cst_208 = arith.constant 9.99999974E-6 : f32
    %639 = vector.broadcast %cst_208 : f32 to vector<16x1xf32>
    %640 = arith.addf %636, %639 : vector<16x1xf32>
    %641 = math.rsqrt %640 : vector<16x1xf32>
    %642 = vector.broadcast %641 : vector<16x1xf32> to vector<16x128xf32>
    %643 = arith.mulf %638, %642 : vector<16x128xf32>
    %644 = vector.broadcast %623 : vector<1x128xf32> to vector<16x128xf32>
    %645 = arith.mulf %643, %644 : vector<16x128xf32>
    %646 = vector.broadcast %625 : vector<1x128xf32> to vector<16x128xf32>
    %647 = arith.addf %645, %646 : vector<16x128xf32>
    %648 = vector.extract_strided_slice %647 {offsets = [0, 0], sizes = [1, 128], strides = [1, 1]} : vector<16x128xf32> to vector<1x128xf32>
    %649 = vector.extract_strided_slice %647 {offsets = [8, 0], sizes = [1, 128], strides = [1, 1]} : vector<16x128xf32> to vector<1x128xf32>
    %650 = tpu.concatenate %648, %649 in 0 : vector<1x128xf32>, vector<1x128xf32> -> vector<2x128xf32>
    %651 = arith.truncf %650 : vector<2x128xf32> to vector<2x128xbf16>
    %c0_209 = arith.constant 0 : index
    %c0_210 = arith.constant 0 : index
    %652 = vector.load %arg20[%c0_209, %c0_210] : memref<128x128xbf16, #tpu.memory_space<vmem>>, vector<128x128xbf16>
    %cst_211 = arith.constant dense<0.000000e+00> : vector<2x128xf32>
    %653 = tpu.matmul %651, %652, %cst_211 {dimension_numbers = #tpu.dot_dimension_numbers<[1], [0], [0], [1], [0, 0, 1, 1], [], []>} : vector<2x128xbf16>, vector<128x128xbf16>, vector<2x128xf32> -> vector<2x128xf32>
    %c0_212 = arith.constant 0 : index
    %c0_213 = arith.constant 0 : index
    %654 = vector.load %arg21[%c0_212, %c0_213] : memref<1x128xf32, #tpu.memory_space<vmem>>, vector<1x128xf32>
    %655 = vector.broadcast %654 : vector<1x128xf32> to vector<2x128xf32>
    %656 = arith.addf %653, %655 : vector<2x128xf32>
    %657 = math.tanh %656 : vector<2x128xf32>
    %658 = arith.truncf %657 : vector<2x128xf32> to vector<2x128xbf16>
    %c0_214 = arith.constant 0 : index
    %c0_215 = arith.constant 0 : index
    %659 = vector.load %arg22[%c0_214, %c0_215] : memref<128x2xbf16, #tpu.memory_space<vmem>>, vector<128x2xbf16>
    %cst_216 = arith.constant dense<0.000000e+00> : vector<2x2xf32>
    %660 = tpu.matmul %658, %659, %cst_216 {dimension_numbers = #tpu.dot_dimension_numbers<[1], [0], [0], [1], [0, 0, 1, 1], [], []>} : vector<2x128xbf16>, vector<128x2xbf16>, vector<2x2xf32> -> vector<2x2xf32>
    %c0_217 = arith.constant 0 : index
    %c0_218 = arith.constant 0 : index
    %661 = vector.load %arg23[%c0_217, %c0_218] : memref<1x2xf32, #tpu.memory_space<vmem>>, vector<1x2xf32>
    %662 = vector.broadcast %661 : vector<1x2xf32> to vector<2x2xf32>
    %663 = arith.addf %660, %662 : vector<2x2xf32>
    %c0_219 = arith.constant 0 : index
    %c0_220 = arith.constant 0 : index
    %664 = vector.load %arg24[%c0_219, %c0_220] : memref<2x2xf32, #tpu.memory_space<vmem>>, vector<2x2xf32>
    tpu.vector_store %arg24[%c0_219, %c0_220], %663 {strides = array<i32>} : memref<2x2xf32, #tpu.memory_space<vmem>>, vector<2x2xf32>,
    %cst_221 = arith.constant 0.000000e+00 : f32
    %665 = vector.broadcast %cst_221 : f32 to vector<1x1xf32>
    %666 = tpu.iota {dimensions = array<i32: 1>} : vector<1x2xi32>
    %667 = vector.extract_strided_slice %663 {offsets = [0, 0], sizes = [1, 2], strides = [1, 1]} : vector<2x2xf32> to vector<1x2xf32>
    %cst_222 = arith.constant dense<0xFF800000> : vector<1xf32>
    %668 = vector.multi_reduction <maximumf>, %667, %cst_222 [1] : vector<1x2xf32> to vector<1xf32>
    %669 = vector.shape_cast %668 : vector<1xf32> to vector<1x1xf32>
    %670 = vector.broadcast %669 : vector<1x1xf32> to vector<1x2xf32>
    %671 = arith.subf %667, %670 : vector<1x2xf32>
    %672 = math.exp %671 : vector<1x2xf32>
    %cst_223 = arith.constant dense<0.000000e+00> : vector<1xf32>
    %673 = vector.multi_reduction <add>, %672, %cst_223 [1] : vector<1x2xf32> to vector<1xf32>
    %674 = vector.shape_cast %673 : vector<1xf32> to vector<1x1xf32>
    %675 = math.log %674 : vector<1x1xf32>
    %676 = arith.addf %669, %675 : vector<1x1xf32>
    %c0_224 = arith.constant 0 : index
    %677 = memref.load %arg2[%c0_224] : memref<2xi32, #tpu.memory_space<smem>>
    %678 = vector.broadcast %677 : i32 to vector<1x2xi32>
    %679 = arith.cmpi eq, %666, %678 : vector<1x2xi32>
    %680 = arith.extui %679 : vector<1x2xi1> to vector<1x2xi32>
    %681 = arith.sitofp %680 : vector<1x2xi32> to vector<1x2xf32>
    %682 = arith.mulf %667, %681 : vector<1x2xf32>
    %cst_225 = arith.constant dense<0.000000e+00> : vector<1xf32>
    %683 = vector.multi_reduction <add>, %682, %cst_225 [1] : vector<1x2xf32> to vector<1xf32>
    %684 = vector.shape_cast %683 : vector<1xf32> to vector<1x1xf32>
    %685 = arith.subf %676, %684 : vector<1x1xf32>
    %686 = arith.addf %665, %685 : vector<1x1xf32>
    %687 = vector.extract_strided_slice %663 {offsets = [1, 0], sizes = [1, 2], strides = [1, 1]} : vector<2x2xf32> to vector<1x2xf32>
    %cst_226 = arith.constant dense<0xFF800000> : vector<1xf32>
    %688 = vector.multi_reduction <maximumf>, %687, %cst_226 [1] : vector<1x2xf32> to vector<1xf32>
    %689 = vector.shape_cast %688 : vector<1xf32> to vector<1x1xf32>
    %690 = vector.broadcast %689 : vector<1x1xf32> to vector<1x2xf32>
    %691 = arith.subf %687, %690 : vector<1x2xf32>
    %692 = math.exp %691 : vector<1x2xf32>
    %cst_227 = arith.constant dense<0.000000e+00> : vector<1xf32>
    %693 = vector.multi_reduction <add>, %692, %cst_227 [1] : vector<1x2xf32> to vector<1xf32>
    %694 = vector.shape_cast %693 : vector<1xf32> to vector<1x1xf32>
    %695 = math.log %694 : vector<1x1xf32>
    %696 = arith.addf %689, %695 : vector<1x1xf32>
    %c1_228 = arith.constant 1 : index
    %697 = memref.load %arg2[%c1_228] : memref<2xi32, #tpu.memory_space<smem>>
    %698 = vector.broadcast %697 : i32 to vector<1x2xi32>
    %699 = arith.cmpi eq, %666, %698 : vector<1x2xi32>
    %700 = arith.extui %699 : vector<1x2xi1> to vector<1x2xi32>
    %701 = arith.sitofp %700 : vector<1x2xi32> to vector<1x2xf32>
    %702 = arith.mulf %687, %701 : vector<1x2xf32>
    %cst_229 = arith.constant dense<0.000000e+00> : vector<1xf32>
    %703 = vector.multi_reduction <add>, %702, %cst_229 [1] : vector<1x2xf32> to vector<1xf32>
    %704 = vector.shape_cast %703 : vector<1xf32> to vector<1x1xf32>
    %705 = arith.subf %696, %704 : vector<1x1xf32>
    %706 = arith.addf %686, %705 : vector<1x1xf32>
    %cst_230 = arith.constant 5.000000e-01 : f32
    %707 = vector.broadcast %cst_230 : f32 to vector<1x1xf32>
    %708 = arith.mulf %706, %707 : vector<1x1xf32>
    %c0_231 = arith.constant 0 : index
    %c0_232 = arith.constant 0 : index
    %709 = vector.load %arg25[%c0_231, %c0_232] : memref<1x1xf32, #tpu.memory_space<vmem>>, vector<1x1xf32>
    tpu.vector_store %arg25[%c0_231, %c0_232], %708 {strides = array<i32>} : memref<1x1xf32, #tpu.memory_space<vmem>>, vector<1x1xf32>,
    return
  }
}

</mosaic_0001>

<llo_original>
// kernel: idiomaticity_classifier_forward.1
$region0: #{idiomaticity_classifier_forward.1}
  #allocation0 [shape = 'u32[]', space=smem, size = 0x4, offset = 0x4, fixed_abs, tag = 'smem constant byte address 0x4 - core index']
  #allocation1 [shape = 'u32[144,128]{1,0:T(1,128)}', space=vmem, size = 0x12000, scoped, tag = 'internal scratch']
  %s0 = inlined_call_operand.vmem [shape: s32[16,1], index: 0, kind: input, shape index: {}]
  %s1 = inlined_call_operand.vmem [shape: f32[2,8], index: 1, kind: input, shape index: {}]
  %s2 = inlined_call_operand.vmem [shape: s32[2], index: 2, kind: input, shape index: {}]
  %s3 = inlined_call_operand.vmem [shape: bf16[128,128], index: 3, kind: input, shape index: {}]
  %s4 = inlined_call_operand.vmem [shape: f32[8,128], index: 4, kind: input, shape index: {}]
  %s5 = inlined_call_operand.vmem [shape: f32[1,128], index: 5, kind: input, shape index: {}]
  %s6 = inlined_call_operand.vmem [shape: f32[1,128], index: 6, kind: input, shape index: {}]
  %s7 = inlined_call_operand.vmem [shape: f32[1,128], index: 7, kind: input, shape index: {}, may-alias: {7,21}]
  %s8 = inlined_call_operand.vmem [shape: bf16[2,128,384], index: 8, kind: input, shape index: {}]
  %s9 = inlined_call_operand.vmem [shape: f32[2,1,384], index: 9, kind: input, shape index: {}]
  %s10 = inlined_call_operand.vmem [shape: bf16[2,128,128], index: 10, kind: input, shape index: {}]
  %s11 = inlined_call_operand.vmem [shape: f32[2,1,128], index: 11, kind: input, shape index: {}, may-alias: {11,13,17,19}]
  %s12 = inlined_call_operand.vmem [shape: f32[2,1,128], index: 12, kind: input, shape index: {}, may-alias: {12,18}]
  %s13 = inlined_call_operand.vmem [shape: f32[2,1,128], index: 13, kind: input, shape index: {}, may-alias: {11,13,17,19}]
  %s14 = inlined_call_operand.vmem [shape: bf16[2,128,256], index: 14, kind: input, shape index: {}]
  %s15 = inlined_call_operand.vmem [shape: f32[2,1,256], index: 15, kind: input, shape index: {}]
  %s16 = inlined_call_operand.vmem [shape: bf16[2,256,128], index: 16, kind: input, shape index: {}]
  %s17 = inlined_call_operand.vmem [shape: f32[2,1,128], index: 17, kind: input, shape index: {}, may-alias: {11,13,17,19}]
  %s18 = inlined_call_operand.vmem [shape: f32[2,1,128], index: 18, kind: input, shape index: {}, may-alias: {12,18}]
  %s19 = inlined_call_operand.vmem [shape: f32[2,1,128], index: 19, kind: input, shape index: {}, may-alias: {11,13,17,19}]
  %s20 = inlined_call_operand.vmem [shape: bf16[128,128], index: 20, kind: input, shape index: {}]
  %s21 = inlined_call_operand.vmem [shape: f32[1,128], index: 21, kind: input, shape index: {}, may-alias: {7,21}]
  %s22 = inlined_call_operand.vmem [shape: bf16[128,2], index: 22, kind: input, shape index: {}]
  %s23 = inlined_call_operand.vmem [shape: f32[1,2], index: 23, kind: input, shape index: {}]
  %s24 = inlined_call_operand.hbm [shape: f32[2,2], index: 24, kind: output, shape index: {0}]
  %s25 = inlined_call_operand.hbm [shape: f32[1,1], index: 25, kind: output, shape index: {1}]
  %26 = xla_tuple %s24, %s25
  %s27 = sld [smem:[#allocation0]]
  $region118: #{idiomaticity_classifier_forward.1} parent=0
    _
  %s29 = ssub.s32 1, %s27
  %s30 = scalar_select 0, %s29, %s27
  $region1: #{idiomaticity_classifier_forward.1} parent=0
    #allocation2 [shape = 'u8[512]{0}', space=smem, size = 0x200, scoped, tag = 'input window, operand 2, single buffered']
    #allocation3 [shape = 's32[1]{0}', space=sflag, size = 0x4, scoped, tag = 'scoped memory for idiomaticity_classifier_forward.1']
    #allocation4 [shape = 's32[1]{0}', space=sflag, size = 0x4, scoped, tag = 'scoped memory for idiomaticity_classifier_forward.1']
    #allocation5 [shape = 'u8[1024]{0}', space=vmem, size = 0x400, scoped, tag = 'output window, operand 0, single buffered']
    #allocation6 [shape = 'u8[512]{0}', space=vmem, size = 0x400, scoped, tag = 'output window, operand 1, single buffered']
    #allocation7 [shape = 's32[1]{0}', space=sflag, size = 0x4, scoped, tag = 'scoped memory for idiomaticity_classifier_forward.1']
    %31 = vsyncpa [#allocation4], 0
    %32 = vsyncpa [#allocation3], 0
    %33 = vsyncpa [#allocation7], 0
    // Predicated region
    $region2: #{idiomaticity_classifier_forward.1} parent=1 // pred_check
      _
    $region3: #{idiomaticity_classifier_forward.1} parent=1 // pred_check_branch
      %35 = sbr.rel (0) target = $region5
    $region4: #{idiomaticity_classifier_forward.1} parent=1 // pred_region
      _
    $region5: #{idiomaticity_classifier_forward.1} parent=1 // pred_fallthru
      _
    // Predicated region
    $region6: #{idiomaticity_classifier_forward.1} parent=1 // pred_check
      _
    $region7: #{idiomaticity_classifier_forward.1} parent=1 // pred_check_branch
      %37 = sbr.rel (0) target = $region9
    $region8: #{idiomaticity_classifier_forward.1} parent=1 // pred_region
      _
    $region9: #{idiomaticity_classifier_forward.1} parent=1 // pred_fallthru
      _
    // Predicated region
    $region10: #{idiomaticity_classifier_forward.1} parent=1 // pred_check
      _
    $region11: #{idiomaticity_classifier_forward.1} parent=1 // pred_check_branch
      %39 = sbr.rel (0) target = $region13
    $region12: #{idiomaticity_classifier_forward.1} parent=1 // pred_region
      %s41 = ssub.s32 16, 16
      %42 = vsyncadd [#allocation4], %s41
      %s44 = sshll.u32 %s2, 4
      %s45 = int_to_ptr.vmem [resolvable:$true] %s44
      %47 = dma.vmem_to_smem %s45, 16, [#allocation2], [#allocation4]
    $region13: #{idiomaticity_classifier_forward.1} parent=1 // pred_fallthru
      _
    // Predicated region
    $region14: #{idiomaticity_classifier_forward.1} parent=1 // pred_check
      _
    $region15: #{idiomaticity_classifier_forward.1} parent=1 // pred_check_branch
      %49 = sbr.rel (0) target = $region17
    $region16: #{idiomaticity_classifier_forward.1} parent=1 // pred_region
      _
    $region17: #{idiomaticity_classifier_forward.1} parent=1 // pred_fallthru
      _
    // Predicated region
    $region18: #{idiomaticity_classifier_forward.1} parent=1 // pred_check
      _
    $region19: #{idiomaticity_classifier_forward.1} parent=1 // pred_check_branch
      %51 = sbr.rel (0) target = $region21
    $region20: #{idiomaticity_classifier_forward.1} parent=1 // pred_region
      _
    $region21: #{idiomaticity_classifier_forward.1} parent=1 // pred_fallthru
      _
    // Predicated region
    $region22: #{idiomaticity_classifier_forward.1} parent=1 // pred_check
      _
    $region23: #{idiomaticity_classifier_forward.1} parent=1 // pred_check_branch
      %53 = sbr.rel (0) target = $region25
    $region24: #{idiomaticity_classifier_forward.1} parent=1 // pred_region
      _
    $region25: #{idiomaticity_classifier_forward.1} parent=1 // pred_fallthru
      _
    // Predicated region
    $region26: #{idiomaticity_classifier_forward.1} parent=1 // pred_check
      _
    $region27: #{idiomaticity_classifier_forward.1} parent=1 // pred_check_branch
      %55 = sbr.rel (0) target = $region29
    $region28: #{idiomaticity_classifier_forward.1} parent=1 // pred_region
      _
    $region29: #{idiomaticity_classifier_forward.1} parent=1 // pred_fallthru
      _
    // Predicated region
    $region30: #{idiomaticity_classifier_forward.1} parent=1 // pred_check
      _
    $region31: #{idiomaticity_classifier_forward.1} parent=1 // pred_check_branch
      %57 = sbr.rel (0) target = $region33
    $region32: #{idiomaticity_classifier_forward.1} parent=1 // pred_region
      _
    $region33: #{idiomaticity_classifier_forward.1} parent=1 // pred_fallthru
      _
    // Predicated region
    $region34: #{idiomaticity_classifier_forward.1} parent=1 // pred_check
      _
    $region35: #{idiomaticity_classifier_forward.1} parent=1 // pred_check_branch
      %59 = sbr.rel (0) target = $region37
    $region36: #{idiomaticity_classifier_forward.1} parent=1 // pred_region
      _
    $region37: #{idiomaticity_classifier_forward.1} parent=1 // pred_fallthru
      _
    // Predicated region
    $region38: #{idiomaticity_classifier_forward.1} parent=1 // pred_check
      _
    $region39: #{idiomaticity_classifier_forward.1} parent=1 // pred_check_branch
      %61 = sbr.rel (0) target = $region41
    $region40: #{idiomaticity_classifier_forward.1} parent=1 // pred_region
      _
    $region41: #{idiomaticity_classifier_forward.1} parent=1 // pred_fallthru
      _
    // Predicated region
    $region42: #{idiomaticity_classifier_forward.1} parent=1 // pred_check
      _
    $region43: #{idiomaticity_classifier_forward.1} parent=1 // pred_check_branch
      %63 = sbr.rel (0) target = $region45
    $region44: #{idiomaticity_classifier_forward.1} parent=1 // pred_region
      _
    $region45: #{idiomaticity_classifier_forward.1} parent=1 // pred_fallthru
      _
    // Predicated region
    $region46: #{idiomaticity_classifier_forward.1} parent=1 // pred_check
      _
    $region47: #{idiomaticity_classifier_forward.1} parent=1 // pred_check_branch
      %65 = sbr.rel (0) target = $region49
    $region48: #{idiomaticity_classifier_forward.1} parent=1 // pred_region
      _
    $region49: #{idiomaticity_classifier_forward.1} parent=1 // pred_fallthru
      _
    // Predicated region
    $region50: #{idiomaticity_classifier_forward.1} parent=1 // pred_check
      _
    $region51: #{idiomaticity_classifier_forward.1} parent=1 // pred_check_branch
      %67 = sbr.rel (0) target = $region53
    $region52: #{idiomaticity_classifier_forward.1} parent=1 // pred_region
      _
    $region53: #{idiomaticity_classifier_forward.1} parent=1 // pred_fallthru
      _
    // Predicated region
    $region54: #{idiomaticity_classifier_forward.1} parent=1 // pred_check
      _
    $region55: #{idiomaticity_classifier_forward.1} parent=1 // pred_check_branch
      %69 = sbr.rel (0) target = $region57
    $region56: #{idiomaticity_classifier_forward.1} parent=1 // pred_region
      _
    $region57: #{idiomaticity_classifier_forward.1} parent=1 // pred_fallthru
      _
    // Predicated region
    $region58: #{idiomaticity_classifier_forward.1} parent=1 // pred_check
      _
    $region59: #{idiomaticity_classifier_forward.1} parent=1 // pred_check_branch
      %71 = sbr.rel (0) target = $region61
    $region60: #{idiomaticity_classifier_forward.1} parent=1 // pred_region
      _
    $region61: #{idiomaticity_classifier_forward.1} parent=1 // pred_fallthru
      _
    // Predicated region
    $region62: #{idiomaticity_classifier_forward.1} parent=1 // pred_check
      _
    $region63: #{idiomaticity_classifier_forward.1} parent=1 // pred_check_branch
      %73 = sbr.rel (0) target = $region65
    $region64: #{idiomaticity_classifier_forward.1} parent=1 // pred_region
      _
    $region65: #{idiomaticity_classifier_forward.1} parent=1 // pred_fallthru
      _
    // Predicated region
    $region66: #{idiomaticity_classifier_forward.1} parent=1 // pred_check
      _
    $region67: #{idiomaticity_classifier_forward.1} parent=1 // pred_check_branch
      %75 = sbr.rel (0) target = $region69
    $region68: #{idiomaticity_classifier_forward.1} parent=1 // pred_region
      _
    $region69: #{idiomaticity_classifier_forward.1} parent=1 // pred_fallthru
      _
    // Predicated region
    $region70: #{idiomaticity_classifier_forward.1} parent=1 // pred_check
      _
    $region71: #{idiomaticity_classifier_forward.1} parent=1 // pred_check_branch
      %77 = sbr.rel (0) target = $region73
    $region72: #{idiomaticity_classifier_forward.1} parent=1 // pred_region
      _
    $region73: #{idiomaticity_classifier_forward.1} parent=1 // pred_fallthru
      _
    // Predicated region
    $region74: #{idiomaticity_classifier_forward.1} parent=1 // pred_check
      _
    $region75: #{idiomaticity_classifier_forward.1} parent=1 // pred_check_branch
      %79 = sbr.rel (0) target = $region77
    $region76: #{idiomaticity_classifier_forward.1} parent=1 // pred_region
      _
    $region77: #{idiomaticity_classifier_forward.1} parent=1 // pred_fallthru
      _
    // Predicated region
    $region78: #{idiomaticity_classifier_forward.1} parent=1 // pred_check
      _
    $region79: #{idiomaticity_classifier_forward.1} parent=1 // pred_check_branch
      %81 = sbr.rel (0) target = $region81
    $region80: #{idiomaticity_classifier_forward.1} parent=1 // pred_region
      _
    $region81: #{idiomaticity_classifier_forward.1} parent=1 // pred_fallthru
      _
    // Predicated region
    $region82: #{idiomaticity_classifier_forward.1} parent=1 // pred_check
      _
    $region83: #{idiomaticity_classifier_forward.1} parent=1 // pred_check_branch
      %83 = sbr.rel (0) target = $region85
    $region84: #{idiomaticity_classifier_forward.1} parent=1 // pred_region
      _
    $region85: #{idiomaticity_classifier_forward.1} parent=1 // pred_fallthru
      _
    // Predicated region
    $region86: #{idiomaticity_classifier_forward.1} parent=1 // pred_check
      _
    $region87: #{idiomaticity_classifier_forward.1} parent=1 // pred_check_branch
      %85 = sbr.rel (0) target = $region89
    $region88: #{idiomaticity_classifier_forward.1} parent=1 // pred_region
      _
    $region89: #{idiomaticity_classifier_forward.1} parent=1 // pred_fallthru
      _
    // Predicated region
    $region90: #{idiomaticity_classifier_forward.1} parent=1 // pred_check
      _
    $region91: #{idiomaticity_classifier_forward.1} parent=1 // pred_check_branch
      %87 = sbr.rel (0) target = $region93
    $region92: #{idiomaticity_classifier_forward.1} parent=1 // pred_region
      _
    $region93: #{idiomaticity_classifier_forward.1} parent=1 // pred_fallthru
      _
    // Predicated region
    $region94: #{idiomaticity_classifier_forward.1} parent=1 // pred_check
      _
    $region95: #{idiomaticity_classifier_forward.1} parent=1 // pred_check_branch
      %89 = sbr.rel (0) target = $region97
    $region96: #{idiomaticity_classifier_forward.1} parent=1 // pred_region
      _
    $region97: #{idiomaticity_classifier_forward.1} parent=1 // pred_fallthru
      _
    // Predicated region
    $region98: #{idiomaticity_classifier_forward.1} parent=1 // pred_check
      _
    $region99: #{idiomaticity_classifier_forward.1} parent=1 // pred_check_branch
      %91 = sbr.rel (0) target = $region101
    $region100: #{idiomaticity_classifier_forward.1} parent=1 // pred_region
      %92 = dma.done [#allocation4], 16
    $region101: #{idiomaticity_classifier_forward.1} parent=1 // pred_fallthru
      _
    %93 = sfence
    %v95 = vlaneseq
    %v96 = vand.u32 %v95, 127
    %v97 = vld [vmem:[%s0] sm:$0xff]
    %v98 = vld [vmem:[%s0 + $0x8] sm:$0xff]
    %99 = vset.pattern.permute.xlu0 0
    %100 = vperm.xlu0 %99, %v97
    %v101 = vpop.permute.xlu0 %100
    %102 = vset.pattern.permute.xlu0 0
    %103 = vperm.xlu0 %102, %v98
    %v104 = vpop.permute.xlu0 %103
    %vm105 = vcmp.eq.s32.totalorder %v96, %v101
    %vm106 = vcmp.eq.s32.totalorder %v96, %v104
    %v107 = vsel %vm105, 1, 0
    %v108 = vsel %vm106, 1, 0
    %v109 = vcvt.s32.f32 %v107
    %v110 = vcvt.s32.f32 %v108
    %v111 = vpack.c.bf16 %v110, %v109
    %v112 = vld [vmem:[%s3] sm:$0xf]
    %v113 = vld [vmem:[%s3 + $0x4] sm:$0xf]
    %v114 = vld [vmem:[%s3 + $0x8] sm:$0xf]
    %v115 = vld [vmem:[%s3 + $0xc] sm:$0xf]
    %v116 = vld [vmem:[%s3 + $0x10] sm:$0xf]
    %v117 = vld [vmem:[%s3 + $0x14] sm:$0xf]
    %v118 = vld [vmem:[%s3 + $0x18] sm:$0xf]
    %v119 = vld [vmem:[%s3 + $0x1c] sm:$0xf]
    %v120 = vld [vmem:[%s3 + $0x20] sm:$0xf]
    %v121 = vld [vmem:[%s3 + $0x24] sm:$0xf]
    %v122 = vld [vmem:[%s3 + $0x28] sm:$0xf]
    %v123 = vld [vmem:[%s3 + $0x2c] sm:$0xf]
    %v124 = vld [vmem:[%s3 + $0x30] sm:$0xf]
    %v125 = vld [vmem:[%s3 + $0x34] sm:$0xf]
    %v126 = vld [vmem:[%s3 + $0x38] sm:$0xf]
    %v127 = vld [vmem:[%s3 + $0x3c] sm:$0xf]
    %v128 = vld [vmem:[%s4] sm:$0xff]
    %v145 = vunpack.c.l.b16 %v112
    %v146 = vunpack.c.l.b16 %v113
    %v147 = vunpack.c.l.b16 %v114
    %v148 = vunpack.c.l.b16 %v115
    %v149 = vunpack.c.l.b16 %v116
    %v150 = vunpack.c.l.b16 %v117
    %v151 = vunpack.c.l.b16 %v118
    %v152 = vunpack.c.l.b16 %v119
    %v153 = vunpack.c.l.b16 %v120
    %v154 = vunpack.c.l.b16 %v121
    %v155 = vunpack.c.l.b16 %v122
    %v156 = vunpack.c.l.b16 %v123
    %v157 = vunpack.c.l.b16 %v124
    %v158 = vunpack.c.l.b16 %v125
    %v159 = vunpack.c.l.b16 %v126
    %v160 = vunpack.c.l.b16 %v127
    %v161 = vpack.c.b16 %v146, %v145
    %v162 = vpack.c.b16 %v148, %v147
    %v163 = vpack.c.b16 %v150, %v149
    %v164 = vpack.c.b16 %v152, %v151
    %v165 = vpack.c.b16 %v154, %v153
    %v166 = vpack.c.b16 %v156, %v155
    %v167 = vpack.c.b16 %v158, %v157
    %v168 = vpack.c.b16 %v160, %v159
    %177 = vmatprep.subr.bf16.mxu0 0
    %178 = vmatpush1.bf16.msra.mxu0 %v161
    %179 = vmatprep.subr.bf16.mxu0 0
    %180 = vmatpush1.bf16.msra.mxu0 %v162
    %181 = vmatprep.subr.bf16.mxu0 0
    %182 = vmatpush1.bf16.msra.mxu0 %v163
    %183 = vmatprep.subr.bf16.mxu0 0
    %184 = vmatpush1.bf16.msra.mxu0 %v164
    %185 = vmatprep.subr.bf16.mxu0 0
    %186 = vmatpush1.bf16.msra.mxu0 %v165
    %187 = vmatprep.subr.bf16.mxu0 0
    %188 = vmatpush1.bf16.msra.mxu0 %v166
    %189 = vmatprep.subr.bf16.mxu0 0
    %190 = vmatpush1.bf16.msra.mxu0 %v167
    %191 = vmatprep.subr.bf16.mxu0 0
    %192 = vmatpush1.bf16.msra.mxu0 %v168
    %193 = vmatprep.subr.bf16.mxu0 0
    %194 = vmatpush1.bf16.msra.mxu0 0
    %195 = vmatprep.subr.bf16.mxu0 0
    %196 = vmatpush1.bf16.msra.mxu0 0
    %197 = vmatprep.subr.bf16.mxu0 0
    %198 = vmatpush1.bf16.msra.mxu0 0
    %199 = vmatprep.subr.bf16.mxu0 0
    %200 = vmatpush1.bf16.msra.mxu0 0
    %201 = vmatprep.subr.bf16.mxu0 0
    %202 = vmatpush1.bf16.msra.mxu0 0
    %203 = vmatprep.subr.bf16.mxu0 0
    %204 = vmatpush1.bf16.msra.mxu0 0
    %205 = vmatprep.subr.bf16.mxu0 0
    %206 = vmatpush1.bf16.msra.mxu0 0
    %207 = vmatprep.subr.bf16.mxu0 0
    %208 = vmatpush1.bf16.msra.mxu0 0
    %209 = vmatprep.mubr.bf16.mxu0 0
    %210 = vmatmul.mubr.bf16.gmra.mrb[0].mxu0 %v111
    %v211 = vpop.f32.mrb[0].mxu0
    %v212 = vadd.f32 %v128, %v211
    %v213 = vpop.f32.mrb[0].mxu0
    %v214 = vpop.f32.mrb[0].mxu0
    %v215 = vadd.f32 %v128, %v214
    %v216 = vpop.f32.mrb[0].mxu0
    %217 = vdwg.mxu0
    %v218 = vld [vmem:[%s5] sm:$0x1]
    %v220 = vlaneseq
    %v221 = vshrl.u32 %v220, 7
    %v222 = vsub.s32 0, %v221
    %v223 = vrot.slane %v218, %v222
    %v225 = vadd.f32 %v212, %v223
    %v226 = vadd.f32 %v215, %v223
    %v227 = vld [vmem:[%s6] sm:$0x1]
    %v228 = vld [vmem:[%s7] sm:$0x1]
    %229 = vadd.xlane.f32.xlu0 %v225
    %v230 = vpop.xlane.xlu0 %229
    %231 = vadd.xlane.f32.xlu0 %v226
    %v232 = vpop.xlane.xlu0 %231
    %v233 = vrcp.pop 128.0
    %v234 = vmul.f32 %v230, %v233
    %v235 = vmul.f32 %v232, %v233
    %v236 = vsub.f32 %v225, %v234
    %v237 = vsub.f32 %v226, %v235
    %v238 = vmul.f32 %v236, %v236
    %v239 = vmul.f32 %v237, %v237
    %240 = vadd.xlane.f32.xlu0 %v238
    %v241 = vpop.xlane.xlu0 %240
    %242 = vadd.xlane.f32.xlu0 %v239
    %v243 = vpop.xlane.xlu0 %242
    %v244 = vmul.f32 %v241, %v233
    %v245 = vmul.f32 %v243, %v233
    %v246 = vadd.f32 %v244, 1e-05
    %v247 = vadd.f32 %v245, 1e-05
    %v248 = vrsqrt.pop %v246
    %v249 = vrsqrt.pop %v247
    %v250 = vmul.f32 %v236, %v248
    %v251 = vmul.f32 %v237, %v249
    %v253 = vlaneseq
    %v254 = vshrl.u32 %v253, 7
    %v255 = vsub.s32 0, %v254
    %v256 = vrot.slane %v227, %v255
    %v258 = vmul.f32 %v250, %v256
    %v259 = vmul.f32 %v251, %v256
    %v261 = vlaneseq
    %v262 = vshrl.u32 %v261, 7
    %v263 = vsub.s32 0, %v262
    %v264 = vrot.slane %v228, %v263
    %v266 = vadd.f32 %v258, %v264
    %v267 = vadd.f32 %v259, %v264
    %v268 = vld [vmem:[%s1] sm:$0x3]
    %v269 = vsub.f32 1.0, %v268
    %v270 = vmul.f32 %v269, -1e+09
    %v271 = vld [vmem:[%s8] sm:$0xff]
    %v272 = vld [vmem:[%s8 + $0x8] sm:$0xf]
    %v273 = vld [vmem:[%s8 + $0xc] sm:$0xff]
    %v274 = vld [vmem:[%s8 + $0x14] sm:$0xf]
    %v275 = vld [vmem:[%s8 + $0x18] sm:$0xff]
    %v276 = vld [vmem:[%s8 + $0x20] sm:$0xf]
    %v277 = vld [vmem:[%s8 + $0x24] sm:$0xff]
    %v278 = vld [vmem:[%s8 + $0x2c] sm:$0xf]
    %v279 = vld [vmem:[%s8 + $0x30] sm:$0xff]
    %v280 = vld [vmem:[%s8 + $0x38] sm:$0xf]
    %v281 = vld [vmem:[%s8 + $0x3c] sm:$0xff]
    %v282 = vld [vmem:[%s8 + $0x44] sm:$0xf]
    %v283 = vld [vmem:[%s8 + $0x48] sm:$0xff]
    %v284 = vld [vmem:[%s8 + $0x50] sm:$0xf]
    %v285 = vld [vmem:[%s8 + $0x54] sm:$0xff]
    %v286 = vld [vmem:[%s8 + $0x5c] sm:$0xf]
    %v287 = vld [vmem:[%s8 + $0x60] sm:$0xff]
    %v288 = vld [vmem:[%s8 + $0x68] sm:$0xf]
    %v289 = vld [vmem:[%s8 + $0x6c] sm:$0xff]
    %v290 = vld [vmem:[%s8 + $0x74] sm:$0xf]
    %v291 = vld [vmem:[%s8 + $0x78] sm:$0xff]
    %v292 = vld [vmem:[%s8 + $0x80] sm:$0xf]
    %v293 = vld [vmem:[%s8 + $0x84] sm:$0xff]
    %v294 = vld [vmem:[%s8 + $0x8c] sm:$0xf]
    %v295 = vld [vmem:[%s8 + $0x90] sm:$0xff]
    %v296 = vld [vmem:[%s8 + $0x98] sm:$0xf]
    %v297 = vld [vmem:[%s8 + $0x9c] sm:$0xff]
    %v298 = vld [vmem:[%s8 + $0xa4] sm:$0xf]
    %v299 = vld [vmem:[%s8 + $0xa8] sm:$0xff]
    %v300 = vld [vmem:[%s8 + $0xb0] sm:$0xf]
    %v301 = vld [vmem:[%s8 + $0xb4] sm:$0xff]
    %v302 = vld [vmem:[%s8 + $0xbc] sm:$0xf]
    %v303 = vld [vmem:[%s10] sm:$0xf]
    %v304 = vld [vmem:[%s10 + $0x4] sm:$0xf]
    %v305 = vld [vmem:[%s10 + $0x8] sm:$0xf]
    %v306 = vld [vmem:[%s10 + $0xc] sm:$0xf]
    %v307 = vld [vmem:[%s10 + $0x10] sm:$0xf]
    %v308 = vld [vmem:[%s10 + $0x14] sm:$0xf]
    %v309 = vld [vmem:[%s10 + $0x18] sm:$0xf]
    %v310 = vld [vmem:[%s10 + $0x1c] sm:$0xf]
    %v311 = vld [vmem:[%s10 + $0x20] sm:$0xf]
    %v312 = vld [vmem:[%s10 + $0x24] sm:$0xf]
    %v313 = vld [vmem:[%s10 + $0x28] sm:$0xf]
    %v314 = vld [vmem:[%s10 + $0x2c] sm:$0xf]
    %v315 = vld [vmem:[%s10 + $0x30] sm:$0xf]
    %v316 = vld [vmem:[%s10 + $0x34] sm:$0xf]
    %v317 = vld [vmem:[%s10 + $0x38] sm:$0xf]
    %v318 = vld [vmem:[%s10 + $0x3c] sm:$0xf]
    %v319 = vld [vmem:[%s14] sm:$0xff]
    %v320 = vld [vmem:[%s14 + $0x8] sm:$0xff]
    %v321 = vld [vmem:[%s14 + $0x10] sm:$0xff]
    %v322 = vld [vmem:[%s14 + $0x18] sm:$0xff]
    %v323 = vld [vmem:[%s14 + $0x20] sm:$0xff]
    %v324 = vld [vmem:[%s14 + $0x28] sm:$0xff]
    %v325 = vld [vmem:[%s14 + $0x30] sm:$0xff]
    %v326 = vld [vmem:[%s14 + $0x38] sm:$0xff]
    %v327 = vld [vmem:[%s14 + $0x40] sm:$0xff]
    %v328 = vld [vmem:[%s14 + $0x48] sm:$0xff]
    %v329 = vld [vmem:[%s14 + $0x50] sm:$0xff]
    %v330 = vld [vmem:[%s14 + $0x58] sm:$0xff]
    %v331 = vld [vmem:[%s14 + $0x60] sm:$0xff]
    %v332 = vld [vmem:[%s14 + $0x68] sm:$0xff]
    %v333 = vld [vmem:[%s14 + $0x70] sm:$0xff]
    %v334 = vld [vmem:[%s14 + $0x78] sm:$0xff]
    %v335 = vld [vmem:[%s16] sm:$0xf]
    %v336 = vld [vmem:[%s16 + $0x4] sm:$0xf]
    %v337 = vld [vmem:[%s16 + $0x8] sm:$0xf]
    %v338 = vld [vmem:[%s16 + $0xc] sm:$0xf]
    %v339 = vld [vmem:[%s16 + $0x10] sm:$0xf]
    %v340 = vld [vmem:[%s16 + $0x14] sm:$0xf]
    %v341 = vld [vmem:[%s16 + $0x18] sm:$0xf]
    %v342 = vld [vmem:[%s16 + $0x1c] sm:$0xf]
    %v343 = vld [vmem:[%s16 + $0x20] sm:$0xf]
    %v344 = vld [vmem:[%s16 + $0x24] sm:$0xf]
    %v345 = vld [vmem:[%s16 + $0x28] sm:$0xf]
    %v346 = vld [vmem:[%s16 + $0x2c] sm:$0xf]
    %v347 = vld [vmem:[%s16 + $0x30] sm:$0xf]
    %v348 = vld [vmem:[%s16 + $0x34] sm:$0xf]
    %v349 = vld [vmem:[%s16 + $0x38] sm:$0xf]
    %v350 = vld [vmem:[%s16 + $0x3c] sm:$0xf]
    %v351 = vld [vmem:[%s16 + $0x40] sm:$0xf]
    %v352 = vld [vmem:[%s16 + $0x44] sm:$0xf]
    %v353 = vld [vmem:[%s16 + $0x48] sm:$0xf]
    %v354 = vld [vmem:[%s16 + $0x4c] sm:$0xf]
    %v355 = vld [vmem:[%s16 + $0x50] sm:$0xf]
    %v356 = vld [vmem:[%s16 + $0x54] sm:$0xf]
    %v357 = vld [vmem:[%s16 + $0x58] sm:$0xf]
    %v358 = vld [vmem:[%s16 + $0x5c] sm:$0xf]
    %v359 = vld [vmem:[%s16 + $0x60] sm:$0xf]
    %v360 = vld [vmem:[%s16 + $0x64] sm:$0xf]
    %v361 = vld [vmem:[%s16 + $0x68] sm:$0xf]
    %v362 = vld [vmem:[%s16 + $0x6c] sm:$0xf]
    %v363 = vld [vmem:[%s16 + $0x70] sm:$0xf]
    %v364 = vld [vmem:[%s16 + $0x74] sm:$0xf]
    %v365 = vld [vmem:[%s16 + $0x78] sm:$0xf]
    %v366 = vld [vmem:[%s16 + $0x7c] sm:$0xf]
    %v367 = vpack.c.bf16 %v267, %v266
    %v368 = vld [vmem:[%s9] sm:$0x7]
    %v370 = vlaneseq
    %v371 = vshrl.u32 %v370, 7
    %v372 = vsub.s32 0, %v371
    %v373 = vrot.slane %v368, %v372
    %v374 = vlaneseq
    %v375 = vshrl.u32 %v374, 7
    %v376 = vsub.s32 1, %v375
    %v377 = vrot.slane %v368, %v376
    %v378 = vlaneseq
    %v379 = vshrl.u32 %v378, 7
    %v380 = vsub.s32 2, %v379
    %v381 = vrot.slane %v368, %v380
    %v417 = vunpack.c.l.b16 %v271
    %v418 = vunpack.c.h.b16 %v271
    %v419 = vunpack.c.l.b16 %v272
    %v420 = vunpack.c.l.b16 %v273
    %v421 = vunpack.c.h.b16 %v273
    %v422 = vunpack.c.l.b16 %v274
    %v423 = vunpack.c.l.b16 %v275
    %v424 = vunpack.c.h.b16 %v275
    %v425 = vunpack.c.l.b16 %v276
    %v426 = vunpack.c.l.b16 %v277
    %v427 = vunpack.c.h.b16 %v277
    %v428 = vunpack.c.l.b16 %v278
    %v429 = vunpack.c.l.b16 %v279
    %v430 = vunpack.c.h.b16 %v279
    %v431 = vunpack.c.l.b16 %v280
    %v432 = vunpack.c.l.b16 %v281
    %v433 = vunpack.c.h.b16 %v281
    %v434 = vunpack.c.l.b16 %v282
    %v435 = vunpack.c.l.b16 %v283
    %v436 = vunpack.c.h.b16 %v283
    %v437 = vunpack.c.l.b16 %v284
    %v438 = vunpack.c.l.b16 %v285
    %v439 = vunpack.c.h.b16 %v285
    %v440 = vunpack.c.l.b16 %v286
    %v441 = vunpack.c.l.b16 %v287
    %v442 = vunpack.c.h.b16 %v287
    %v443 = vunpack.c.l.b16 %v288
    %v444 = vunpack.c.l.b16 %v289
    %v445 = vunpack.c.h.b16 %v289
    %v446 = vunpack.c.l.b16 %v290
    %v447 = vunpack.c.l.b16 %v291
    %v448 = vunpack.c.h.b16 %v291
    %v449 = vunpack.c.l.b16 %v292
    %v450 = vunpack.c.l.b16 %v293
    %v451 = vunpack.c.h.b16 %v293
    %v452 = vunpack.c.l.b16 %v294
    %v453 = vunpack.c.l.b16 %v295
    %v454 = vunpack.c.h.b16 %v295
    %v455 = vunpack.c.l.b16 %v296
    %v456 = vunpack.c.l.b16 %v297
    %v457 = vunpack.c.h.b16 %v297
    %v458 = vunpack.c.l.b16 %v298
    %v459 = vunpack.c.l.b16 %v299
    %v460 = vunpack.c.h.b16 %v299
    %v461 = vunpack.c.l.b16 %v300
    %v462 = vunpack.c.l.b16 %v301
    %v463 = vunpack.c.h.b16 %v301
    %v464 = vunpack.c.l.b16 %v302
    %v465 = vpack.c.b16 %v420, %v417
    %v466 = vpack.c.b16 %v421, %v418
    %v467 = vpack.c.b16 %v422, %v419
    %v468 = vpack.c.b16 %v426, %v423
    %v469 = vpack.c.b16 %v427, %v424
    %v470 = vpack.c.b16 %v428, %v425
    %v471 = vpack.c.b16 %v432, %v429
    %v472 = vpack.c.b16 %v433, %v430
    %v473 = vpack.c.b16 %v434, %v431
    %v474 = vpack.c.b16 %v438, %v435
    %v475 = vpack.c.b16 %v439, %v436
    %v476 = vpack.c.b16 %v440, %v437
    %v477 = vpack.c.b16 %v444, %v441
    %v478 = vpack.c.b16 %v445, %v442
    %v479 = vpack.c.b16 %v446, %v443
    %v480 = vpack.c.b16 %v450, %v447
    %v481 = vpack.c.b16 %v451, %v448
    %v482 = vpack.c.b16 %v452, %v449
    %v483 = vpack.c.b16 %v456, %v453
    %v484 = vpack.c.b16 %v457, %v454
    %v485 = vpack.c.b16 %v458, %v455
    %v486 = vpack.c.b16 %v462, %v459
    %v487 = vpack.c.b16 %v463, %v460
    %v488 = vpack.c.b16 %v464, %v461
    %513 = vmatprep.subr.bf16.mxu0 %v466
    %514 = vmatpush1.bf16.msra.mxu0 %v465
    %515 = vmatprep.subr.bf16.mxu0 %v469
    %516 = vmatpush1.bf16.msra.mxu0 %v468
    %517 = vmatprep.subr.bf16.mxu0 %v472
    %518 = vmatpush1.bf16.msra.mxu0 %v471
    %519 = vmatprep.subr.bf16.mxu0 %v475
    %520 = vmatpush1.bf16.msra.mxu0 %v474
    %521 = vmatprep.subr.bf16.mxu0 %v478
    %522 = vmatpush1.bf16.msra.mxu0 %v477
    %523 = vmatprep.subr.bf16.mxu0 %v481
    %524 = vmatpush1.bf16.msra.mxu0 %v480
    %525 = vmatprep.subr.bf16.mxu0 %v484
    %526 = vmatpush1.bf16.msra.mxu0 %v483
    %527 = vmatprep.subr.bf16.mxu0 %v487
    %528 = vmatpush1.bf16.msra.mxu0 %v486
    %529 = vmatprep.subr.bf16.mxu0 0
    %530 = vmatpush1.bf16.msra.mxu0 0
    %531 = vmatprep.subr.bf16.mxu0 0
    %532 = vmatpush1.bf16.msra.mxu0 0
    %533 = vmatprep.subr.bf16.mxu0 0
    %534 = vmatpush1.bf16.msra.mxu0 0
    %535 = vmatprep.subr.bf16.mxu0 0
    %536 = vmatpush1.bf16.msra.mxu0 0
    %537 = vmatprep.subr.bf16.mxu0 0
    %538 = vmatpush1.bf16.msra.mxu0 0
    %539 = vmatprep.subr.bf16.mxu0 0
    %540 = vmatpush1.bf16.msra.mxu0 0
    %541 = vmatprep.subr.bf16.mxu0 0
    %542 = vmatpush1.bf16.msra.mxu0 0
    %543 = vmatprep.subr.bf16.mxu0 0
    %544 = vmatpush1.bf16.msra.mxu0 0
    %545 = vmatprep.mubr.bf16.mxu0 0
    %546 = vmatmul.mubr.bf16.gmra.mrb[0].mxu0 %v367
    %v547 = vpop.f32.mrb[0].mxu0
    %v548 = vadd.f32 %v373, %v547
    %v549 = vpop.f32.mrb[0].mxu0
    %v550 = vadd.f32 %v377, %v549
    %v551 = vpop.f32.mrb[0].mxu0
    %v552 = vadd.f32 %v373, %v551
    %v553 = vpop.f32.mrb[0].mxu0
    %v554 = vadd.f32 %v377, %v553
    %555 = vdwg.mxu0
    %556 = vmatprep.subr.bf16.mxu0 0
    %557 = vmatpush1.bf16.msra.mxu0 %v467
    %558 = vmatprep.subr.bf16.mxu0 0
    %559 = vmatpush1.bf16.msra.mxu0 %v470
    %560 = vmatprep.subr.bf16.mxu0 0
    %561 = vmatpush1.bf16.msra.mxu0 %v473
    %562 = vmatprep.subr.bf16.mxu0 0
    %563 = vmatpush1.bf16.msra.mxu0 %v476
    %564 = vmatprep.subr.bf16.mxu0 0
    %565 = vmatpush1.bf16.msra.mxu0 %v479
    %566 = vmatprep.subr.bf16.mxu0 0
    %567 = vmatpush1.bf16.msra.mxu0 %v482
    %568 = vmatprep.subr.bf16.mxu0 0
    %569 = vmatpush1.bf16.msra.mxu0 %v485
    %570 = vmatprep.subr.bf16.mxu0 0
    %571 = vmatpush1.bf16.msra.mxu0 %v488
    %572 = vmatprep.subr.bf16.mxu0 0
    %573 = vmatpush1.bf16.msra.mxu0 0
    %574 = vmatprep.subr.bf16.mxu0 0
    %575 = vmatpush1.bf16.msra.mxu0 0
    %576 = vmatprep.subr.bf16.mxu0 0
    %577 = vmatpush1.bf16.msra.mxu0 0
    %578 = vmatprep.subr.bf16.mxu0 0
    %579 = vmatpush1.bf16.msra.mxu0 0
    %580 = vmatprep.subr.bf16.mxu0 0
    %581 = vmatpush1.bf16.msra.mxu0 0
    %582 = vmatprep.subr.bf16.mxu0 0
    %583 = vmatpush1.bf16.msra.mxu0 0
    %584 = vmatprep.subr.bf16.mxu0 0
    %585 = vmatpush1.bf16.msra.mxu0 0
    %586 = vmatprep.subr.bf16.mxu0 0
    %587 = vmatpush1.bf16.msra.mxu0 0
    %588 = vmatprep.mubr.bf16.mxu0 0
    %589 = vmatmul.mubr.bf16.gmra.mrb[0].mxu0 %v367
    %v590 = vpop.f32.mrb[0].mxu0
    %v591 = vadd.f32 %v381, %v590
    %v592 = vpop.f32.mrb[0].mxu0
    %v593 = vpop.f32.mrb[0].mxu0
    %v594 = vadd.f32 %v381, %v593
    %v595 = vpop.f32.mrb[0].mxu0
    %596 = vdwg.mxu0
    %v597 = vpack.c.bf16 %v548, %v548
    %v598 = vpack.c.bf16 %v550, %v550
    %v599 = vpack.c.bf16 %v591, %v591
    %v600 = vlaneseq
    %v601 = vshrl.u32 %v600, 7
    %v602 = vsub.s32 0, %v601
    %v603 = vrot.slane %v270, %v602
    %vm604 = vcmask 261120
    %v606 = vsel %vm604, %v597, 0
    %v609 = vsel %vm604, %v598, 0
    %611 = vmatprep.subr.bf16.mxu0 0
    %612 = vmatpush1.bf16.xpose.msra.mxu0 %v609
    %613 = vmatprep.subr.bf16.mxu0 0
    %614 = vmatpush1.bf16.xpose.msra.mxu0 0
    %615 = vmatprep.subr.bf16.mxu0 0
    %616 = vmatpush1.bf16.xpose.msra.mxu0 0
    %617 = vmatprep.subr.bf16.mxu0 0
    %618 = vmatpush1.bf16.xpose.msra.mxu0 0
    %619 = vmatprep.subr.bf16.mxu0 0
    %620 = vmatpush1.bf16.xpose.msra.mxu0 0
    %621 = vmatprep.subr.bf16.mxu0 0
    %622 = vmatpush1.bf16.xpose.msra.mxu0 0
    %623 = vmatprep.subr.bf16.mxu0 0
    %624 = vmatpush1.bf16.xpose.msra.mxu0 0
    %625 = vmatprep.subr.bf16.mxu0 0
    %626 = vmatpush1.bf16.xpose.msra.mxu0 0
    %627 = vmatprep.subr.bf16.mxu0 0
    %628 = vmatpush1.bf16.xpose.msra.mxu0 0
    %629 = vmatprep.subr.bf16.mxu0 0
    %630 = vmatpush1.bf16.xpose.msra.mxu0 0
    %631 = vmatprep.subr.bf16.mxu0 0
    %632 = vmatpush1.bf16.xpose.msra.mxu0 0
    %633 = vmatprep.subr.bf16.mxu0 0
    %634 = vmatpush1.bf16.xpose.msra.mxu0 0
    %635 = vmatprep.subr.bf16.mxu0 0
    %636 = vmatpush1.bf16.xpose.msra.mxu0 0
    %637 = vmatprep.subr.bf16.mxu0 0
    %638 = vmatpush1.bf16.xpose.msra.mxu0 0
    %639 = vmatprep.subr.bf16.mxu0 0
    %640 = vmatpush1.bf16.xpose.msra.mxu0 0
    %641 = vmatprep.subr.bf16.mxu0 0
    %642 = vmatpush1.bf16.xpose.msra.mxu0 0
    %643 = vmatprep.mubr.bf16.mxu0 0
    %644 = vmatmul.mubr.bf16.gmra.mrb[0].mxu0 %v606
    %v645 = vpop.f32.mrb[0].mxu0
    %v646 = vadd.f32 %v603, %v645
    %v647 = vpop.f32.mrb[0].mxu0
    %v648 = vpop.f32.mrb[0].mxu0
    %v649 = vpop.f32.mrb[0].mxu0
    %650 = vdwg.mxu0
    %vm651 = vcmask 64512
    %v652 = vsel %vm651, %v646, -inf
    %653 = vmax.xlane.f32.xlu0 %v652
    %v654 = vpop.xlane.xlu0 %653
    %v655 = vsub.f32 %v646, %v654
    %v656 = vmul.f32 %v655, 1.442695
    %v657 = vpow.pop %v656
    %v658 = vsel %vm651, %v657, 0.0
    %659 = vadd.xlane.f32.xlu0 %v658
    %v660 = vpop.xlane.xlu0 %659
    %v661 = vrcp.pop %v660
    %v662 = vmul.f32 %v657, %v661
    %v663 = vpack.c.bf16 %v662, %v662
    %v665 = vsel %vm651, %v663, 0
    %vm667 = vcmask 1043456
    %v669 = vsel %vm667, %v599, 0
    %671 = vmatprep.subr.bf16.mxu0 0
    %672 = vmatpush1.bf16.msra.mxu0 %v669
    %673 = vmatprep.subr.bf16.mxu0 0
    %674 = vmatpush1.bf16.msra.mxu0 0
    %675 = vmatprep.subr.bf16.mxu0 0
    %676 = vmatpush1.bf16.msra.mxu0 0
    %677 = vmatprep.subr.bf16.mxu0 0
    %678 = vmatpush1.bf16.msra.mxu0 0
    %679 = vmatprep.subr.bf16.mxu0 0
    %680 = vmatpush1.bf16.msra.mxu0 0
    %681 = vmatprep.subr.bf16.mxu0 0
    %682 = vmatpush1.bf16.msra.mxu0 0
    %683 = vmatprep.subr.bf16.mxu0 0
    %684 = vmatpush1.bf16.msra.mxu0 0
    %685 = vmatprep.subr.bf16.mxu0 0
    %686 = vmatpush1.bf16.msra.mxu0 0
    %687 = vmatprep.subr.bf16.mxu0 0
    %688 = vmatpush1.bf16.msra.mxu0 0
    %689 = vmatprep.subr.bf16.mxu0 0
    %690 = vmatpush1.bf16.msra.mxu0 0
    %691 = vmatprep.subr.bf16.mxu0 0
    %692 = vmatpush1.bf16.msra.mxu0 0
    %693 = vmatprep.subr.bf16.mxu0 0
    %694 = vmatpush1.bf16.msra.mxu0 0
    %695 = vmatprep.subr.bf16.mxu0 0
    %696 = vmatpush1.bf16.msra.mxu0 0
    %697 = vmatprep.subr.bf16.mxu0 0
    %698 = vmatpush1.bf16.msra.mxu0 0
    %699 = vmatprep.subr.bf16.mxu0 0
    %700 = vmatpush1.bf16.msra.mxu0 0
    %701 = vmatprep.subr.bf16.mxu0 0
    %702 = vmatpush1.bf16.msra.mxu0 0
    %703 = vmatprep.mubr.bf16.mxu0 0
    %704 = vmatmul.mubr.bf16.gmra.mrb[0].mxu0 %v665
    %v705 = vpop.f32.mrb[0].mxu0
    %v706 = vadd.f32 0.0, %v705
    %v707 = vpop.f32.mrb[0].mxu0
    %v708 = vpop.f32.mrb[0].mxu0
    %v709 = vpop.f32.mrb[0].mxu0
    %710 = vdwg.mxu0
    %v711 = vpack.c.bf16 %v706, %v706
    %713 = vrot.lane.b32.xlu0 %v597, 96
    %v714 = vpop.permute.xlu0 %713
    %716 = vrot.lane.b32.xlu0 %v598, 96
    %v717 = vpop.permute.xlu0 %716
    %v719 = vsel %vm604, %v714, 0
    %v722 = vsel %vm604, %v717, 0
    %724 = vmatprep.subr.bf16.mxu0 0
    %725 = vmatpush1.bf16.xpose.msra.mxu0 %v722
    %726 = vmatprep.subr.bf16.mxu0 0
    %727 = vmatpush1.bf16.xpose.msra.mxu0 0
    %728 = vmatprep.subr.bf16.mxu0 0
    %729 = vmatpush1.bf16.xpose.msra.mxu0 0
    %730 = vmatprep.subr.bf16.mxu0 0
    %731 = vmatpush1.bf16.xpose.msra.mxu0 0
    %732 = vmatprep.subr.bf16.mxu0 0
    %733 = vmatpush1.bf16.xpose.msra.mxu0 0
    %734 = vmatprep.subr.bf16.mxu0 0
    %735 = vmatpush1.bf16.xpose.msra.mxu0 0
    %736 = vmatprep.subr.bf16.mxu0 0
    %737 = vmatpush1.bf16.xpose.msra.mxu0 0
    %738 = vmatprep.subr.bf16.mxu0 0
    %739 = vmatpush1.bf16.xpose.msra.mxu0 0
    %740 = vmatprep.subr.bf16.mxu0 0
    %741 = vmatpush1.bf16.xpose.msra.mxu0 0
    %742 = vmatprep.subr.bf16.mxu0 0
    %743 = vmatpush1.bf16.xpose.msra.mxu0 0
    %744 = vmatprep.subr.bf16.mxu0 0
    %745 = vmatpush1.bf16.xpose.msra.mxu0 0
    %746 = vmatprep.subr.bf16.mxu0 0
    %747 = vmatpush1.bf16.xpose.msra.mxu0 0
    %748 = vmatprep.subr.bf16.mxu0 0
    %749 = vmatpush1.bf16.xpose.msra.mxu0 0
    %750 = vmatprep.subr.bf16.mxu0 0
    %751 = vmatpush1.bf16.xpose.msra.mxu0 0
    %752 = vmatprep.subr.bf16.mxu0 0
    %753 = vmatpush1.bf16.xpose.msra.mxu0 0
    %754 = vmatprep.subr.bf16.mxu0 0
    %755 = vmatpush1.bf16.xpose.msra.mxu0 0
    %756 = vmatprep.mubr.bf16.mxu0 0
    %757 = vmatmul.mubr.bf16.gmra.mrb[0].mxu0 %v719
    %v758 = vpop.f32.mrb[0].mxu0
    %v759 = vadd.f32 %v603, %v758
    %v760 = vpop.f32.mrb[0].mxu0
    %v761 = vpop.f32.mrb[0].mxu0
    %v762 = vpop.f32.mrb[0].mxu0
    %763 = vdwg.mxu0
    %v764 = vsel %vm651, %v759, -inf
    %765 = vmax.xlane.f32.xlu0 %v764
    %v766 = vpop.xlane.xlu0 %765
    %v767 = vsub.f32 %v759, %v766
    %v768 = vmul.f32 %v767, 1.442695
    %v769 = vpow.pop %v768
    %v770 = vsel %vm651, %v769, 0.0
    %771 = vadd.xlane.f32.xlu0 %v770
    %v772 = vpop.xlane.xlu0 %771
    %v773 = vrcp.pop %v772
    %v774 = vmul.f32 %v769, %v773
    %v775 = vpack.c.bf16 %v774, %v774
    %777 = vrot.lane.b32.xlu0 %v599, 96
    %v778 = vpop.permute.xlu0 %777
    %v780 = vsel %vm651, %v775, 0
    %v783 = vsel %vm667, %v778, 0
    %785 = vmatprep.subr.bf16.mxu0 0
    %786 = vmatpush1.bf16.msra.mxu0 %v783
    %787 = vmatprep.subr.bf16.mxu0 0
    %788 = vmatpush1.bf16.msra.mxu0 0
    %789 = vmatprep.subr.bf16.mxu0 0
    %790 = vmatpush1.bf16.msra.mxu0 0
    %791 = vmatprep.subr.bf16.mxu0 0
    %792 = vmatpush1.bf16.msra.mxu0 0
    %793 = vmatprep.subr.bf16.mxu0 0
    %794 = vmatpush1.bf16.msra.mxu0 0
    %795 = vmatprep.subr.bf16.mxu0 0
    %796 = vmatpush1.bf16.msra.mxu0 0
    %797 = vmatprep.subr.bf16.mxu0 0
    %798 = vmatpush1.bf16.msra.mxu0 0
    %799 = vmatprep.subr.bf16.mxu0 0
    %800 = vmatpush1.bf16.msra.mxu0 0
    %801 = vmatprep.subr.bf16.mxu0 0
    %802 = vmatpush1.bf16.msra.mxu0 0
    %803 = vmatprep.subr.bf16.mxu0 0
    %804 = vmatpush1.bf16.msra.mxu0 0
    %805 = vmatprep.subr.bf16.mxu0 0
    %806 = vmatpush1.bf16.msra.mxu0 0
    %807 = vmatprep.subr.bf16.mxu0 0
    %808 = vmatpush1.bf16.msra.mxu0 0
    %809 = vmatprep.subr.bf16.mxu0 0
    %810 = vmatpush1.bf16.msra.mxu0 0
    %811 = vmatprep.subr.bf16.mxu0 0
    %812 = vmatpush1.bf16.msra.mxu0 0
    %813 = vmatprep.subr.bf16.mxu0 0
    %814 = vmatpush1.bf16.msra.mxu0 0
    %815 = vmatprep.subr.bf16.mxu0 0
    %816 = vmatpush1.bf16.msra.mxu0 0
    %817 = vmatprep.mubr.bf16.mxu0 0
    %818 = vmatmul.mubr.bf16.gmra.mrb[0].mxu0 %v780
    %v819 = vpop.f32.mrb[0].mxu0
    %v820 = vadd.f32 0.0, %v819
    %v821 = vpop.f32.mrb[0].mxu0
    %v822 = vpop.f32.mrb[0].mxu0
    %v823 = vpop.f32.mrb[0].mxu0
    %824 = vdwg.mxu0
    %v825 = vpack.c.bf16 %v820, %v820
    %v830 = vunpack.c.l.b16 %v307
    %v831 = vunpack.c.l.b16 %v308
    %v832 = vunpack.c.l.b16 %v309
    %v833 = vunpack.c.l.b16 %v310
    %v834 = vpack.c.b16 %v831, %v830
    %v835 = vpack.c.b16 %v833, %v832
    %v839 = vsel %vm604, %v825, 0
    %841 = vmatprep.subr.bf16.mxu0 0
    %842 = vmatpush1.bf16.msra.mxu0 %v834
    %843 = vmatprep.subr.bf16.mxu0 0
    %844 = vmatpush1.bf16.msra.mxu0 %v835
    %845 = vmatprep.subr.bf16.mxu0 0
    %846 = vmatpush1.bf16.msra.mxu0 0
    %847 = vmatprep.subr.bf16.mxu0 0
    %848 = vmatpush1.bf16.msra.mxu0 0
    %849 = vmatprep.subr.bf16.mxu0 0
    %850 = vmatpush1.bf16.msra.mxu0 0
    %851 = vmatprep.subr.bf16.mxu0 0
    %852 = vmatpush1.bf16.msra.mxu0 0
    %853 = vmatprep.subr.bf16.mxu0 0
    %854 = vmatpush1.bf16.msra.mxu0 0
    %855 = vmatprep.subr.bf16.mxu0 0
    %856 = vmatpush1.bf16.msra.mxu0 0
    %857 = vmatprep.subr.bf16.mxu0 0
    %858 = vmatpush1.bf16.msra.mxu0 0
    %859 = vmatprep.subr.bf16.mxu0 0
    %860 = vmatpush1.bf16.msra.mxu0 0
    %861 = vmatprep.subr.bf16.mxu0 0
    %862 = vmatpush1.bf16.msra.mxu0 0
    %863 = vmatprep.subr.bf16.mxu0 0
    %864 = vmatpush1.bf16.msra.mxu0 0
    %865 = vmatprep.subr.bf16.mxu0 0
    %866 = vmatpush1.bf16.msra.mxu0 0
    %867 = vmatprep.subr.bf16.mxu0 0
    %868 = vmatpush1.bf16.msra.mxu0 0
    %869 = vmatprep.subr.bf16.mxu0 0
    %870 = vmatpush1.bf16.msra.mxu0 0
    %871 = vmatprep.subr.bf16.mxu0 0
    %872 = vmatpush1.bf16.msra.mxu0 0
    %873 = vmatprep.mubr.bf16.mxu0 0
    %874 = vmatmul.mubr.bf16.gmra.mrb[0].mxu0 %v839
    %v875 = vpop.f32.mrb[0].mxu0
    %v876 = vadd.f32 0.0, %v875
    %v877 = vpop.f32.mrb[0].mxu0
    %v878 = vpop.f32.mrb[0].mxu0
    %v879 = vpop.f32.mrb[0].mxu0
    %880 = vdwg.mxu0
    %v885 = vunpack.c.l.b16 %v303
    %v886 = vunpack.c.l.b16 %v304
    %v887 = vunpack.c.l.b16 %v305
    %v888 = vunpack.c.l.b16 %v306
    %v889 = vpack.c.b16 %v886, %v885
    %v890 = vpack.c.b16 %v888, %v887
    %v894 = vsel %vm604, %v711, 0
    %896 = vmatprep.subr.bf16.mxu0 0
    %897 = vmatpush1.bf16.msra.mxu0 %v889
    %898 = vmatprep.subr.bf16.mxu0 0
    %899 = vmatpush1.bf16.msra.mxu0 %v890
    %900 = vmatprep.subr.bf16.mxu0 0
    %901 = vmatpush1.bf16.msra.mxu0 0
    %902 = vmatprep.subr.bf16.mxu0 0
    %903 = vmatpush1.bf16.msra.mxu0 0
    %904 = vmatprep.subr.bf16.mxu0 0
    %905 = vmatpush1.bf16.msra.mxu0 0
    %906 = vmatprep.subr.bf16.mxu0 0
    %907 = vmatpush1.bf16.msra.mxu0 0
    %908 = vmatprep.subr.bf16.mxu0 0
    %909 = vmatpush1.bf16.msra.mxu0 0
    %910 = vmatprep.subr.bf16.mxu0 0
    %911 = vmatpush1.bf16.msra.mxu0 0
    %912 = vmatprep.subr.bf16.mxu0 0
    %913 = vmatpush1.bf16.msra.mxu0 0
    %914 = vmatprep.subr.bf16.mxu0 0
    %915 = vmatpush1.bf16.msra.mxu0 0
    %916 = vmatprep.subr.bf16.mxu0 0
    %917 = vmatpush1.bf16.msra.mxu0 0
    %918 = vmatprep.subr.bf16.mxu0 0
    %919 = vmatpush1.bf16.msra.mxu0 0
    %920 = vmatprep.subr.bf16.mxu0 0
    %921 = vmatpush1.bf16.msra.mxu0 0
    %922 = vmatprep.subr.bf16.mxu0 0
    %923 = vmatpush1.bf16.msra.mxu0 0
    %924 = vmatprep.subr.bf16.mxu0 0
    %925 = vmatpush1.bf16.msra.mxu0 0
    %926 = vmatprep.subr.bf16.mxu0 0
    %927 = vmatpush1.bf16.msra.mxu0 0
    %928 = vmatprep.mubr.bf16.mxu0 0
    %929 = vmatmul.mubr.bf16.gmra.mrb[0].mxu0 %v894
    %v930 = vpop.f32.mrb[0].mxu0
    %v931 = vadd.f32 %v876, %v930
    %v932 = vpop.f32.mrb[0].mxu0
    %v933 = vpop.f32.mrb[0].mxu0
    %v934 = vpop.f32.mrb[0].mxu0
    %935 = vdwg.mxu0
    %936 = vrot.lane.b32.xlu0 %v597, 64
    %v937 = vpop.permute.xlu0 %936
    %938 = vrot.lane.b32.xlu0 %v598, 64
    %v939 = vpop.permute.xlu0 %938
    %v941 = vsel %vm604, %v937, 0
    %v944 = vsel %vm604, %v939, 0
    %946 = vmatprep.subr.bf16.mxu0 0
    %947 = vmatpush1.bf16.xpose.msra.mxu0 %v944
    %948 = vmatprep.subr.bf16.mxu0 0
    %949 = vmatpush1.bf16.xpose.msra.mxu0 0
    %950 = vmatprep.subr.bf16.mxu0 0
    %951 = vmatpush1.bf16.xpose.msra.mxu0 0
    %952 = vmatprep.subr.bf16.mxu0 0
    %953 = vmatpush1.bf16.xpose.msra.mxu0 0
    %954 = vmatprep.subr.bf16.mxu0 0
    %955 = vmatpush1.bf16.xpose.msra.mxu0 0
    %956 = vmatprep.subr.bf16.mxu0 0
    %957 = vmatpush1.bf16.xpose.msra.mxu0 0
    %958 = vmatprep.subr.bf16.mxu0 0
    %959 = vmatpush1.bf16.xpose.msra.mxu0 0
    %960 = vmatprep.subr.bf16.mxu0 0
    %961 = vmatpush1.bf16.xpose.msra.mxu0 0
    %962 = vmatprep.subr.bf16.mxu0 0
    %963 = vmatpush1.bf16.xpose.msra.mxu0 0
    %964 = vmatprep.subr.bf16.mxu0 0
    %965 = vmatpush1.bf16.xpose.msra.mxu0 0
    %966 = vmatprep.subr.bf16.mxu0 0
    %967 = vmatpush1.bf16.xpose.msra.mxu0 0
    %968 = vmatprep.subr.bf16.mxu0 0
    %969 = vmatpush1.bf16.xpose.msra.mxu0 0
    %970 = vmatprep.subr.bf16.mxu0 0
    %971 = vmatpush1.bf16.xpose.msra.mxu0 0
    %972 = vmatprep.subr.bf16.mxu0 0
    %973 = vmatpush1.bf16.xpose.msra.mxu0 0
    %974 = vmatprep.subr.bf16.mxu0 0
    %975 = vmatpush1.bf16.xpose.msra.mxu0 0
    %976 = vmatprep.subr.bf16.mxu0 0
    %977 = vmatpush1.bf16.xpose.msra.mxu0 0
    %978 = vmatprep.mubr.bf16.mxu0 0
    %979 = vmatmul.mubr.bf16.gmra.mrb[0].mxu0 %v941
    %v980 = vpop.f32.mrb[0].mxu0
    %v981 = vadd.f32 %v603, %v980
    %v982 = vpop.f32.mrb[0].mxu0
    %v983 = vpop.f32.mrb[0].mxu0
    %v984 = vpop.f32.mrb[0].mxu0
    %985 = vdwg.mxu0
    %v986 = vsel %vm651, %v981, -inf
    %987 = vmax.xlane.f32.xlu0 %v986
    %v988 = vpop.xlane.xlu0 %987
    %v989 = vsub.f32 %v981, %v988
    %v990 = vmul.f32 %v989, 1.442695
    %v991 = vpow.pop %v990
    %v992 = vsel %vm651, %v991, 0.0
    %993 = vadd.xlane.f32.xlu0 %v992
    %v994 = vpop.xlane.xlu0 %993
    %v995 = vrcp.pop %v994
    %v996 = vmul.f32 %v991, %v995
    %v997 = vpack.c.bf16 %v996, %v996
    %998 = vrot.lane.b32.xlu0 %v599, 64
    %v999 = vpop.permute.xlu0 %998
    %v1001 = vsel %vm651, %v997, 0
    %v1004 = vsel %vm667, %v999, 0
    %1006 = vmatprep.subr.bf16.mxu0 0
    %1007 = vmatpush1.bf16.msra.mxu0 %v1004
    %1008 = vmatprep.subr.bf16.mxu0 0
    %1009 = vmatpush1.bf16.msra.mxu0 0
    %1010 = vmatprep.subr.bf16.mxu0 0
    %1011 = vmatpush1.bf16.msra.mxu0 0
    %1012 = vmatprep.subr.bf16.mxu0 0
    %1013 = vmatpush1.bf16.msra.mxu0 0
    %1014 = vmatprep.subr.bf16.mxu0 0
    %1015 = vmatpush1.bf16.msra.mxu0 0
    %1016 = vmatprep.subr.bf16.mxu0 0
    %1017 = vmatpush1.bf16.msra.mxu0 0
    %1018 = vmatprep.subr.bf16.mxu0 0
    %1019 = vmatpush1.bf16.msra.mxu0 0
    %1020 = vmatprep.subr.bf16.mxu0 0
    %1021 = vmatpush1.bf16.msra.mxu0 0
    %1022 = vmatprep.subr.bf16.mxu0 0
    %1023 = vmatpush1.bf16.msra.mxu0 0
    %1024 = vmatprep.subr.bf16.mxu0 0
    %1025 = vmatpush1.bf16.msra.mxu0 0
    %1026 = vmatprep.subr.bf16.mxu0 0
    %1027 = vmatpush1.bf16.msra.mxu0 0
    %1028 = vmatprep.subr.bf16.mxu0 0
    %1029 = vmatpush1.bf16.msra.mxu0 0
    %1030 = vmatprep.subr.bf16.mxu0 0
    %1031 = vmatpush1.bf16.msra.mxu0 0
    %1032 = vmatprep.subr.bf16.mxu0 0
    %1033 = vmatpush1.bf16.msra.mxu0 0
    %1034 = vmatprep.subr.bf16.mxu0 0
    %1035 = vmatpush1.bf16.msra.mxu0 0
    %1036 = vmatprep.subr.bf16.mxu0 0
    %1037 = vmatpush1.bf16.msra.mxu0 0
    %1038 = vmatprep.mubr.bf16.mxu0 0
    %1039 = vmatmul.mubr.bf16.gmra.mrb[0].mxu0 %v1001
    %v1040 = vpop.f32.mrb[0].mxu0
    %v1041 = vadd.f32 0.0, %v1040
    %v1042 = vpop.f32.mrb[0].mxu0
    %v1043 = vpop.f32.mrb[0].mxu0
    %v1044 = vpop.f32.mrb[0].mxu0
    %1045 = vdwg.mxu0
    %v1046 = vpack.c.bf16 %v1041, %v1041
    %v1051 = vunpack.c.l.b16 %v311
    %v1052 = vunpack.c.l.b16 %v312
    %v1053 = vunpack.c.l.b16 %v313
    %v1054 = vunpack.c.l.b16 %v314
    %v1055 = vpack.c.b16 %v1052, %v1051
    %v1056 = vpack.c.b16 %v1054, %v1053
    %v1060 = vsel %vm604, %v1046, 0
    %1062 = vmatprep.subr.bf16.mxu0 0
    %1063 = vmatpush1.bf16.msra.mxu0 %v1055
    %1064 = vmatprep.subr.bf16.mxu0 0
    %1065 = vmatpush1.bf16.msra.mxu0 %v1056
    %1066 = vmatprep.subr.bf16.mxu0 0
    %1067 = vmatpush1.bf16.msra.mxu0 0
    %1068 = vmatprep.subr.bf16.mxu0 0
    %1069 = vmatpush1.bf16.msra.mxu0 0
    %1070 = vmatprep.subr.bf16.mxu0 0
    %1071 = vmatpush1.bf16.msra.mxu0 0
    %1072 = vmatprep.subr.bf16.mxu0 0
    %1073 = vmatpush1.bf16.msra.mxu0 0
    %1074 = vmatprep.subr.bf16.mxu0 0
    %1075 = vmatpush1.bf16.msra.mxu0 0
    %1076 = vmatprep.subr.bf16.mxu0 0
    %1077 = vmatpush1.bf16.msra.mxu0 0
    %1078 = vmatprep.subr.bf16.mxu0 0
    %1079 = vmatpush1.bf16.msra.mxu0 0
    %1080 = vmatprep.subr.bf16.mxu0 0
    %1081 = vmatpush1.bf16.msra.mxu0 0
    %1082 = vmatprep.subr.bf16.mxu0 0
    %1083 = vmatpush1.bf16.msra.mxu0 0
    %1084 = vmatprep.subr.bf16.mxu0 0
    %1085 = vmatpush1.bf16.msra.mxu0 0
    %1086 = vmatprep.subr.bf16.mxu0 0
    %1087 = vmatpush1.bf16.msra.mxu0 0
    %1088 = vmatprep.subr.bf16.mxu0 0
    %1089 = vmatpush1.bf16.msra.mxu0 0
    %1090 = vmatprep.subr.bf16.mxu0 0
    %1091 = vmatpush1.bf16.msra.mxu0 0
    %1092 = vmatprep.subr.bf16.mxu0 0
    %1093 = vmatpush1.bf16.msra.mxu0 0
    %1094 = vmatprep.mubr.bf16.mxu0 0
    %1095 = vmatmul.mubr.bf16.gmra.mrb[0].mxu0 %v1060
    %v1096 = vpop.f32.mrb[0].mxu0
    %v1097 = vadd.f32 0.0, %v1096
    %v1098 = vpop.f32.mrb[0].mxu0
    %v1099 = vpop.f32.mrb[0].mxu0
    %v1100 = vpop.f32.mrb[0].mxu0
    %1101 = vdwg.mxu0
    %v1102 = vadd.f32 %v931, %v1097
    %1103 = vrot.lane.b32.xlu0 %v597, 32
    %v1104 = vpop.permute.xlu0 %1103
    %1105 = vrot.lane.b32.xlu0 %v598, 32
    %v1106 = vpop.permute.xlu0 %1105
    %v1108 = vsel %vm604, %v1104, 0
    %v1111 = vsel %vm604, %v1106, 0
    %1113 = vmatprep.subr.bf16.mxu0 0
    %1114 = vmatpush1.bf16.xpose.msra.mxu0 %v1111
    %1115 = vmatprep.subr.bf16.mxu0 0
    %1116 = vmatpush1.bf16.xpose.msra.mxu0 0
    %1117 = vmatprep.subr.bf16.mxu0 0
    %1118 = vmatpush1.bf16.xpose.msra.mxu0 0
    %1119 = vmatprep.subr.bf16.mxu0 0
    %1120 = vmatpush1.bf16.xpose.msra.mxu0 0
    %1121 = vmatprep.subr.bf16.mxu0 0
    %1122 = vmatpush1.bf16.xpose.msra.mxu0 0
    %1123 = vmatprep.subr.bf16.mxu0 0
    %1124 = vmatpush1.bf16.xpose.msra.mxu0 0
    %1125 = vmatprep.subr.bf16.mxu0 0
    %1126 = vmatpush1.bf16.xpose.msra.mxu0 0
    %1127 = vmatprep.subr.bf16.mxu0 0
    %1128 = vmatpush1.bf16.xpose.msra.mxu0 0
    %1129 = vmatprep.subr.bf16.mxu0 0
    %1130 = vmatpush1.bf16.xpose.msra.mxu0 0
    %1131 = vmatprep.subr.bf16.mxu0 0
    %1132 = vmatpush1.bf16.xpose.msra.mxu0 0
    %1133 = vmatprep.subr.bf16.mxu0 0
    %1134 = vmatpush1.bf16.xpose.msra.mxu0 0
    %1135 = vmatprep.subr.bf16.mxu0 0
    %1136 = vmatpush1.bf16.xpose.msra.mxu0 0
    %1137 = vmatprep.subr.bf16.mxu0 0
    %1138 = vmatpush1.bf16.xpose.msra.mxu0 0
    %1139 = vmatprep.subr.bf16.mxu0 0
    %1140 = vmatpush1.bf16.xpose.msra.mxu0 0
    %1141 = vmatprep.subr.bf16.mxu0 0
    %1142 = vmatpush1.bf16.xpose.msra.mxu0 0
    %1143 = vmatprep.subr.bf16.mxu0 0
    %1144 = vmatpush1.bf16.xpose.msra.mxu0 0
    %1145 = vmatprep.mubr.bf16.mxu0 0
    %1146 = vmatmul.mubr.bf16.gmra.mrb[0].mxu0 %v1108
    %v1147 = vpop.f32.mrb[0].mxu0
    %v1148 = vadd.f32 %v603, %v1147
    %v1149 = vpop.f32.mrb[0].mxu0
    %v1150 = vpop.f32.mrb[0].mxu0
    %v1151 = vpop.f32.mrb[0].mxu0
    %1152 = vdwg.mxu0
    %v1153 = vsel %vm651, %v1148, -inf
    %1154 = vmax.xlane.f32.xlu0 %v1153
    %v1155 = vpop.xlane.xlu0 %1154
    %v1156 = vsub.f32 %v1148, %v1155
    %v1157 = vmul.f32 %v1156, 1.442695
    %v1158 = vpow.pop %v1157
    %v1159 = vsel %vm651, %v1158, 0.0
    %1160 = vadd.xlane.f32.xlu0 %v1159
    %v1161 = vpop.xlane.xlu0 %1160
    %v1162 = vrcp.pop %v1161
    %v1163 = vmul.f32 %v1158, %v1162
    %v1164 = vpack.c.bf16 %v1163, %v1163
    %1165 = vrot.lane.b32.xlu0 %v599, 32
    %v1166 = vpop.permute.xlu0 %1165
    %v1168 = vsel %vm651, %v1164, 0
    %v1171 = vsel %vm667, %v1166, 0
    %1173 = vmatprep.subr.bf16.mxu0 0
    %1174 = vmatpush1.bf16.msra.mxu0 %v1171
    %1175 = vmatprep.subr.bf16.mxu0 0
    %1176 = vmatpush1.bf16.msra.mxu0 0
    %1177 = vmatprep.subr.bf16.mxu0 0
    %1178 = vmatpush1.bf16.msra.mxu0 0
    %1179 = vmatprep.subr.bf16.mxu0 0
    %1180 = vmatpush1.bf16.msra.mxu0 0
    %1181 = vmatprep.subr.bf16.mxu0 0
    %1182 = vmatpush1.bf16.msra.mxu0 0
    %1183 = vmatprep.subr.bf16.mxu0 0
    %1184 = vmatpush1.bf16.msra.mxu0 0
    %1185 = vmatprep.subr.bf16.mxu0 0
    %1186 = vmatpush1.bf16.msra.mxu0 0
    %1187 = vmatprep.subr.bf16.mxu0 0
    %1188 = vmatpush1.bf16.msra.mxu0 0
    %1189 = vmatprep.subr.bf16.mxu0 0
    %1190 = vmatpush1.bf16.msra.mxu0 0
    %1191 = vmatprep.subr.bf16.mxu0 0
    %1192 = vmatpush1.bf16.msra.mxu0 0
    %1193 = vmatprep.subr.bf16.mxu0 0
    %1194 = vmatpush1.bf16.msra.mxu0 0
    %1195 = vmatprep.subr.bf16.mxu0 0
    %1196 = vmatpush1.bf16.msra.mxu0 0
    %1197 = vmatprep.subr.bf16.mxu0 0
    %1198 = vmatpush1.bf16.msra.mxu0 0
    %1199 = vmatprep.subr.bf16.mxu0 0
    %1200 = vmatpush1.bf16.msra.mxu0 0
    %1201 = vmatprep.subr.bf16.mxu0 0
    %1202 = vmatpush1.bf16.msra.mxu0 0
    %1203 = vmatprep.subr.bf16.mxu0 0
    %1204 = vmatpush1.bf16.msra.mxu0 0
    %1205 = vmatprep.mubr.bf16.mxu0 0
    %1206 = vmatmul.mubr.bf16.gmra.mrb[0].mxu0 %v1168
    %v1207 = vpop.f32.mrb[0].mxu0
    %v1208 = vadd.f32 0.0, %v1207
    %v1209 = vpop.f32.mrb[0].mxu0
    %v1210 = vpop.f32.mrb[0].mxu0
    %v1211 = vpop.f32.mrb[0].mxu0
    %1212 = vdwg.mxu0
    %v1213 = vpack.c.bf16 %v1208, %v1208
    %v1218 = vunpack.c.l.b16 %v315
    %v1219 = vunpack.c.l.b16 %v316
    %v1220 = vunpack.c.l.b16 %v317
    %v1221 = vunpack.c.l.b16 %v318
    %v1222 = vpack.c.b16 %v1219, %v1218
    %v1223 = vpack.c.b16 %v1221, %v1220
    %v1227 = vsel %vm604, %v1213, 0
    %1229 = vmatprep.subr.bf16.mxu0 0
    %1230 = vmatpush1.bf16.msra.mxu0 %v1222
    %1231 = vmatprep.subr.bf16.mxu0 0
    %1232 = vmatpush1.bf16.msra.mxu0 %v1223
    %1233 = vmatprep.subr.bf16.mxu0 0
    %1234 = vmatpush1.bf16.msra.mxu0 0
    %1235 = vmatprep.subr.bf16.mxu0 0
    %1236 = vmatpush1.bf16.msra.mxu0 0
    %1237 = vmatprep.subr.bf16.mxu0 0
    %1238 = vmatpush1.bf16.msra.mxu0 0
    %1239 = vmatprep.subr.bf16.mxu0 0
    %1240 = vmatpush1.bf16.msra.mxu0 0
    %1241 = vmatprep.subr.bf16.mxu0 0
    %1242 = vmatpush1.bf16.msra.mxu0 0
    %1243 = vmatprep.subr.bf16.mxu0 0
    %1244 = vmatpush1.bf16.msra.mxu0 0
    %1245 = vmatprep.subr.bf16.mxu0 0
    %1246 = vmatpush1.bf16.msra.mxu0 0
    %1247 = vmatprep.subr.bf16.mxu0 0
    %1248 = vmatpush1.bf16.msra.mxu0 0
    %1249 = vmatprep.subr.bf16.mxu0 0
    %1250 = vmatpush1.bf16.msra.mxu0 0
    %1251 = vmatprep.subr.bf16.mxu0 0
    %1252 = vmatpush1.bf16.msra.mxu0 0
    %1253 = vmatprep.subr.bf16.mxu0 0
    %1254 = vmatpush1.bf16.msra.mxu0 0
    %1255 = vmatprep.subr.bf16.mxu0 0
    %1256 = vmatpush1.bf16.msra.mxu0 0
    %1257 = vmatprep.subr.bf16.mxu0 0
    %1258 = vmatpush1.bf16.msra.mxu0 0
    %1259 = vmatprep.subr.bf16.mxu0 0
    %1260 = vmatpush1.bf16.msra.mxu0 0
    %1261 = vmatprep.mubr.bf16.mxu0 0
    %1262 = vmatmul.mubr.bf16.gmra.mrb[0].mxu0 %v1227
    %v1263 = vpop.f32.mrb[0].mxu0
    %v1264 = vadd.f32 0.0, %v1263
    %v1265 = vpop.f32.mrb[0].mxu0
    %v1266 = vpop.f32.mrb[0].mxu0
    %v1267 = vpop.f32.mrb[0].mxu0
    %1268 = vdwg.mxu0
    %v1269 = vadd.f32 %v1102, %v1264
    %v1270 = vpack.c.bf16 %v552, %v552
    %v1271 = vpack.c.bf16 %v554, %v554
    %v1272 = vpack.c.bf16 %v594, %v594
    %v1273 = vlaneseq
    %v1274 = vshrl.u32 %v1273, 7
    %v1275 = vsub.s32 1, %v1274
    %v1276 = vrot.slane %v270, %v1275
    %v1278 = vsel %vm604, %v1270, 0
    %v1281 = vsel %vm604, %v1271, 0
    %1283 = vmatprep.subr.bf16.mxu0 0
    %1284 = vmatpush1.bf16.xpose.msra.mxu0 %v1281
    %1285 = vmatprep.subr.bf16.mxu0 0
    %1286 = vmatpush1.bf16.xpose.msra.mxu0 0
    %1287 = vmatprep.subr.bf16.mxu0 0
    %1288 = vmatpush1.bf16.xpose.msra.mxu0 0
    %1289 = vmatprep.subr.bf16.mxu0 0
    %1290 = vmatpush1.bf16.xpose.msra.mxu0 0
    %1291 = vmatprep.subr.bf16.mxu0 0
    %1292 = vmatpush1.bf16.xpose.msra.mxu0 0
    %1293 = vmatprep.subr.bf16.mxu0 0
    %1294 = vmatpush1.bf16.xpose.msra.mxu0 0
    %1295 = vmatprep.subr.bf16.mxu0 0
    %1296 = vmatpush1.bf16.xpose.msra.mxu0 0
    %1297 = vmatprep.subr.bf16.mxu0 0
    %1298 = vmatpush1.bf16.xpose.msra.mxu0 0
    %1299 = vmatprep.subr.bf16.mxu0 0
    %1300 = vmatpush1.bf16.xpose.msra.mxu0 0
    %1301 = vmatprep.subr.bf16.mxu0 0
    %1302 = vmatpush1.bf16.xpose.msra.mxu0 0
    %1303 = vmatprep.subr.bf16.mxu0 0
    %1304 = vmatpush1.bf16.xpose.msra.mxu0 0
    %1305 = vmatprep.subr.bf16.mxu0 0
    %1306 = vmatpush1.bf16.xpose.msra.mxu0 0
    %1307 = vmatprep.subr.bf16.mxu0 0
    %1308 = vmatpush1.bf16.xpose.msra.mxu0 0
    %1309 = vmatprep.subr.bf16.mxu0 0
    %1310 = vmatpush1.bf16.xpose.msra.mxu0 0
    %1311 = vmatprep.subr.bf16.mxu0 0
    %1312 = vmatpush1.bf16.xpose.msra.mxu0 0
    %1313 = vmatprep.subr.bf16.mxu0 0
    %1314 = vmatpush1.bf16.xpose.msra.mxu0 0
    %1315 = vmatprep.mubr.bf16.mxu0 0
    %1316 = vmatmul.mubr.bf16.gmra.mrb[0].mxu0 %v1278
    %v1317 = vpop.f32.mrb[0].mxu0
    %v1318 = vadd.f32 %v1276, %v1317
    %v1319 = vpop.f32.mrb[0].mxu0
    %v1320 = vpop.f32.mrb[0].mxu0
    %v1321 = vpop.f32.mrb[0].mxu0
    %1322 = vdwg.mxu0
    %v1323 = vsel %vm651, %v1318, -inf
    %1324 = vmax.xlane.f32.xlu0 %v1323
    %v1325 = vpop.xlane.xlu0 %1324
    %v1326 = vsub.f32 %v1318, %v1325
    %v1327 = vmul.f32 %v1326, 1.442695
    %v1328 = vpow.pop %v1327
    %v1329 = vsel %vm651, %v1328, 0.0
    %1330 = vadd.xlane.f32.xlu0 %v1329
    %v1331 = vpop.xlane.xlu0 %1330
    %v1332 = vrcp.pop %v1331
    %v1333 = vmul.f32 %v1328, %v1332
    %v1334 = vpack.c.bf16 %v1333, %v1333
    %v1336 = vsel %vm651, %v1334, 0
    %v1339 = vsel %vm667, %v1272, 0
    %1341 = vmatprep.subr.bf16.mxu0 0
    %1342 = vmatpush1.bf16.msra.mxu0 %v1339
    %1343 = vmatprep.subr.bf16.mxu0 0
    %1344 = vmatpush1.bf16.msra.mxu0 0
    %1345 = vmatprep.subr.bf16.mxu0 0
    %1346 = vmatpush1.bf16.msra.mxu0 0
    %1347 = vmatprep.subr.bf16.mxu0 0
    %1348 = vmatpush1.bf16.msra.mxu0 0
    %1349 = vmatprep.subr.bf16.mxu0 0
    %1350 = vmatpush1.bf16.msra.mxu0 0
    %1351 = vmatprep.subr.bf16.mxu0 0
    %1352 = vmatpush1.bf16.msra.mxu0 0
    %1353 = vmatprep.subr.bf16.mxu0 0
    %1354 = vmatpush1.bf16.msra.mxu0 0
    %1355 = vmatprep.subr.bf16.mxu0 0
    %1356 = vmatpush1.bf16.msra.mxu0 0
    %1357 = vmatprep.subr.bf16.mxu0 0
    %1358 = vmatpush1.bf16.msra.mxu0 0
    %1359 = vmatprep.subr.bf16.mxu0 0
    %1360 = vmatpush1.bf16.msra.mxu0 0
    %1361 = vmatprep.subr.bf16.mxu0 0
    %1362 = vmatpush1.bf16.msra.mxu0 0
    %1363 = vmatprep.subr.bf16.mxu0 0
    %1364 = vmatpush1.bf16.msra.mxu0 0
    %1365 = vmatprep.subr.bf16.mxu0 0
    %1366 = vmatpush1.bf16.msra.mxu0 0
    %1367 = vmatprep.subr.bf16.mxu0 0
    %1368 = vmatpush1.bf16.msra.mxu0 0
    %1369 = vmatprep.subr.bf16.mxu0 0
    %1370 = vmatpush1.bf16.msra.mxu0 0
    %1371 = vmatprep.subr.bf16.mxu0 0
    %1372 = vmatpush1.bf16.msra.mxu0 0
    %1373 = vmatprep.mubr.bf16.mxu0 0
    %1374 = vmatmul.mubr.bf16.gmra.mrb[0].mxu0 %v1336
    %v1375 = vpop.f32.mrb[0].mxu0
    %v1376 = vadd.f32 0.0, %v1375
    %v1377 = vpop.f32.mrb[0].mxu0
    %v1378 = vpop.f32.mrb[0].mxu0
    %v1379 = vpop.f32.mrb[0].mxu0
    %1380 = vdwg.mxu0
    %v1381 = vpack.c.bf16 %v1376, %v1376
    %1383 = vrot.lane.b32.xlu0 %v1270, 96
    %v1384 = vpop.permute.xlu0 %1383
    %1386 = vrot.lane.b32.xlu0 %v1271, 96
    %v1387 = vpop.permute.xlu0 %1386
    %v1389 = vsel %vm604, %v1384, 0
    %v1392 = vsel %vm604, %v1387, 0
    %1394 = vmatprep.subr.bf16.mxu0 0
    %1395 = vmatpush1.bf16.xpose.msra.mxu0 %v1392
    %1396 = vmatprep.subr.bf16.mxu0 0
    %1397 = vmatpush1.bf16.xpose.msra.mxu0 0
    %1398 = vmatprep.subr.bf16.mxu0 0
    %1399 = vmatpush1.bf16.xpose.msra.mxu0 0
    %1400 = vmatprep.subr.bf16.mxu0 0
    %1401 = vmatpush1.bf16.xpose.msra.mxu0 0
    %1402 = vmatprep.subr.bf16.mxu0 0
    %1403 = vmatpush1.bf16.xpose.msra.mxu0 0
    %1404 = vmatprep.subr.bf16.mxu0 0
    %1405 = vmatpush1.bf16.xpose.msra.mxu0 0
    %1406 = vmatprep.subr.bf16.mxu0 0
    %1407 = vmatpush1.bf16.xpose.msra.mxu0 0
    %1408 = vmatprep.subr.bf16.mxu0 0
    %1409 = vmatpush1.bf16.xpose.msra.mxu0 0
    %1410 = vmatprep.subr.bf16.mxu0 0
    %1411 = vmatpush1.bf16.xpose.msra.mxu0 0
    %1412 = vmatprep.subr.bf16.mxu0 0
    %1413 = vmatpush1.bf16.xpose.msra.mxu0 0
    %1414 = vmatprep.subr.bf16.mxu0 0
    %1415 = vmatpush1.bf16.xpose.msra.mxu0 0
    %1416 = vmatprep.subr.bf16.mxu0 0
    %1417 = vmatpush1.bf16.xpose.msra.mxu0 0
    %1418 = vmatprep.subr.bf16.mxu0 0
    %1419 = vmatpush1.bf16.xpose.msra.mxu0 0
    %1420 = vmatprep.subr.bf16.mxu0 0
    %1421 = vmatpush1.bf16.xpose.msra.mxu0 0
    %1422 = vmatprep.subr.bf16.mxu0 0
    %1423 = vmatpush1.bf16.xpose.msra.mxu0 0
    %1424 = vmatprep.subr.bf16.mxu0 0
    %1425 = vmatpush1.bf16.xpose.msra.mxu0 0
    %1426 = vmatprep.mubr.bf16.mxu0 0
    %1427 = vmatmul.mubr.bf16.gmra.mrb[0].mxu0 %v1389
    %v1428 = vpop.f32.mrb[0].mxu0
    %v1429 = vadd.f32 %v1276, %v1428
    %v1430 = vpop.f32.mrb[0].mxu0
    %v1431 = vpop.f32.mrb[0].mxu0
    %v1432 = vpop.f32.mrb[0].mxu0
    %1433 = vdwg.mxu0
    %v1434 = vsel %vm651, %v1429, -inf
    %1435 = vmax.xlane.f32.xlu0 %v1434
    %v1436 = vpop.xlane.xlu0 %1435
    %v1437 = vsub.f32 %v1429, %v1436
    %v1438 = vmul.f32 %v1437, 1.442695
    %v1439 = vpow.pop %v1438
    %v1440 = vsel %vm651, %v1439, 0.0
    %1441 = vadd.xlane.f32.xlu0 %v1440
    %v1442 = vpop.xlane.xlu0 %1441
    %v1443 = vrcp.pop %v1442
    %v1444 = vmul.f32 %v1439, %v1443
    %v1445 = vpack.c.bf16 %v1444, %v1444
    %1447 = vrot.lane.b32.xlu0 %v1272, 96
    %v1448 = vpop.permute.xlu0 %1447
    %v1450 = vsel %vm651, %v1445, 0
    %v1453 = vsel %vm667, %v1448, 0
    %1455 = vmatprep.subr.bf16.mxu0 0
    %1456 = vmatpush1.bf16.msra.mxu0 %v1453
    %1457 = vmatprep.subr.bf16.mxu0 0
    %1458 = vmatpush1.bf16.msra.mxu0 0
    %1459 = vmatprep.subr.bf16.mxu0 0
    %1460 = vmatpush1.bf16.msra.mxu0 0
    %1461 = vmatprep.subr.bf16.mxu0 0
    %1462 = vmatpush1.bf16.msra.mxu0 0
    %1463 = vmatprep.subr.bf16.mxu0 0
    %1464 = vmatpush1.bf16.msra.mxu0 0
    %1465 = vmatprep.subr.bf16.mxu0 0
    %1466 = vmatpush1.bf16.msra.mxu0 0
    %1467 = vmatprep.subr.bf16.mxu0 0
    %1468 = vmatpush1.bf16.msra.mxu0 0
    %1469 = vmatprep.subr.bf16.mxu0 0
    %1470 = vmatpush1.bf16.msra.mxu0 0
    %1471 = vmatprep.subr.bf16.mxu0 0
    %1472 = vmatpush1.bf16.msra.mxu0 0
    %1473 = vmatprep.subr.bf16.mxu0 0
    %1474 = vmatpush1.bf16.msra.mxu0 0
    %1475 = vmatprep.subr.bf16.mxu0 0
    %1476 = vmatpush1.bf16.msra.mxu0 0
    %1477 = vmatprep.subr.bf16.mxu0 0
    %1478 = vmatpush1.bf16.msra.mxu0 0
    %1479 = vmatprep.subr.bf16.mxu0 0
    %1480 = vmatpush1.bf16.msra.mxu0 0
    %1481 = vmatprep.subr.bf16.mxu0 0
    %1482 = vmatpush1.bf16.msra.mxu0 0
    %1483 = vmatprep.subr.bf16.mxu0 0
    %1484 = vmatpush1.bf16.msra.mxu0 0
    %1485 = vmatprep.subr.bf16.mxu0 0
    %1486 = vmatpush1.bf16.msra.mxu0 0
    %1487 = vmatprep.mubr.bf16.mxu0 0
    %1488 = vmatmul.mubr.bf16.gmra.mrb[0].mxu0 %v1450
    %v1489 = vpop.f32.mrb[0].mxu0
    %v1490 = vadd.f32 0.0, %v1489
    %v1491 = vpop.f32.mrb[0].mxu0
    %v1492 = vpop.f32.mrb[0].mxu0
    %v1493 = vpop.f32.mrb[0].mxu0
    %1494 = vdwg.mxu0
    %v1495 = vpack.c.bf16 %v1490, %v1490
    %v1497 = vsel %vm604, %v1495, 0
    %1499 = vmatprep.subr.bf16.mxu0 0
    %1500 = vmatpush1.bf16.msra.mxu0 %v834
    %1501 = vmatprep.subr.bf16.mxu0 0
    %1502 = vmatpush1.bf16.msra.mxu0 %v835
    %1503 = vmatprep.subr.bf16.mxu0 0
    %1504 = vmatpush1.bf16.msra.mxu0 0
    %1505 = vmatprep.subr.bf16.mxu0 0
    %1506 = vmatpush1.bf16.msra.mxu0 0
    %1507 = vmatprep.subr.bf16.mxu0 0
    %1508 = vmatpush1.bf16.msra.mxu0 0
    %1509 = vmatprep.subr.bf16.mxu0 0
    %1510 = vmatpush1.bf16.msra.mxu0 0
    %1511 = vmatprep.subr.bf16.mxu0 0
    %1512 = vmatpush1.bf16.msra.mxu0 0
    %1513 = vmatprep.subr.bf16.mxu0 0
    %1514 = vmatpush1.bf16.msra.mxu0 0
    %1515 = vmatprep.subr.bf16.mxu0 0
    %1516 = vmatpush1.bf16.msra.mxu0 0
    %1517 = vmatprep.subr.bf16.mxu0 0
    %1518 = vmatpush1.bf16.msra.mxu0 0
    %1519 = vmatprep.subr.bf16.mxu0 0
    %1520 = vmatpush1.bf16.msra.mxu0 0
    %1521 = vmatprep.subr.bf16.mxu0 0
    %1522 = vmatpush1.bf16.msra.mxu0 0
    %1523 = vmatprep.subr.bf16.mxu0 0
    %1524 = vmatpush1.bf16.msra.mxu0 0
    %1525 = vmatprep.subr.bf16.mxu0 0
    %1526 = vmatpush1.bf16.msra.mxu0 0
    %1527 = vmatprep.subr.bf16.mxu0 0
    %1528 = vmatpush1.bf16.msra.mxu0 0
    %1529 = vmatprep.subr.bf16.mxu0 0
    %1530 = vmatpush1.bf16.msra.mxu0 0
    %1531 = vmatprep.mubr.bf16.mxu0 0
    %1532 = vmatmul.mubr.bf16.gmra.mrb[0].mxu0 %v1497
    %v1533 = vpop.f32.mrb[0].mxu0
    %v1534 = vadd.f32 0.0, %v1533
    %v1535 = vpop.f32.mrb[0].mxu0
    %v1536 = vpop.f32.mrb[0].mxu0
    %v1537 = vpop.f32.mrb[0].mxu0
    %1538 = vdwg.mxu0
    %v1540 = vsel %vm604, %v1381, 0
    %1542 = vmatprep.subr.bf16.mxu0 0
    %1543 = vmatpush1.bf16.msra.mxu0 %v889
    %1544 = vmatprep.subr.bf16.mxu0 0
    %1545 = vmatpush1.bf16.msra.mxu0 %v890
    %1546 = vmatprep.subr.bf16.mxu0 0
    %1547 = vmatpush1.bf16.msra.mxu0 0
    %1548 = vmatprep.subr.bf16.mxu0 0
    %1549 = vmatpush1.bf16.msra.mxu0 0
    %1550 = vmatprep.subr.bf16.mxu0 0
    %1551 = vmatpush1.bf16.msra.mxu0 0
    %1552 = vmatprep.subr.bf16.mxu0 0
    %1553 = vmatpush1.bf16.msra.mxu0 0
    %1554 = vmatprep.subr.bf16.mxu0 0
    %1555 = vmatpush1.bf16.msra.mxu0 0
    %1556 = vmatprep.subr.bf16.mxu0 0
    %1557 = vmatpush1.bf16.msra.mxu0 0
    %1558 = vmatprep.subr.bf16.mxu0 0
    %1559 = vmatpush1.bf16.msra.mxu0 0
    %1560 = vmatprep.subr.bf16.mxu0 0
    %1561 = vmatpush1.bf16.msra.mxu0 0
    %1562 = vmatprep.subr.bf16.mxu0 0
    %1563 = vmatpush1.bf16.msra.mxu0 0
    %1564 = vmatprep.subr.bf16.mxu0 0
    %1565 = vmatpush1.bf16.msra.mxu0 0
    %1566 = vmatprep.subr.bf16.mxu0 0
    %1567 = vmatpush1.bf16.msra.mxu0 0
    %1568 = vmatprep.subr.bf16.mxu0 0
    %1569 = vmatpush1.bf16.msra.mxu0 0
    %1570 = vmatprep.subr.bf16.mxu0 0
    %1571 = vmatpush1.bf16.msra.mxu0 0
    %1572 = vmatprep.subr.bf16.mxu0 0
    %1573 = vmatpush1.bf16.msra.mxu0 0
    %1574 = vmatprep.mubr.bf16.mxu0 0
    %1575 = vmatmul.mubr.bf16.gmra.mrb[0].mxu0 %v1540
    %v1576 = vpop.f32.mrb[0].mxu0
    %v1577 = vadd.f32 %v1534, %v1576
    %v1578 = vpop.f32.mrb[0].mxu0
    %v1579 = vpop.f32.mrb[0].mxu0
    %v1580 = vpop.f32.mrb[0].mxu0
    %1581 = vdwg.mxu0
    %1582 = vrot.lane.b32.xlu0 %v1270, 64
    %v1583 = vpop.permute.xlu0 %1582
    %1584 = vrot.lane.b32.xlu0 %v1271, 64
    %v1585 = vpop.permute.xlu0 %1584
    %v1587 = vsel %vm604, %v1583, 0
    %v1590 = vsel %vm604, %v1585, 0
    %1592 = vmatprep.subr.bf16.mxu0 0
    %1593 = vmatpush1.bf16.xpose.msra.mxu0 %v1590
    %1594 = vmatprep.subr.bf16.mxu0 0
    %1595 = vmatpush1.bf16.xpose.msra.mxu0 0
    %1596 = vmatprep.subr.bf16.mxu0 0
    %1597 = vmatpush1.bf16.xpose.msra.mxu0 0
    %1598 = vmatprep.subr.bf16.mxu0 0
    %1599 = vmatpush1.bf16.xpose.msra.mxu0 0
    %1600 = vmatprep.subr.bf16.mxu0 0
    %1601 = vmatpush1.bf16.xpose.msra.mxu0 0
    %1602 = vmatprep.subr.bf16.mxu0 0
    %1603 = vmatpush1.bf16.xpose.msra.mxu0 0
    %1604 = vmatprep.subr.bf16.mxu0 0
    %1605 = vmatpush1.bf16.xpose.msra.mxu0 0
    %1606 = vmatprep.subr.bf16.mxu0 0
    %1607 = vmatpush1.bf16.xpose.msra.mxu0 0
    %1608 = vmatprep.subr.bf16.mxu0 0
    %1609 = vmatpush1.bf16.xpose.msra.mxu0 0
    %1610 = vmatprep.subr.bf16.mxu0 0
    %1611 = vmatpush1.bf16.xpose.msra.mxu0 0
    %1612 = vmatprep.subr.bf16.mxu0 0
    %1613 = vmatpush1.bf16.xpose.msra.mxu0 0
    %1614 = vmatprep.subr.bf16.mxu0 0
    %1615 = vmatpush1.bf16.xpose.msra.mxu0 0
    %1616 = vmatprep.subr.bf16.mxu0 0
    %1617 = vmatpush1.bf16.xpose.msra.mxu0 0
    %1618 = vmatprep.subr.bf16.mxu0 0
    %1619 = vmatpush1.bf16.xpose.msra.mxu0 0
    %1620 = vmatprep.subr.bf16.mxu0 0
    %1621 = vmatpush1.bf16.xpose.msra.mxu0 0
    %1622 = vmatprep.subr.bf16.mxu0 0
    %1623 = vmatpush1.bf16.xpose.msra.mxu0 0
    %1624 = vmatprep.mubr.bf16.mxu0 0
    %1625 = vmatmul.mubr.bf16.gmra.mrb[0].mxu0 %v1587
    %v1626 = vpop.f32.mrb[0].mxu0
    %v1627 = vadd.f32 %v1276, %v1626
    %v1628 = vpop.f32.mrb[0].mxu0
    %v1629 = vpop.f32.mrb[0].mxu0
    %v1630 = vpop.f32.mrb[0].mxu0
    %1631 = vdwg.mxu0
    %v1632 = vsel %vm651, %v1627, -inf
    %1633 = vmax.xlane.f32.xlu0 %v1632
    %v1634 = vpop.xlane.xlu0 %1633
    %v1635 = vsub.f32 %v1627, %v1634
    %v1636 = vmul.f32 %v1635, 1.442695
    %v1637 = vpow.pop %v1636
    %v1638 = vsel %vm651, %v1637, 0.0
    %1639 = vadd.xlane.f32.xlu0 %v1638
    %v1640 = vpop.xlane.xlu0 %1639
    %v1641 = vrcp.pop %v1640
    %v1642 = vmul.f32 %v1637, %v1641
    %v1643 = vpack.c.bf16 %v1642, %v1642
    %1644 = vrot.lane.b32.xlu0 %v1272, 64
    %v1645 = vpop.permute.xlu0 %1644
    %v1647 = vsel %vm651, %v1643, 0
    %v1650 = vsel %vm667, %v1645, 0
    %1652 = vmatprep.subr.bf16.mxu0 0
    %1653 = vmatpush1.bf16.msra.mxu0 %v1650
    %1654 = vmatprep.subr.bf16.mxu0 0
    %1655 = vmatpush1.bf16.msra.mxu0 0
    %1656 = vmatprep.subr.bf16.mxu0 0
    %1657 = vmatpush1.bf16.msra.mxu0 0
    %1658 = vmatprep.subr.bf16.mxu0 0
    %1659 = vmatpush1.bf16.msra.mxu0 0
    %1660 = vmatprep.subr.bf16.mxu0 0
    %1661 = vmatpush1.bf16.msra.mxu0 0
    %1662 = vmatprep.subr.bf16.mxu0 0
    %1663 = vmatpush1.bf16.msra.mxu0 0
    %1664 = vmatprep.subr.bf16.mxu0 0
    %1665 = vmatpush1.bf16.msra.mxu0 0
    %1666 = vmatprep.subr.bf16.mxu0 0
    %1667 = vmatpush1.bf16.msra.mxu0 0
    %1668 = vmatprep.subr.bf16.mxu0 0
    %1669 = vmatpush1.bf16.msra.mxu0 0
    %1670 = vmatprep.subr.bf16.mxu0 0
    %1671 = vmatpush1.bf16.msra.mxu0 0
    %1672 = vmatprep.subr.bf16.mxu0 0
    %1673 = vmatpush1.bf16.msra.mxu0 0
    %1674 = vmatprep.subr.bf16.mxu0 0
    %1675 = vmatpush1.bf16.msra.mxu0 0
    %1676 = vmatprep.subr.bf16.mxu0 0
    %1677 = vmatpush1.bf16.msra.mxu0 0
    %1678 = vmatprep.subr.bf16.mxu0 0
    %1679 = vmatpush1.bf16.msra.mxu0 0
    %1680 = vmatprep.subr.bf16.mxu0 0
    %1681 = vmatpush1.bf16.msra.mxu0 0
    %1682 = vmatprep.subr.bf16.mxu0 0
    %1683 = vmatpush1.bf16.msra.mxu0 0
    %1684 = vmatprep.mubr.bf16.mxu0 0
    %1685 = vmatmul.mubr.bf16.gmra.mrb[0].mxu0 %v1647
    %v1686 = vpop.f32.mrb[0].mxu0
    %v1687 = vadd.f32 0.0, %v1686
    %v1688 = vpop.f32.mrb[0].mxu0
    %v1689 = vpop.f32.mrb[0].mxu0
    %v1690 = vpop.f32.mrb[0].mxu0
    %1691 = vdwg.mxu0
    %v1692 = vpack.c.bf16 %v1687, %v1687
    %v1694 = vsel %vm604, %v1692, 0
    %1696 = vmatprep.subr.bf16.mxu0 0
    %1697 = vmatpush1.bf16.msra.mxu0 %v1055
    %1698 = vmatprep.subr.bf16.mxu0 0
    %1699 = vmatpush1.bf16.msra.mxu0 %v1056
    %1700 = vmatprep.subr.bf16.mxu0 0
    %1701 = vmatpush1.bf16.msra.mxu0 0
    %1702 = vmatprep.subr.bf16.mxu0 0
    %1703 = vmatpush1.bf16.msra.mxu0 0
    %1704 = vmatprep.subr.bf16.mxu0 0
    %1705 = vmatpush1.bf16.msra.mxu0 0
    %1706 = vmatprep.subr.bf16.mxu0 0
    %1707 = vmatpush1.bf16.msra.mxu0 0
    %1708 = vmatprep.subr.bf16.mxu0 0
    %1709 = vmatpush1.bf16.msra.mxu0 0
    %1710 = vmatprep.subr.bf16.mxu0 0
    %1711 = vmatpush1.bf16.msra.mxu0 0
    %1712 = vmatprep.subr.bf16.mxu0 0
    %1713 = vmatpush1.bf16.msra.mxu0 0
    %1714 = vmatprep.subr.bf16.mxu0 0
    %1715 = vmatpush1.bf16.msra.mxu0 0
    %1716 = vmatprep.subr.bf16.mxu0 0
    %1717 = vmatpush1.bf16.msra.mxu0 0
    %1718 = vmatprep.subr.bf16.mxu0 0
    %1719 = vmatpush1.bf16.msra.mxu0 0
    %1720 = vmatprep.subr.bf16.mxu0 0
    %1721 = vmatpush1.bf16.msra.mxu0 0
    %1722 = vmatprep.subr.bf16.mxu0 0
    %1723 = vmatpush1.bf16.msra.mxu0 0
    %1724 = vmatprep.subr.bf16.mxu0 0
    %1725 = vmatpush1.bf16.msra.mxu0 0
    %1726 = vmatprep.subr.bf16.mxu0 0
    %1727 = vmatpush1.bf16.msra.mxu0 0
    %1728 = vmatprep.mubr.bf16.mxu0 0
    %1729 = vmatmul.mubr.bf16.gmra.mrb[0].mxu0 %v1694
    %v1730 = vpop.f32.mrb[0].mxu0
    %v1731 = vadd.f32 0.0, %v1730
    %v1732 = vpop.f32.mrb[0].mxu0
    %v1733 = vpop.f32.mrb[0].mxu0
    %v1734 = vpop.f32.mrb[0].mxu0
    %1735 = vdwg.mxu0
    %v1736 = vadd.f32 %v1577, %v1731
    %1737 = vrot.lane.b32.xlu0 %v1270, 32
    %v1738 = vpop.permute.xlu0 %1737
    %1739 = vrot.lane.b32.xlu0 %v1271, 32
    %v1740 = vpop.permute.xlu0 %1739
    %v1742 = vsel %vm604, %v1738, 0
    %v1745 = vsel %vm604, %v1740, 0
    %1747 = vmatprep.subr.bf16.mxu0 0
    %1748 = vmatpush1.bf16.xpose.msra.mxu0 %v1745
    %1749 = vmatprep.subr.bf16.mxu0 0
    %1750 = vmatpush1.bf16.xpose.msra.mxu0 0
    %1751 = vmatprep.subr.bf16.mxu0 0
    %1752 = vmatpush1.bf16.xpose.msra.mxu0 0
    %1753 = vmatprep.subr.bf16.mxu0 0
    %1754 = vmatpush1.bf16.xpose.msra.mxu0 0
    %1755 = vmatprep.subr.bf16.mxu0 0
    %1756 = vmatpush1.bf16.xpose.msra.mxu0 0
    %1757 = vmatprep.subr.bf16.mxu0 0
    %1758 = vmatpush1.bf16.xpose.msra.mxu0 0
    %1759 = vmatprep.subr.bf16.mxu0 0
    %1760 = vmatpush1.bf16.xpose.msra.mxu0 0
    %1761 = vmatprep.subr.bf16.mxu0 0
    %1762 = vmatpush1.bf16.xpose.msra.mxu0 0
    %1763 = vmatprep.subr.bf16.mxu0 0
    %1764 = vmatpush1.bf16.xpose.msra.mxu0 0
    %1765 = vmatprep.subr.bf16.mxu0 0
    %1766 = vmatpush1.bf16.xpose.msra.mxu0 0
    %1767 = vmatprep.subr.bf16.mxu0 0
    %1768 = vmatpush1.bf16.xpose.msra.mxu0 0
    %1769 = vmatprep.subr.bf16.mxu0 0
    %1770 = vmatpush1.bf16.xpose.msra.mxu0 0
    %1771 = vmatprep.subr.bf16.mxu0 0
    %1772 = vmatpush1.bf16.xpose.msra.mxu0 0
    %1773 = vmatprep.subr.bf16.mxu0 0
    %1774 = vmatpush1.bf16.xpose.msra.mxu0 0
    %1775 = vmatprep.subr.bf16.mxu0 0
    %1776 = vmatpush1.bf16.xpose.msra.mxu0 0
    %1777 = vmatprep.subr.bf16.mxu0 0
    %1778 = vmatpush1.bf16.xpose.msra.mxu0 0
    %1779 = vmatprep.mubr.bf16.mxu0 0
    %1780 = vmatmul.mubr.bf16.gmra.mrb[0].mxu0 %v1742
    %v1781 = vpop.f32.mrb[0].mxu0
    %v1782 = vadd.f32 %v1276, %v1781
    %v1783 = vpop.f32.mrb[0].mxu0
    %v1784 = vpop.f32.mrb[0].mxu0
    %v1785 = vpop.f32.mrb[0].mxu0
    %1786 = vdwg.mxu0
    %v1787 = vsel %vm651, %v1782, -inf
    %1788 = vmax.xlane.f32.xlu0 %v1787
    %v1789 = vpop.xlane.xlu0 %1788
    %v1790 = vsub.f32 %v1782, %v1789
    %v1791 = vmul.f32 %v1790, 1.442695
    %v1792 = vpow.pop %v1791
    %v1793 = vsel %vm651, %v1792, 0.0
    %1794 = vadd.xlane.f32.xlu0 %v1793
    %v1795 = vpop.xlane.xlu0 %1794
    %v1796 = vrcp.pop %v1795
    %v1797 = vmul.f32 %v1792, %v1796
    %v1798 = vpack.c.bf16 %v1797, %v1797
    %1799 = vrot.lane.b32.xlu0 %v1272, 32
    %v1800 = vpop.permute.xlu0 %1799
    %v1802 = vsel %vm651, %v1798, 0
    %v1805 = vsel %vm667, %v1800, 0
    %1807 = vmatprep.subr.bf16.mxu0 0
    %1808 = vmatpush1.bf16.msra.mxu0 %v1805
    %1809 = vmatprep.subr.bf16.mxu0 0
    %1810 = vmatpush1.bf16.msra.mxu0 0
    %1811 = vmatprep.subr.bf16.mxu0 0
    %1812 = vmatpush1.bf16.msra.mxu0 0
    %1813 = vmatprep.subr.bf16.mxu0 0
    %1814 = vmatpush1.bf16.msra.mxu0 0
    %1815 = vmatprep.subr.bf16.mxu0 0
    %1816 = vmatpush1.bf16.msra.mxu0 0
    %1817 = vmatprep.subr.bf16.mxu0 0
    %1818 = vmatpush1.bf16.msra.mxu0 0
    %1819 = vmatprep.subr.bf16.mxu0 0
    %1820 = vmatpush1.bf16.msra.mxu0 0
    %1821 = vmatprep.subr.bf16.mxu0 0
    %1822 = vmatpush1.bf16.msra.mxu0 0
    %1823 = vmatprep.subr.bf16.mxu0 0
    %1824 = vmatpush1.bf16.msra.mxu0 0
    %1825 = vmatprep.subr.bf16.mxu0 0
    %1826 = vmatpush1.bf16.msra.mxu0 0
    %1827 = vmatprep.subr.bf16.mxu0 0
    %1828 = vmatpush1.bf16.msra.mxu0 0
    %1829 = vmatprep.subr.bf16.mxu0 0
    %1830 = vmatpush1.bf16.msra.mxu0 0
    %1831 = vmatprep.subr.bf16.mxu0 0
    %1832 = vmatpush1.bf16.msra.mxu0 0
    %1833 = vmatprep.subr.bf16.mxu0 0
    %1834 = vmatpush1.bf16.msra.mxu0 0
    %1835 = vmatprep.subr.bf16.mxu0 0
    %1836 = vmatpush1.bf16.msra.mxu0 0
    %1837 = vmatprep.subr.bf16.mxu0 0
    %1838 = vmatpush1.bf16.msra.mxu0 0
    %1839 = vmatprep.mubr.bf16.mxu0 0
    %1840 = vmatmul.mubr.bf16.gmra.mrb[0].mxu0 %v1802
    %v1841 = vpop.f32.mrb[0].mxu0
    %v1842 = vadd.f32 0.0, %v1841
    %v1843 = vpop.f32.mrb[0].mxu0
    %v1844 = vpop.f32.mrb[0].mxu0
    %v1845 = vpop.f32.mrb[0].mxu0
    %1846 = vdwg.mxu0
    %v1847 = vpack.c.bf16 %v1842, %v1842
    %v1849 = vsel %vm604, %v1847, 0
    %1851 = vmatprep.subr.bf16.mxu0 0
    %1852 = vmatpush1.bf16.msra.mxu0 %v1222
    %1853 = vmatprep.subr.bf16.mxu0 0
    %1854 = vmatpush1.bf16.msra.mxu0 %v1223
    %1855 = vmatprep.subr.bf16.mxu0 0
    %1856 = vmatpush1.bf16.msra.mxu0 0
    %1857 = vmatprep.subr.bf16.mxu0 0
    %1858 = vmatpush1.bf16.msra.mxu0 0
    %1859 = vmatprep.subr.bf16.mxu0 0
    %1860 = vmatpush1.bf16.msra.mxu0 0
    %1861 = vmatprep.subr.bf16.mxu0 0
    %1862 = vmatpush1.bf16.msra.mxu0 0
    %1863 = vmatprep.subr.bf16.mxu0 0
    %1864 = vmatpush1.bf16.msra.mxu0 0
    %1865 = vmatprep.subr.bf16.mxu0 0
    %1866 = vmatpush1.bf16.msra.mxu0 0
    %1867 = vmatprep.subr.bf16.mxu0 0
    %1868 = vmatpush1.bf16.msra.mxu0 0
    %1869 = vmatprep.subr.bf16.mxu0 0
    %1870 = vmatpush1.bf16.msra.mxu0 0
    %1871 = vmatprep.subr.bf16.mxu0 0
    %1872 = vmatpush1.bf16.msra.mxu0 0
    %1873 = vmatprep.subr.bf16.mxu0 0
    %1874 = vmatpush1.bf16.msra.mxu0 0
    %1875 = vmatprep.subr.bf16.mxu0 0
    %1876 = vmatpush1.bf16.msra.mxu0 0
    %1877 = vmatprep.subr.bf16.mxu0 0
    %1878 = vmatpush1.bf16.msra.mxu0 0
    %1879 = vmatprep.subr.bf16.mxu0 0
    %1880 = vmatpush1.bf16.msra.mxu0 0
    %1881 = vmatprep.subr.bf16.mxu0 0
    %1882 = vmatpush1.bf16.msra.mxu0 0
    %1883 = vmatprep.mubr.bf16.mxu0 0
    %1884 = vmatmul.mubr.bf16.gmra.mrb[0].mxu0 %v1849
    %v1885 = vpop.f32.mrb[0].mxu0
    %v1886 = vadd.f32 0.0, %v1885
    %v1887 = vpop.f32.mrb[0].mxu0
    %v1888 = vpop.f32.mrb[0].mxu0
    %v1889 = vpop.f32.mrb[0].mxu0
    %1890 = vdwg.mxu0
    %v1891 = vadd.f32 %v1736, %v1886
    %v1892 = vld [vmem:[%s11] sm:$0x1]
    %v1894 = vlaneseq
    %v1895 = vshrl.u32 %v1894, 7
    %v1896 = vsub.s32 0, %v1895
    %v1897 = vrot.slane %v1892, %v1896
    %v1899 = vadd.f32 %v1269, %v1897
    %v1900 = vadd.f32 %v1891, %v1897
    %v1901 = vadd.f32 %v266, %v1899
    %v1902 = vadd.f32 %v267, %v1900
    %v1903 = vld [vmem:[%s12] sm:$0x1]
    %v1904 = vld [vmem:[%s13] sm:$0x1]
    %1905 = vadd.xlane.f32.xlu0 %v1901
    %v1906 = vpop.xlane.xlu0 %1905
    %1907 = vadd.xlane.f32.xlu0 %v1902
    %v1908 = vpop.xlane.xlu0 %1907
    %v1909 = vmul.f32 %v1906, %v233
    %v1910 = vmul.f32 %v1908, %v233
    %v1911 = vsub.f32 %v1901, %v1909
    %v1912 = vsub.f32 %v1902, %v1910
    %v1913 = vmul.f32 %v1911, %v1911
    %v1914 = vmul.f32 %v1912, %v1912
    %1915 = vadd.xlane.f32.xlu0 %v1913
    %v1916 = vpop.xlane.xlu0 %1915
    %1917 = vadd.xlane.f32.xlu0 %v1914
    %v1918 = vpop.xlane.xlu0 %1917
    %v1919 = vmul.f32 %v1916, %v233
    %v1920 = vmul.f32 %v1918, %v233
    %v1921 = vadd.f32 %v1919, 1e-05
    %v1922 = vadd.f32 %v1920, 1e-05
    %v1923 = vrsqrt.pop %v1921
    %v1924 = vrsqrt.pop %v1922
    %v1925 = vmul.f32 %v1911, %v1923
    %v1926 = vmul.f32 %v1912, %v1924
    %v1928 = vlaneseq
    %v1929 = vshrl.u32 %v1928, 7
    %v1930 = vsub.s32 0, %v1929
    %v1931 = vrot.slane %v1903, %v1930
    %v1933 = vmul.f32 %v1925, %v1931
    %v1934 = vmul.f32 %v1926, %v1931
    %v1936 = vlaneseq
    %v1937 = vshrl.u32 %v1936, 7
    %v1938 = vsub.s32 0, %v1937
    %v1939 = vrot.slane %v1904, %v1938
    %v1941 = vadd.f32 %v1933, %v1939
    %v1942 = vadd.f32 %v1934, %v1939
    %v1943 = vpack.c.bf16 %v1942, %v1941
    %v1944 = vld [vmem:[%s15] sm:$0x3]
    %v1946 = vlaneseq
    %v1947 = vshrl.u32 %v1946, 7
    %v1948 = vsub.s32 0, %v1947
    %v1949 = vrot.slane %v1944, %v1948
    %v1950 = vlaneseq
    %v1951 = vshrl.u32 %v1950, 7
    %v1952 = vsub.s32 1, %v1951
    %v1953 = vrot.slane %v1944, %v1952
    %v1972 = vunpack.c.l.b16 %v319
    %v1973 = vunpack.c.h.b16 %v319
    %v1974 = vunpack.c.l.b16 %v320
    %v1975 = vunpack.c.h.b16 %v320
    %v1976 = vunpack.c.l.b16 %v321
    %v1977 = vunpack.c.h.b16 %v321
    %v1978 = vunpack.c.l.b16 %v322
    %v1979 = vunpack.c.h.b16 %v322
    %v1980 = vunpack.c.l.b16 %v323
    %v1981 = vunpack.c.h.b16 %v323
    %v1982 = vunpack.c.l.b16 %v324
    %v1983 = vunpack.c.h.b16 %v324
    %v1984 = vunpack.c.l.b16 %v325
    %v1985 = vunpack.c.h.b16 %v325
    %v1986 = vunpack.c.l.b16 %v326
    %v1987 = vunpack.c.h.b16 %v326
    %v1988 = vunpack.c.l.b16 %v327
    %v1989 = vunpack.c.h.b16 %v327
    %v1990 = vunpack.c.l.b16 %v328
    %v1991 = vunpack.c.h.b16 %v328
    %v1992 = vunpack.c.l.b16 %v329
    %v1993 = vunpack.c.h.b16 %v329
    %v1994 = vunpack.c.l.b16 %v330
    %v1995 = vunpack.c.h.b16 %v330
    %v1996 = vunpack.c.l.b16 %v331
    %v1997 = vunpack.c.h.b16 %v331
    %v1998 = vunpack.c.l.b16 %v332
    %v1999 = vunpack.c.h.b16 %v332
    %v2000 = vunpack.c.l.b16 %v333
    %v2001 = vunpack.c.h.b16 %v333
    %v2002 = vunpack.c.l.b16 %v334
    %v2003 = vunpack.c.h.b16 %v334
    %v2004 = vpack.c.b16 %v1974, %v1972
    %v2005 = vpack.c.b16 %v1975, %v1973
    %v2006 = vpack.c.b16 %v1978, %v1976
    %v2007 = vpack.c.b16 %v1979, %v1977
    %v2008 = vpack.c.b16 %v1982, %v1980
    %v2009 = vpack.c.b16 %v1983, %v1981
    %v2010 = vpack.c.b16 %v1986, %v1984
    %v2011 = vpack.c.b16 %v1987, %v1985
    %v2012 = vpack.c.b16 %v1990, %v1988
    %v2013 = vpack.c.b16 %v1991, %v1989
    %v2014 = vpack.c.b16 %v1994, %v1992
    %v2015 = vpack.c.b16 %v1995, %v1993
    %v2016 = vpack.c.b16 %v1998, %v1996
    %v2017 = vpack.c.b16 %v1999, %v1997
    %v2018 = vpack.c.b16 %v2002, %v2000
    %v2019 = vpack.c.b16 %v2003, %v2001
    %2036 = vmatprep.subr.bf16.mxu0 %v2005
    %2037 = vmatpush1.bf16.msra.mxu0 %v2004
    %2038 = vmatprep.subr.bf16.mxu0 %v2007
    %2039 = vmatpush1.bf16.msra.mxu0 %v2006
    %2040 = vmatprep.subr.bf16.mxu0 %v2009
    %2041 = vmatpush1.bf16.msra.mxu0 %v2008
    %2042 = vmatprep.subr.bf16.mxu0 %v2011
    %2043 = vmatpush1.bf16.msra.mxu0 %v2010
    %2044 = vmatprep.subr.bf16.mxu0 %v2013
    %2045 = vmatpush1.bf16.msra.mxu0 %v2012
    %2046 = vmatprep.subr.bf16.mxu0 %v2015
    %2047 = vmatpush1.bf16.msra.mxu0 %v2014
    %2048 = vmatprep.subr.bf16.mxu0 %v2017
    %2049 = vmatpush1.bf16.msra.mxu0 %v2016
    %2050 = vmatprep.subr.bf16.mxu0 %v2019
    %2051 = vmatpush1.bf16.msra.mxu0 %v2018
    %2052 = vmatprep.subr.bf16.mxu0 0
    %2053 = vmatpush1.bf16.msra.mxu0 0
    %2054 = vmatprep.subr.bf16.mxu0 0
    %2055 = vmatpush1.bf16.msra.mxu0 0
    %2056 = vmatprep.subr.bf16.mxu0 0
    %2057 = vmatpush1.bf16.msra.mxu0 0
    %2058 = vmatprep.subr.bf16.mxu0 0
    %2059 = vmatpush1.bf16.msra.mxu0 0
    %2060 = vmatprep.subr.bf16.mxu0 0
    %2061 = vmatpush1.bf16.msra.mxu0 0
    %2062 = vmatprep.subr.bf16.mxu0 0
    %2063 = vmatpush1.bf16.msra.mxu0 0
    %2064 = vmatprep.subr.bf16.mxu0 0
    %2065 = vmatpush1.bf16.msra.mxu0 0
    %2066 = vmatprep.subr.bf16.mxu0 0
    %2067 = vmatpush1.bf16.msra.mxu0 0
    %2068 = vmatprep.mubr.bf16.mxu0 0
    %2069 = vmatmul.mubr.bf16.gmra.mrb[0].mxu0 %v1943
    %v2070 = vpop.f32.mrb[0].mxu0
    %v2071 = vadd.f32 %v1949, %v2070
    %v2072 = vpop.f32.mrb[0].mxu0
    %v2073 = vadd.f32 %v1953, %v2072
    %v2074 = vpop.f32.mrb[0].mxu0
    %v2075 = vadd.f32 %v1949, %v2074
    %v2076 = vpop.f32.mrb[0].mxu0
    %v2077 = vadd.f32 %v1953, %v2076
    %2078 = vdwg.mxu0
    %v2079 = vmul.f32 %v2071, 0.5
    %v2080 = vmul.f32 %v2073, 0.5
    %v2081 = vmul.f32 %v2075, 0.5
    %v2082 = vmul.f32 %v2077, 0.5
    %v2083 = vmul.f32 %v2071, 0.044715
    %v2084 = vmul.f32 %v2073, 0.044715
    %v2085 = vmul.f32 %v2075, 0.044715
    %v2086 = vmul.f32 %v2077, 0.044715
    %v2087 = vmul.f32 %v2083, %v2071
    %v2088 = vmul.f32 %v2084, %v2073
    %v2089 = vmul.f32 %v2085, %v2075
    %v2090 = vmul.f32 %v2086, %v2077
    %v2091 = vmul.f32 %v2087, %v2071
    %v2092 = vmul.f32 %v2088, %v2073
    %v2093 = vmul.f32 %v2089, %v2075
    %v2094 = vmul.f32 %v2090, %v2077
    %v2095 = vadd.f32 %v2071, %v2091
    %v2096 = vadd.f32 %v2073, %v2092
    %v2097 = vadd.f32 %v2075, %v2093
    %v2098 = vadd.f32 %v2077, %v2094
    %v2099 = vmul.f32 %v2095, 0.7978846
    %v2100 = vmul.f32 %v2096, 0.7978846
    %v2101 = vmul.f32 %v2097, 0.7978846
    %v2102 = vmul.f32 %v2098, 0.7978846
    %v2103 = vtanh.pop %v2099
    %v2104 = vtanh.pop %v2100
    %v2105 = vtanh.pop %v2101
    %v2106 = vtanh.pop %v2102
    %v2107 = vadd.f32 %v2103, 1.0
    %v2108 = vadd.f32 %v2104, 1.0
    %v2109 = vadd.f32 %v2105, 1.0
    %v2110 = vadd.f32 %v2106, 1.0
    %v2111 = vmul.f32 %v2079, %v2107
    %v2112 = vmul.f32 %v2080, %v2108
    %v2113 = vmul.f32 %v2081, %v2109
    %v2114 = vmul.f32 %v2082, %v2110
    %v2115 = vpack.c.bf16 %v2113, %v2111
    %v2116 = vpack.c.bf16 %v2114, %v2112
    %v2117 = vld [vmem:[%s17] sm:$0x1]
    %v2119 = vlaneseq
    %v2120 = vshrl.u32 %v2119, 7
    %v2121 = vsub.s32 0, %v2120
    %v2122 = vrot.slane %v2117, %v2121
    %v2156 = vunpack.c.l.b16 %v335
    %v2157 = vunpack.c.l.b16 %v336
    %v2158 = vunpack.c.l.b16 %v337
    %v2159 = vunpack.c.l.b16 %v338
    %v2160 = vunpack.c.l.b16 %v339
    %v2161 = vunpack.c.l.b16 %v340
    %v2162 = vunpack.c.l.b16 %v341
    %v2163 = vunpack.c.l.b16 %v342
    %v2164 = vunpack.c.l.b16 %v343
    %v2165 = vunpack.c.l.b16 %v344
    %v2166 = vunpack.c.l.b16 %v345
    %v2167 = vunpack.c.l.b16 %v346
    %v2168 = vunpack.c.l.b16 %v347
    %v2169 = vunpack.c.l.b16 %v348
    %v2170 = vunpack.c.l.b16 %v349
    %v2171 = vunpack.c.l.b16 %v350
    %v2172 = vunpack.c.l.b16 %v351
    %v2173 = vunpack.c.l.b16 %v352
    %v2174 = vunpack.c.l.b16 %v353
    %v2175 = vunpack.c.l.b16 %v354
    %v2176 = vunpack.c.l.b16 %v355
    %v2177 = vunpack.c.l.b16 %v356
    %v2178 = vunpack.c.l.b16 %v357
    %v2179 = vunpack.c.l.b16 %v358
    %v2180 = vunpack.c.l.b16 %v359
    %v2181 = vunpack.c.l.b16 %v360
    %v2182 = vunpack.c.l.b16 %v361
    %v2183 = vunpack.c.l.b16 %v362
    %v2184 = vunpack.c.l.b16 %v363
    %v2185 = vunpack.c.l.b16 %v364
    %v2186 = vunpack.c.l.b16 %v365
    %v2187 = vunpack.c.l.b16 %v366
    %v2188 = vpack.c.b16 %v2157, %v2156
    %v2189 = vpack.c.b16 %v2159, %v2158
    %v2190 = vpack.c.b16 %v2161, %v2160
    %v2191 = vpack.c.b16 %v2163, %v2162
    %v2192 = vpack.c.b16 %v2165, %v2164
    %v2193 = vpack.c.b16 %v2167, %v2166
    %v2194 = vpack.c.b16 %v2169, %v2168
    %v2195 = vpack.c.b16 %v2171, %v2170
    %v2196 = vpack.c.b16 %v2173, %v2172
    %v2197 = vpack.c.b16 %v2175, %v2174
    %v2198 = vpack.c.b16 %v2177, %v2176
    %v2199 = vpack.c.b16 %v2179, %v2178
    %v2200 = vpack.c.b16 %v2181, %v2180
    %v2201 = vpack.c.b16 %v2183, %v2182
    %v2202 = vpack.c.b16 %v2185, %v2184
    %v2203 = vpack.c.b16 %v2187, %v2186
    %2220 = vmatprep.subr.bf16.mxu0 0
    %2221 = vmatpush1.bf16.msra.mxu0 %v2188
    %2222 = vmatprep.subr.bf16.mxu0 0
    %2223 = vmatpush1.bf16.msra.mxu0 %v2189
    %2224 = vmatprep.subr.bf16.mxu0 0
    %2225 = vmatpush1.bf16.msra.mxu0 %v2190
    %2226 = vmatprep.subr.bf16.mxu0 0
    %2227 = vmatpush1.bf16.msra.mxu0 %v2191
    %2228 = vmatprep.subr.bf16.mxu0 0
    %2229 = vmatpush1.bf16.msra.mxu0 %v2192
    %2230 = vmatprep.subr.bf16.mxu0 0
    %2231 = vmatpush1.bf16.msra.mxu0 %v2193
    %2232 = vmatprep.subr.bf16.mxu0 0
    %2233 = vmatpush1.bf16.msra.mxu0 %v2194
    %2234 = vmatprep.subr.bf16.mxu0 0
    %2235 = vmatpush1.bf16.msra.mxu0 %v2195
    %2236 = vmatprep.subr.bf16.mxu0 0
    %2237 = vmatpush1.bf16.msra.mxu0 %v2196
    %2238 = vmatprep.subr.bf16.mxu0 0
    %2239 = vmatpush1.bf16.msra.mxu0 %v2197
    %2240 = vmatprep.subr.bf16.mxu0 0
    %2241 = vmatpush1.bf16.msra.mxu0 %v2198
    %2242 = vmatprep.subr.bf16.mxu0 0
    %2243 = vmatpush1.bf16.msra.mxu0 %v2199
    %2244 = vmatprep.subr.bf16.mxu0 0
    %2245 = vmatpush1.bf16.msra.mxu0 %v2200
    %2246 = vmatprep.subr.bf16.mxu0 0
    %2247 = vmatpush1.bf16.msra.mxu0 %v2201
    %2248 = vmatprep.subr.bf16.mxu0 0
    %2249 = vmatpush1.bf16.msra.mxu0 %v2202
    %2250 = vmatprep.subr.bf16.mxu0 0
    %2251 = vmatpush1.bf16.msra.mxu0 %v2203
    %2252 = vmatprep.mubr.bf16.mxu0 %v2116
    %2253 = vmatmul.mubr.bf16.gmra.mrb[0].mxu0 %v2115
    %v2254 = vpop.f32.mrb[0].mxu0
    %v2255 = vadd.f32 %v2122, %v2254
    %v2256 = vpop.f32.mrb[0].mxu0
    %v2257 = vpop.f32.mrb[0].mxu0
    %v2258 = vadd.f32 %v2122, %v2257
    %v2259 = vpop.f32.mrb[0].mxu0
    %2260 = vdwg.mxu0
    %v2261 = vadd.f32 %v1941, %v2255
    %v2262 = vadd.f32 %v1942, %v2258
    %v2263 = vld [vmem:[%s18] sm:$0x1]
    %v2264 = vld [vmem:[%s19] sm:$0x1]
    %2265 = vadd.xlane.f32.xlu0 %v2261
    %v2266 = vpop.xlane.xlu0 %2265
    %2267 = vadd.xlane.f32.xlu0 %v2262
    %v2268 = vpop.xlane.xlu0 %2267
    %v2269 = vmul.f32 %v2266, %v233
    %v2270 = vmul.f32 %v2268, %v233
    %v2271 = vsub.f32 %v2261, %v2269
    %v2272 = vsub.f32 %v2262, %v2270
    %v2273 = vmul.f32 %v2271, %v2271
    %v2274 = vmul.f32 %v2272, %v2272
    %2275 = vadd.xlane.f32.xlu0 %v2273
    %v2276 = vpop.xlane.xlu0 %2275
    %2277 = vadd.xlane.f32.xlu0 %v2274
    %v2278 = vpop.xlane.xlu0 %2277
    %v2279 = vmul.f32 %v2276, %v233
    %v2280 = vmul.f32 %v2278, %v233
    %v2281 = vadd.f32 %v2279, 1e-05
    %v2282 = vadd.f32 %v2280, 1e-05
    %v2283 = vrsqrt.pop %v2281
    %v2284 = vrsqrt.pop %v2282
    %v2285 = vmul.f32 %v2271, %v2283
    %v2286 = vmul.f32 %v2272, %v2284
    %v2288 = vlaneseq
    %v2289 = vshrl.u32 %v2288, 7
    %v2290 = vsub.s32 0, %v2289
    %v2291 = vrot.slane %v2263, %v2290
    %v2293 = vmul.f32 %v2285, %v2291
    %v2294 = vmul.f32 %v2286, %v2291
    %v2296 = vlaneseq
    %v2297 = vshrl.u32 %v2296, 7
    %v2298 = vsub.s32 0, %v2297
    %v2299 = vrot.slane %v2264, %v2298
    %v2301 = vadd.f32 %v2293, %v2299
    %v2302 = vadd.f32 %v2294, %v2299
    %s2303 = scalar_lea.vmem %s8, 192
    %v2304 = vld [vmem:[%s2303] sm:$0xff]
    %v2305 = vld [vmem:[%s2303 + $0x8] sm:$0xf]
    %v2306 = vld [vmem:[%s2303 + $0xc] sm:$0xff]
    %v2307 = vld [vmem:[%s2303 + $0x14] sm:$0xf]
    %v2308 = vld [vmem:[%s2303 + $0x18] sm:$0xff]
    %v2309 = vld [vmem:[%s2303 + $0x20] sm:$0xf]
    %v2310 = vld [vmem:[%s2303 + $0x24] sm:$0xff]
    %v2311 = vld [vmem:[%s2303 + $0x2c] sm:$0xf]
    %v2312 = vld [vmem:[%s2303 + $0x30] sm:$0xff]
    %v2313 = vld [vmem:[%s2303 + $0x38] sm:$0xf]
    %v2314 = vld [vmem:[%s2303 + $0x3c] sm:$0xff]
    %v2315 = vld [vmem:[%s2303 + $0x44] sm:$0xf]
    %v2316 = vld [vmem:[%s2303 + $0x48] sm:$0xff]
    %v2317 = vld [vmem:[%s2303 + $0x50] sm:$0xf]
    %v2318 = vld [vmem:[%s2303 + $0x54] sm:$0xff]
    %v2319 = vld [vmem:[%s2303 + $0x5c] sm:$0xf]
    %v2320 = vld [vmem:[%s2303 + $0x60] sm:$0xff]
    %v2321 = vld [vmem:[%s2303 + $0x68] sm:$0xf]
    %v2322 = vld [vmem:[%s2303 + $0x6c] sm:$0xff]
    %v2323 = vld [vmem:[%s2303 + $0x74] sm:$0xf]
    %v2324 = vld [vmem:[%s2303 + $0x78] sm:$0xff]
    %v2325 = vld [vmem:[%s2303 + $0x80] sm:$0xf]
    %v2326 = vld [vmem:[%s2303 + $0x84] sm:$0xff]
    %v2327 = vld [vmem:[%s2303 + $0x8c] sm:$0xf]
    %v2328 = vld [vmem:[%s2303 + $0x90] sm:$0xff]
    %v2329 = vld [vmem:[%s2303 + $0x98] sm:$0xf]
    %v2330 = vld [vmem:[%s2303 + $0x9c] sm:$0xff]
    %v2331 = vld [vmem:[%s2303 + $0xa4] sm:$0xf]
    %v2332 = vld [vmem:[%s2303 + $0xa8] sm:$0xff]
    %v2333 = vld [vmem:[%s2303 + $0xb0] sm:$0xf]
    %v2334 = vld [vmem:[%s2303 + $0xb4] sm:$0xff]
    %v2335 = vld [vmem:[%s2303 + $0xbc] sm:$0xf]
    %s2336 = scalar_lea.vmem %s10, 64
    %v2337 = vld [vmem:[%s2336] sm:$0xf]
    %v2338 = vld [vmem:[%s2336 + $0x4] sm:$0xf]
    %v2339 = vld [vmem:[%s2336 + $0x8] sm:$0xf]
    %v2340 = vld [vmem:[%s2336 + $0xc] sm:$0xf]
    %v2341 = vld [vmem:[%s2336 + $0x10] sm:$0xf]
    %v2342 = vld [vmem:[%s2336 + $0x14] sm:$0xf]
    %v2343 = vld [vmem:[%s2336 + $0x18] sm:$0xf]
    %v2344 = vld [vmem:[%s2336 + $0x1c] sm:$0xf]
    %v2345 = vld [vmem:[%s2336 + $0x20] sm:$0xf]
    %v2346 = vld [vmem:[%s2336 + $0x24] sm:$0xf]
    %v2347 = vld [vmem:[%s2336 + $0x28] sm:$0xf]
    %v2348 = vld [vmem:[%s2336 + $0x2c] sm:$0xf]
    %v2349 = vld [vmem:[%s2336 + $0x30] sm:$0xf]
    %v2350 = vld [vmem:[%s2336 + $0x34] sm:$0xf]
    %v2351 = vld [vmem:[%s2336 + $0x38] sm:$0xf]
    %v2352 = vld [vmem:[%s2336 + $0x3c] sm:$0xf]
    %s2353 = scalar_lea.vmem %s14, 128
    %v2354 = vld [vmem:[%s2353] sm:$0xff]
    %v2355 = vld [vmem:[%s2353 + $0x8] sm:$0xff]
    %v2356 = vld [vmem:[%s2353 + $0x10] sm:$0xff]
    %v2357 = vld [vmem:[%s2353 + $0x18] sm:$0xff]
    %v2358 = vld [vmem:[%s2353 + $0x20] sm:$0xff]
    %v2359 = vld [vmem:[%s2353 + $0x28] sm:$0xff]
    %v2360 = vld [vmem:[%s2353 + $0x30] sm:$0xff]
    %v2361 = vld [vmem:[%s2353 + $0x38] sm:$0xff]
    %v2362 = vld [vmem:[%s2353 + $0x40] sm:$0xff]
    %v2363 = vld [vmem:[%s2353 + $0x48] sm:$0xff]
    %v2364 = vld [vmem:[%s2353 + $0x50] sm:$0xff]
    %v2365 = vld [vmem:[%s2353 + $0x58] sm:$0xff]
    %v2366 = vld [vmem:[%s2353 + $0x60] sm:$0xff]
    %v2367 = vld [vmem:[%s2353 + $0x68] sm:$0xff]
    %v2368 = vld [vmem:[%s2353 + $0x70] sm:$0xff]
    %v2369 = vld [vmem:[%s2353 + $0x78] sm:$0xff]
    %s2370 = scalar_lea.vmem %s16, 128
    %v2371 = vld [vmem:[%s2370] sm:$0xf]
    %v2372 = vld [vmem:[%s2370 + $0x4] sm:$0xf]
    %v2373 = vld [vmem:[%s2370 + $0x8] sm:$0xf]
    %v2374 = vld [vmem:[%s2370 + $0xc] sm:$0xf]
    %v2375 = vld [vmem:[%s2370 + $0x10] sm:$0xf]
    %v2376 = vld [vmem:[%s2370 + $0x14] sm:$0xf]
    %v2377 = vld [vmem:[%s2370 + $0x18] sm:$0xf]
    %v2378 = vld [vmem:[%s2370 + $0x1c] sm:$0xf]
    %v2379 = vld [vmem:[%s2370 + $0x20] sm:$0xf]
    %v2380 = vld [vmem:[%s2370 + $0x24] sm:$0xf]
    %v2381 = vld [vmem:[%s2370 + $0x28] sm:$0xf]
    %v2382 = vld [vmem:[%s2370 + $0x2c] sm:$0xf]
    %v2383 = vld [vmem:[%s2370 + $0x30] sm:$0xf]
    %v2384 = vld [vmem:[%s2370 + $0x34] sm:$0xf]
    %v2385 = vld [vmem:[%s2370 + $0x38] sm:$0xf]
    %v2386 = vld [vmem:[%s2370 + $0x3c] sm:$0xf]
    %v2387 = vld [vmem:[%s2370 + $0x40] sm:$0xf]
    %v2388 = vld [vmem:[%s2370 + $0x44] sm:$0xf]
    %v2389 = vld [vmem:[%s2370 + $0x48] sm:$0xf]
    %v2390 = vld [vmem:[%s2370 + $0x4c] sm:$0xf]
    %v2391 = vld [vmem:[%s2370 + $0x50] sm:$0xf]
    %v2392 = vld [vmem:[%s2370 + $0x54] sm:$0xf]
    %v2393 = vld [vmem:[%s2370 + $0x58] sm:$0xf]
    %v2394 = vld [vmem:[%s2370 + $0x5c] sm:$0xf]
    %v2395 = vld [vmem:[%s2370 + $0x60] sm:$0xf]
    %v2396 = vld [vmem:[%s2370 + $0x64] sm:$0xf]
    %v2397 = vld [vmem:[%s2370 + $0x68] sm:$0xf]
    %v2398 = vld [vmem:[%s2370 + $0x6c] sm:$0xf]
    %v2399 = vld [vmem:[%s2370 + $0x70] sm:$0xf]
    %v2400 = vld [vmem:[%s2370 + $0x74] sm:$0xf]
    %v2401 = vld [vmem:[%s2370 + $0x78] sm:$0xf]
    %v2402 = vld [vmem:[%s2370 + $0x7c] sm:$0xf]
    %v2403 = vpack.c.bf16 %v2302, %v2301
    %s2404 = scalar_lea.vmem %s9, 3
    %v2405 = vld [vmem:[%s2404] sm:$0x7]
    %v2407 = vlaneseq
    %v2408 = vshrl.u32 %v2407, 7
    %v2409 = vsub.s32 0, %v2408
    %v2410 = vrot.slane %v2405, %v2409
    %v2411 = vlaneseq
    %v2412 = vshrl.u32 %v2411, 7
    %v2413 = vsub.s32 1, %v2412
    %v2414 = vrot.slane %v2405, %v2413
    %v2415 = vlaneseq
    %v2416 = vshrl.u32 %v2415, 7
    %v2417 = vsub.s32 2, %v2416
    %v2418 = vrot.slane %v2405, %v2417
    %v2454 = vunpack.c.l.b16 %v2304
    %v2455 = vunpack.c.h.b16 %v2304
    %v2456 = vunpack.c.l.b16 %v2305
    %v2457 = vunpack.c.l.b16 %v2306
    %v2458 = vunpack.c.h.b16 %v2306
    %v2459 = vunpack.c.l.b16 %v2307
    %v2460 = vunpack.c.l.b16 %v2308
    %v2461 = vunpack.c.h.b16 %v2308
    %v2462 = vunpack.c.l.b16 %v2309
    %v2463 = vunpack.c.l.b16 %v2310
    %v2464 = vunpack.c.h.b16 %v2310
    %v2465 = vunpack.c.l.b16 %v2311
    %v2466 = vunpack.c.l.b16 %v2312
    %v2467 = vunpack.c.h.b16 %v2312
    %v2468 = vunpack.c.l.b16 %v2313
    %v2469 = vunpack.c.l.b16 %v2314
    %v2470 = vunpack.c.h.b16 %v2314
    %v2471 = vunpack.c.l.b16 %v2315
    %v2472 = vunpack.c.l.b16 %v2316
    %v2473 = vunpack.c.h.b16 %v2316
    %v2474 = vunpack.c.l.b16 %v2317
    %v2475 = vunpack.c.l.b16 %v2318
    %v2476 = vunpack.c.h.b16 %v2318
    %v2477 = vunpack.c.l.b16 %v2319
    %v2478 = vunpack.c.l.b16 %v2320
    %v2479 = vunpack.c.h.b16 %v2320
    %v2480 = vunpack.c.l.b16 %v2321
    %v2481 = vunpack.c.l.b16 %v2322
    %v2482 = vunpack.c.h.b16 %v2322
    %v2483 = vunpack.c.l.b16 %v2323
    %v2484 = vunpack.c.l.b16 %v2324
    %v2485 = vunpack.c.h.b16 %v2324
    %v2486 = vunpack.c.l.b16 %v2325
    %v2487 = vunpack.c.l.b16 %v2326
    %v2488 = vunpack.c.h.b16 %v2326
    %v2489 = vunpack.c.l.b16 %v2327
    %v2490 = vunpack.c.l.b16 %v2328
    %v2491 = vunpack.c.h.b16 %v2328
    %v2492 = vunpack.c.l.b16 %v2329
    %v2493 = vunpack.c.l.b16 %v2330
    %v2494 = vunpack.c.h.b16 %v2330
    %v2495 = vunpack.c.l.b16 %v2331
    %v2496 = vunpack.c.l.b16 %v2332
    %v2497 = vunpack.c.h.b16 %v2332
    %v2498 = vunpack.c.l.b16 %v2333
    %v2499 = vunpack.c.l.b16 %v2334
    %v2500 = vunpack.c.h.b16 %v2334
    %v2501 = vunpack.c.l.b16 %v2335
    %v2502 = vpack.c.b16 %v2457, %v2454
    %v2503 = vpack.c.b16 %v2458, %v2455
    %v2504 = vpack.c.b16 %v2459, %v2456
    %v2505 = vpack.c.b16 %v2463, %v2460
    %v2506 = vpack.c.b16 %v2464, %v2461
    %v2507 = vpack.c.b16 %v2465, %v2462
    %v2508 = vpack.c.b16 %v2469, %v2466
    %v2509 = vpack.c.b16 %v2470, %v2467
    %v2510 = vpack.c.b16 %v2471, %v2468
    %v2511 = vpack.c.b16 %v2475, %v2472
    %v2512 = vpack.c.b16 %v2476, %v2473
    %v2513 = vpack.c.b16 %v2477, %v2474
    %v2514 = vpack.c.b16 %v2481, %v2478
    %v2515 = vpack.c.b16 %v2482, %v2479
    %v2516 = vpack.c.b16 %v2483, %v2480
    %v2517 = vpack.c.b16 %v2487, %v2484
    %v2518 = vpack.c.b16 %v2488, %v2485
    %v2519 = vpack.c.b16 %v2489, %v2486
    %v2520 = vpack.c.b16 %v2493, %v2490
    %v2521 = vpack.c.b16 %v2494, %v2491
    %v2522 = vpack.c.b16 %v2495, %v2492
    %v2523 = vpack.c.b16 %v2499, %v2496
    %v2524 = vpack.c.b16 %v2500, %v2497
    %v2525 = vpack.c.b16 %v2501, %v2498
    %2550 = vmatprep.subr.bf16.mxu0 %v2503
    %2551 = vmatpush1.bf16.msra.mxu0 %v2502
    %2552 = vmatprep.subr.bf16.mxu0 %v2506
    %2553 = vmatpush1.bf16.msra.mxu0 %v2505
    %2554 = vmatprep.subr.bf16.mxu0 %v2509
    %2555 = vmatpush1.bf16.msra.mxu0 %v2508
    %2556 = vmatprep.subr.bf16.mxu0 %v2512
    %2557 = vmatpush1.bf16.msra.mxu0 %v2511
    %2558 = vmatprep.subr.bf16.mxu0 %v2515
    %2559 = vmatpush1.bf16.msra.mxu0 %v2514
    %2560 = vmatprep.subr.bf16.mxu0 %v2518
    %2561 = vmatpush1.bf16.msra.mxu0 %v2517
    %2562 = vmatprep.subr.bf16.mxu0 %v2521
    %2563 = vmatpush1.bf16.msra.mxu0 %v2520
    %2564 = vmatprep.subr.bf16.mxu0 %v2524
    %2565 = vmatpush1.bf16.msra.mxu0 %v2523
    %2566 = vmatprep.subr.bf16.mxu0 0
    %2567 = vmatpush1.bf16.msra.mxu0 0
    %2568 = vmatprep.subr.bf16.mxu0 0
    %2569 = vmatpush1.bf16.msra.mxu0 0
    %2570 = vmatprep.subr.bf16.mxu0 0
    %2571 = vmatpush1.bf16.msra.mxu0 0
    %2572 = vmatprep.subr.bf16.mxu0 0
    %2573 = vmatpush1.bf16.msra.mxu0 0
    %2574 = vmatprep.subr.bf16.mxu0 0
    %2575 = vmatpush1.bf16.msra.mxu0 0
    %2576 = vmatprep.subr.bf16.mxu0 0
    %2577 = vmatpush1.bf16.msra.mxu0 0
    %2578 = vmatprep.subr.bf16.mxu0 0
    %2579 = vmatpush1.bf16.msra.mxu0 0
    %2580 = vmatprep.subr.bf16.mxu0 0
    %2581 = vmatpush1.bf16.msra.mxu0 0
    %2582 = vmatprep.mubr.bf16.mxu0 0
    %2583 = vmatmul.mubr.bf16.gmra.mrb[0].mxu0 %v2403
    %v2584 = vpop.f32.mrb[0].mxu0
    %v2585 = vadd.f32 %v2410, %v2584
    %v2586 = vpop.f32.mrb[0].mxu0
    %v2587 = vadd.f32 %v2414, %v2586
    %v2588 = vpop.f32.mrb[0].mxu0
    %v2589 = vadd.f32 %v2410, %v2588
    %v2590 = vpop.f32.mrb[0].mxu0
    %v2591 = vadd.f32 %v2414, %v2590
    %2592 = vdwg.mxu0
    %2593 = vmatprep.subr.bf16.mxu0 0
    %2594 = vmatpush1.bf16.msra.mxu0 %v2504
    %2595 = vmatprep.subr.bf16.mxu0 0
    %2596 = vmatpush1.bf16.msra.mxu0 %v2507
    %2597 = vmatprep.subr.bf16.mxu0 0
    %2598 = vmatpush1.bf16.msra.mxu0 %v2510
    %2599 = vmatprep.subr.bf16.mxu0 0
    %2600 = vmatpush1.bf16.msra.mxu0 %v2513
    %2601 = vmatprep.subr.bf16.mxu0 0
    %2602 = vmatpush1.bf16.msra.mxu0 %v2516
    %2603 = vmatprep.subr.bf16.mxu0 0
    %2604 = vmatpush1.bf16.msra.mxu0 %v2519
    %2605 = vmatprep.subr.bf16.mxu0 0
    %2606 = vmatpush1.bf16.msra.mxu0 %v2522
    %2607 = vmatprep.subr.bf16.mxu0 0
    %2608 = vmatpush1.bf16.msra.mxu0 %v2525
    %2609 = vmatprep.subr.bf16.mxu0 0
    %2610 = vmatpush1.bf16.msra.mxu0 0
    %2611 = vmatprep.subr.bf16.mxu0 0
    %2612 = vmatpush1.bf16.msra.mxu0 0
    %2613 = vmatprep.subr.bf16.mxu0 0
    %2614 = vmatpush1.bf16.msra.mxu0 0
    %2615 = vmatprep.subr.bf16.mxu0 0
    %2616 = vmatpush1.bf16.msra.mxu0 0
    %2617 = vmatprep.subr.bf16.mxu0 0
    %2618 = vmatpush1.bf16.msra.mxu0 0
    %2619 = vmatprep.subr.bf16.mxu0 0
    %2620 = vmatpush1.bf16.msra.mxu0 0
    %2621 = vmatprep.subr.bf16.mxu0 0
    %2622 = vmatpush1.bf16.msra.mxu0 0
    %2623 = vmatprep.subr.bf16.mxu0 0
    %2624 = vmatpush1.bf16.msra.mxu0 0
    %2625 = vmatprep.mubr.bf16.mxu0 0
    %2626 = vmatmul.mubr.bf16.gmra.mrb[0].mxu0 %v2403
    %v2627 = vpop.f32.mrb[0].mxu0
    %v2628 = vadd.f32 %v2418, %v2627
    %v2629 = vpop.f32.mrb[0].mxu0
    %v2630 = vpop.f32.mrb[0].mxu0
    %v2631 = vadd.f32 %v2418, %v2630
    %v2632 = vpop.f32.mrb[0].mxu0
    %2633 = vdwg.mxu0
    %v2634 = vpack.c.bf16 %v2585, %v2585
    %v2635 = vpack.c.bf16 %v2587, %v2587
    %v2636 = vpack.c.bf16 %v2628, %v2628
    %v2638 = vsel %vm604, %v2634, 0
    %v2641 = vsel %vm604, %v2635, 0
    %2643 = vmatprep.subr.bf16.mxu0 0
    %2644 = vmatpush1.bf16.xpose.msra.mxu0 %v2641
    %2645 = vmatprep.subr.bf16.mxu0 0
    %2646 = vmatpush1.bf16.xpose.msra.mxu0 0
    %2647 = vmatprep.subr.bf16.mxu0 0
    %2648 = vmatpush1.bf16.xpose.msra.mxu0 0
    %2649 = vmatprep.subr.bf16.mxu0 0
    %2650 = vmatpush1.bf16.xpose.msra.mxu0 0
    %2651 = vmatprep.subr.bf16.mxu0 0
    %2652 = vmatpush1.bf16.xpose.msra.mxu0 0
    %2653 = vmatprep.subr.bf16.mxu0 0
    %2654 = vmatpush1.bf16.xpose.msra.mxu0 0
    %2655 = vmatprep.subr.bf16.mxu0 0
    %2656 = vmatpush1.bf16.xpose.msra.mxu0 0
    %2657 = vmatprep.subr.bf16.mxu0 0
    %2658 = vmatpush1.bf16.xpose.msra.mxu0 0
    %2659 = vmatprep.subr.bf16.mxu0 0
    %2660 = vmatpush1.bf16.xpose.msra.mxu0 0
    %2661 = vmatprep.subr.bf16.mxu0 0
    %2662 = vmatpush1.bf16.xpose.msra.mxu0 0
    %2663 = vmatprep.subr.bf16.mxu0 0
    %2664 = vmatpush1.bf16.xpose.msra.mxu0 0
    %2665 = vmatprep.subr.bf16.mxu0 0
    %2666 = vmatpush1.bf16.xpose.msra.mxu0 0
    %2667 = vmatprep.subr.bf16.mxu0 0
    %2668 = vmatpush1.bf16.xpose.msra.mxu0 0
    %2669 = vmatprep.subr.bf16.mxu0 0
    %2670 = vmatpush1.bf16.xpose.msra.mxu0 0
    %2671 = vmatprep.subr.bf16.mxu0 0
    %2672 = vmatpush1.bf16.xpose.msra.mxu0 0
    %2673 = vmatprep.subr.bf16.mxu0 0
    %2674 = vmatpush1.bf16.xpose.msra.mxu0 0
    %2675 = vmatprep.mubr.bf16.mxu0 0
    %2676 = vmatmul.mubr.bf16.gmra.mrb[0].mxu0 %v2638
    %v2677 = vpop.f32.mrb[0].mxu0
    %v2678 = vadd.f32 %v603, %v2677
    %v2679 = vpop.f32.mrb[0].mxu0
    %v2680 = vpop.f32.mrb[0].mxu0
    %v2681 = vpop.f32.mrb[0].mxu0
    %2682 = vdwg.mxu0
    %v2683 = vsel %vm651, %v2678, -inf
    %2684 = vmax.xlane.f32.xlu0 %v2683
    %v2685 = vpop.xlane.xlu0 %2684
    %v2686 = vsub.f32 %v2678, %v2685
    %v2687 = vmul.f32 %v2686, 1.442695
    %v2688 = vpow.pop %v2687
    %v2689 = vsel %vm651, %v2688, 0.0
    %2690 = vadd.xlane.f32.xlu0 %v2689
    %v2691 = vpop.xlane.xlu0 %2690
    %v2692 = vrcp.pop %v2691
    %v2693 = vmul.f32 %v2688, %v2692
    %v2694 = vpack.c.bf16 %v2693, %v2693
    %v2696 = vsel %vm651, %v2694, 0
    %v2699 = vsel %vm667, %v2636, 0
    %2701 = vmatprep.subr.bf16.mxu0 0
    %2702 = vmatpush1.bf16.msra.mxu0 %v2699
    %2703 = vmatprep.subr.bf16.mxu0 0
    %2704 = vmatpush1.bf16.msra.mxu0 0
    %2705 = vmatprep.subr.bf16.mxu0 0
    %2706 = vmatpush1.bf16.msra.mxu0 0
    %2707 = vmatprep.subr.bf16.mxu0 0
    %2708 = vmatpush1.bf16.msra.mxu0 0
    %2709 = vmatprep.subr.bf16.mxu0 0
    %2710 = vmatpush1.bf16.msra.mxu0 0
    %2711 = vmatprep.subr.bf16.mxu0 0
    %2712 = vmatpush1.bf16.msra.mxu0 0
    %2713 = vmatprep.subr.bf16.mxu0 0
    %2714 = vmatpush1.bf16.msra.mxu0 0
    %2715 = vmatprep.subr.bf16.mxu0 0
    %2716 = vmatpush1.bf16.msra.mxu0 0
    %2717 = vmatprep.subr.bf16.mxu0 0
    %2718 = vmatpush1.bf16.msra.mxu0 0
    %2719 = vmatprep.subr.bf16.mxu0 0
    %2720 = vmatpush1.bf16.msra.mxu0 0
    %2721 = vmatprep.subr.bf16.mxu0 0
    %2722 = vmatpush1.bf16.msra.mxu0 0
    %2723 = vmatprep.subr.bf16.mxu0 0
    %2724 = vmatpush1.bf16.msra.mxu0 0
    %2725 = vmatprep.subr.bf16.mxu0 0
    %2726 = vmatpush1.bf16.msra.mxu0 0
    %2727 = vmatprep.subr.bf16.mxu0 0
    %2728 = vmatpush1.bf16.msra.mxu0 0
    %2729 = vmatprep.subr.bf16.mxu0 0
    %2730 = vmatpush1.bf16.msra.mxu0 0
    %2731 = vmatprep.subr.bf16.mxu0 0
    %2732 = vmatpush1.bf16.msra.mxu0 0
    %2733 = vmatprep.mubr.bf16.mxu0 0
    %2734 = vmatmul.mubr.bf16.gmra.mrb[0].mxu0 %v2696
    %v2735 = vpop.f32.mrb[0].mxu0
    %v2736 = vadd.f32 0.0, %v2735
    %v2737 = vpop.f32.mrb[0].mxu0
    %v2738 = vpop.f32.mrb[0].mxu0
    %v2739 = vpop.f32.mrb[0].mxu0
    %2740 = vdwg.mxu0
    %v2741 = vpack.c.bf16 %v2736, %v2736
    %2743 = vrot.lane.b32.xlu0 %v2634, 96
    %v2744 = vpop.permute.xlu0 %2743
    %2746 = vrot.lane.b32.xlu0 %v2635, 96
    %v2747 = vpop.permute.xlu0 %2746
    %v2749 = vsel %vm604, %v2744, 0
    %v2752 = vsel %vm604, %v2747, 0
    %2754 = vmatprep.subr.bf16.mxu0 0
    %2755 = vmatpush1.bf16.xpose.msra.mxu0 %v2752
    %2756 = vmatprep.subr.bf16.mxu0 0
    %2757 = vmatpush1.bf16.xpose.msra.mxu0 0
    %2758 = vmatprep.subr.bf16.mxu0 0
    %2759 = vmatpush1.bf16.xpose.msra.mxu0 0
    %2760 = vmatprep.subr.bf16.mxu0 0
    %2761 = vmatpush1.bf16.xpose.msra.mxu0 0
    %2762 = vmatprep.subr.bf16.mxu0 0
    %2763 = vmatpush1.bf16.xpose.msra.mxu0 0
    %2764 = vmatprep.subr.bf16.mxu0 0
    %2765 = vmatpush1.bf16.xpose.msra.mxu0 0
    %2766 = vmatprep.subr.bf16.mxu0 0
    %2767 = vmatpush1.bf16.xpose.msra.mxu0 0
    %2768 = vmatprep.subr.bf16.mxu0 0
    %2769 = vmatpush1.bf16.xpose.msra.mxu0 0
    %2770 = vmatprep.subr.bf16.mxu0 0
    %2771 = vmatpush1.bf16.xpose.msra.mxu0 0
    %2772 = vmatprep.subr.bf16.mxu0 0
    %2773 = vmatpush1.bf16.xpose.msra.mxu0 0
    %2774 = vmatprep.subr.bf16.mxu0 0
    %2775 = vmatpush1.bf16.xpose.msra.mxu0 0
    %2776 = vmatprep.subr.bf16.mxu0 0
    %2777 = vmatpush1.bf16.xpose.msra.mxu0 0
    %2778 = vmatprep.subr.bf16.mxu0 0
    %2779 = vmatpush1.bf16.xpose.msra.mxu0 0
    %2780 = vmatprep.subr.bf16.mxu0 0
    %2781 = vmatpush1.bf16.xpose.msra.mxu0 0
    %2782 = vmatprep.subr.bf16.mxu0 0
    %2783 = vmatpush1.bf16.xpose.msra.mxu0 0
    %2784 = vmatprep.subr.bf16.mxu0 0
    %2785 = vmatpush1.bf16.xpose.msra.mxu0 0
    %2786 = vmatprep.mubr.bf16.mxu0 0
    %2787 = vmatmul.mubr.bf16.gmra.mrb[0].mxu0 %v2749
    %v2788 = vpop.f32.mrb[0].mxu0
    %v2789 = vadd.f32 %v603, %v2788
    %v2790 = vpop.f32.mrb[0].mxu0
    %v2791 = vpop.f32.mrb[0].mxu0
    %v2792 = vpop.f32.mrb[0].mxu0
    %2793 = vdwg.mxu0
    %v2794 = vsel %vm651, %v2789, -inf
    %2795 = vmax.xlane.f32.xlu0 %v2794
    %v2796 = vpop.xlane.xlu0 %2795
    %v2797 = vsub.f32 %v2789, %v2796
    %v2798 = vmul.f32 %v2797, 1.442695
    %v2799 = vpow.pop %v2798
    %v2800 = vsel %vm651, %v2799, 0.0
    %2801 = vadd.xlane.f32.xlu0 %v2800
    %v2802 = vpop.xlane.xlu0 %2801
    %v2803 = vrcp.pop %v2802
    %v2804 = vmul.f32 %v2799, %v2803
    %v2805 = vpack.c.bf16 %v2804, %v2804
    %2807 = vrot.lane.b32.xlu0 %v2636, 96
    %v2808 = vpop.permute.xlu0 %2807
    %v2810 = vsel %vm651, %v2805, 0
    %v2813 = vsel %vm667, %v2808, 0
    %2815 = vmatprep.subr.bf16.mxu0 0
    %2816 = vmatpush1.bf16.msra.mxu0 %v2813
    %2817 = vmatprep.subr.bf16.mxu0 0
    %2818 = vmatpush1.bf16.msra.mxu0 0
    %2819 = vmatprep.subr.bf16.mxu0 0
    %2820 = vmatpush1.bf16.msra.mxu0 0
    %2821 = vmatprep.subr.bf16.mxu0 0
    %2822 = vmatpush1.bf16.msra.mxu0 0
    %2823 = vmatprep.subr.bf16.mxu0 0
    %2824 = vmatpush1.bf16.msra.mxu0 0
    %2825 = vmatprep.subr.bf16.mxu0 0
    %2826 = vmatpush1.bf16.msra.mxu0 0
    %2827 = vmatprep.subr.bf16.mxu0 0
    %2828 = vmatpush1.bf16.msra.mxu0 0
    %2829 = vmatprep.subr.bf16.mxu0 0
    %2830 = vmatpush1.bf16.msra.mxu0 0
    %2831 = vmatprep.subr.bf16.mxu0 0
    %2832 = vmatpush1.bf16.msra.mxu0 0
    %2833 = vmatprep.subr.bf16.mxu0 0
    %2834 = vmatpush1.bf16.msra.mxu0 0
    %2835 = vmatprep.subr.bf16.mxu0 0
    %2836 = vmatpush1.bf16.msra.mxu0 0
    %2837 = vmatprep.subr.bf16.mxu0 0
    %2838 = vmatpush1.bf16.msra.mxu0 0
    %2839 = vmatprep.subr.bf16.mxu0 0
    %2840 = vmatpush1.bf16.msra.mxu0 0
    %2841 = vmatprep.subr.bf16.mxu0 0
    %2842 = vmatpush1.bf16.msra.mxu0 0
    %2843 = vmatprep.subr.bf16.mxu0 0
    %2844 = vmatpush1.bf16.msra.mxu0 0
    %2845 = vmatprep.subr.bf16.mxu0 0
    %2846 = vmatpush1.bf16.msra.mxu0 0
    %2847 = vmatprep.mubr.bf16.mxu0 0
    %2848 = vmatmul.mubr.bf16.gmra.mrb[0].mxu0 %v2810
    %v2849 = vpop.f32.mrb[0].mxu0
    %v2850 = vadd.f32 0.0, %v2849
    %v2851 = vpop.f32.mrb[0].mxu0
    %v2852 = vpop.f32.mrb[0].mxu0
    %v2853 = vpop.f32.mrb[0].mxu0
    %2854 = vdwg.mxu0
    %v2855 = vpack.c.bf16 %v2850, %v2850
    %v2860 = vunpack.c.l.b16 %v2341
    %v2861 = vunpack.c.l.b16 %v2342
    %v2862 = vunpack.c.l.b16 %v2343
    %v2863 = vunpack.c.l.b16 %v2344
    %v2864 = vpack.c.b16 %v2861, %v2860
    %v2865 = vpack.c.b16 %v2863, %v2862
    %v2869 = vsel %vm604, %v2855, 0
    %2871 = vmatprep.subr.bf16.mxu0 0
    %2872 = vmatpush1.bf16.msra.mxu0 %v2864
    %2873 = vmatprep.subr.bf16.mxu0 0
    %2874 = vmatpush1.bf16.msra.mxu0 %v2865
    %2875 = vmatprep.subr.bf16.mxu0 0
    %2876 = vmatpush1.bf16.msra.mxu0 0
    %2877 = vmatprep.subr.bf16.mxu0 0
    %2878 = vmatpush1.bf16.msra.mxu0 0
    %2879 = vmatprep.subr.bf16.mxu0 0
    %2880 = vmatpush1.bf16.msra.mxu0 0
    %2881 = vmatprep.subr.bf16.mxu0 0
    %2882 = vmatpush1.bf16.msra.mxu0 0
    %2883 = vmatprep.subr.bf16.mxu0 0
    %2884 = vmatpush1.bf16.msra.mxu0 0
    %2885 = vmatprep.subr.bf16.mxu0 0
    %2886 = vmatpush1.bf16.msra.mxu0 0
    %2887 = vmatprep.subr.bf16.mxu0 0
    %2888 = vmatpush1.bf16.msra.mxu0 0
    %2889 = vmatprep.subr.bf16.mxu0 0
    %2890 = vmatpush1.bf16.msra.mxu0 0
    %2891 = vmatprep.subr.bf16.mxu0 0
    %2892 = vmatpush1.bf16.msra.mxu0 0
    %2893 = vmatprep.subr.bf16.mxu0 0
    %2894 = vmatpush1.bf16.msra.mxu0 0
    %2895 = vmatprep.subr.bf16.mxu0 0
    %2896 = vmatpush1.bf16.msra.mxu0 0
    %2897 = vmatprep.subr.bf16.mxu0 0
    %2898 = vmatpush1.bf16.msra.mxu0 0
    %2899 = vmatprep.subr.bf16.mxu0 0
    %2900 = vmatpush1.bf16.msra.mxu0 0
    %2901 = vmatprep.subr.bf16.mxu0 0
    %2902 = vmatpush1.bf16.msra.mxu0 0
    %2903 = vmatprep.mubr.bf16.mxu0 0
    %2904 = vmatmul.mubr.bf16.gmra.mrb[0].mxu0 %v2869
    %v2905 = vpop.f32.mrb[0].mxu0
    %v2906 = vadd.f32 0.0, %v2905
    %v2907 = vpop.f32.mrb[0].mxu0
    %v2908 = vpop.f32.mrb[0].mxu0
    %v2909 = vpop.f32.mrb[0].mxu0
    %2910 = vdwg.mxu0
    %v2915 = vunpack.c.l.b16 %v2337
    %v2916 = vunpack.c.l.b16 %v2338
    %v2917 = vunpack.c.l.b16 %v2339
    %v2918 = vunpack.c.l.b16 %v2340
    %v2919 = vpack.c.b16 %v2916, %v2915
    %v2920 = vpack.c.b16 %v2918, %v2917
    %v2924 = vsel %vm604, %v2741, 0
    %2926 = vmatprep.subr.bf16.mxu0 0
    %2927 = vmatpush1.bf16.msra.mxu0 %v2919
    %2928 = vmatprep.subr.bf16.mxu0 0
    %2929 = vmatpush1.bf16.msra.mxu0 %v2920
    %2930 = vmatprep.subr.bf16.mxu0 0
    %2931 = vmatpush1.bf16.msra.mxu0 0
    %2932 = vmatprep.subr.bf16.mxu0 0
    %2933 = vmatpush1.bf16.msra.mxu0 0
    %2934 = vmatprep.subr.bf16.mxu0 0
    %2935 = vmatpush1.bf16.msra.mxu0 0
    %2936 = vmatprep.subr.bf16.mxu0 0
    %2937 = vmatpush1.bf16.msra.mxu0 0
    %2938 = vmatprep.subr.bf16.mxu0 0
    %2939 = vmatpush1.bf16.msra.mxu0 0
    %2940 = vmatprep.subr.bf16.mxu0 0
    %2941 = vmatpush1.bf16.msra.mxu0 0
    %2942 = vmatprep.subr.bf16.mxu0 0
    %2943 = vmatpush1.bf16.msra.mxu0 0
    %2944 = vmatprep.subr.bf16.mxu0 0
    %2945 = vmatpush1.bf16.msra.mxu0 0
    %2946 = vmatprep.subr.bf16.mxu0 0
    %2947 = vmatpush1.bf16.msra.mxu0 0
    %2948 = vmatprep.subr.bf16.mxu0 0
    %2949 = vmatpush1.bf16.msra.mxu0 0
    %2950 = vmatprep.subr.bf16.mxu0 0
    %2951 = vmatpush1.bf16.msra.mxu0 0
    %2952 = vmatprep.subr.bf16.mxu0 0
    %2953 = vmatpush1.bf16.msra.mxu0 0
    %2954 = vmatprep.subr.bf16.mxu0 0
    %2955 = vmatpush1.bf16.msra.mxu0 0
    %2956 = vmatprep.subr.bf16.mxu0 0
    %2957 = vmatpush1.bf16.msra.mxu0 0
    %2958 = vmatprep.mubr.bf16.mxu0 0
    %2959 = vmatmul.mubr.bf16.gmra.mrb[0].mxu0 %v2924
    %v2960 = vpop.f32.mrb[0].mxu0
    %v2961 = vadd.f32 %v2906, %v2960
    %v2962 = vpop.f32.mrb[0].mxu0
    %v2963 = vpop.f32.mrb[0].mxu0
    %v2964 = vpop.f32.mrb[0].mxu0
    %2965 = vdwg.mxu0
    %2966 = vrot.lane.b32.xlu0 %v2634, 64
    %v2967 = vpop.permute.xlu0 %2966
    %2968 = vrot.lane.b32.xlu0 %v2635, 64
    %v2969 = vpop.permute.xlu0 %2968
    %v2971 = vsel %vm604, %v2967, 0
    %v2974 = vsel %vm604, %v2969, 0
    %2976 = vmatprep.subr.bf16.mxu0 0
    %2977 = vmatpush1.bf16.xpose.msra.mxu0 %v2974
    %2978 = vmatprep.subr.bf16.mxu0 0
    %2979 = vmatpush1.bf16.xpose.msra.mxu0 0
    %2980 = vmatprep.subr.bf16.mxu0 0
    %2981 = vmatpush1.bf16.xpose.msra.mxu0 0
    %2982 = vmatprep.subr.bf16.mxu0 0
    %2983 = vmatpush1.bf16.xpose.msra.mxu0 0
    %2984 = vmatprep.subr.bf16.mxu0 0
    %2985 = vmatpush1.bf16.xpose.msra.mxu0 0
    %2986 = vmatprep.subr.bf16.mxu0 0
    %2987 = vmatpush1.bf16.xpose.msra.mxu0 0
    %2988 = vmatprep.subr.bf16.mxu0 0
    %2989 = vmatpush1.bf16.xpose.msra.mxu0 0
    %2990 = vmatprep.subr.bf16.mxu0 0
    %2991 = vmatpush1.bf16.xpose.msra.mxu0 0
    %2992 = vmatprep.subr.bf16.mxu0 0
    %2993 = vmatpush1.bf16.xpose.msra.mxu0 0
    %2994 = vmatprep.subr.bf16.mxu0 0
    %2995 = vmatpush1.bf16.xpose.msra.mxu0 0
    %2996 = vmatprep.subr.bf16.mxu0 0
    %2997 = vmatpush1.bf16.xpose.msra.mxu0 0
    %2998 = vmatprep.subr.bf16.mxu0 0
    %2999 = vmatpush1.bf16.xpose.msra.mxu0 0
    %3000 = vmatprep.subr.bf16.mxu0 0
    %3001 = vmatpush1.bf16.xpose.msra.mxu0 0
    %3002 = vmatprep.subr.bf16.mxu0 0
    %3003 = vmatpush1.bf16.xpose.msra.mxu0 0
    %3004 = vmatprep.subr.bf16.mxu0 0
    %3005 = vmatpush1.bf16.xpose.msra.mxu0 0
    %3006 = vmatprep.subr.bf16.mxu0 0
    %3007 = vmatpush1.bf16.xpose.msra.mxu0 0
    %3008 = vmatprep.mubr.bf16.mxu0 0
    %3009 = vmatmul.mubr.bf16.gmra.mrb[0].mxu0 %v2971
    %v3010 = vpop.f32.mrb[0].mxu0
    %v3011 = vadd.f32 %v603, %v3010
    %v3012 = vpop.f32.mrb[0].mxu0
    %v3013 = vpop.f32.mrb[0].mxu0
    %v3014 = vpop.f32.mrb[0].mxu0
    %3015 = vdwg.mxu0
    %v3016 = vsel %vm651, %v3011, -inf
    %3017 = vmax.xlane.f32.xlu0 %v3016
    %v3018 = vpop.xlane.xlu0 %3017
    %v3019 = vsub.f32 %v3011, %v3018
    %v3020 = vmul.f32 %v3019, 1.442695
    %v3021 = vpow.pop %v3020
    %v3022 = vsel %vm651, %v3021, 0.0
    %3023 = vadd.xlane.f32.xlu0 %v3022
    %v3024 = vpop.xlane.xlu0 %3023
    %v3025 = vrcp.pop %v3024
    %v3026 = vmul.f32 %v3021, %v3025
    %v3027 = vpack.c.bf16 %v3026, %v3026
    %3028 = vrot.lane.b32.xlu0 %v2636, 64
    %v3029 = vpop.permute.xlu0 %3028
    %v3031 = vsel %vm651, %v3027, 0
    %v3034 = vsel %vm667, %v3029, 0
    %3036 = vmatprep.subr.bf16.mxu0 0
    %3037 = vmatpush1.bf16.msra.mxu0 %v3034
    %3038 = vmatprep.subr.bf16.mxu0 0
    %3039 = vmatpush1.bf16.msra.mxu0 0
    %3040 = vmatprep.subr.bf16.mxu0 0
    %3041 = vmatpush1.bf16.msra.mxu0 0
    %3042 = vmatprep.subr.bf16.mxu0 0
    %3043 = vmatpush1.bf16.msra.mxu0 0
    %3044 = vmatprep.subr.bf16.mxu0 0
    %3045 = vmatpush1.bf16.msra.mxu0 0
    %3046 = vmatprep.subr.bf16.mxu0 0
    %3047 = vmatpush1.bf16.msra.mxu0 0
    %3048 = vmatprep.subr.bf16.mxu0 0
    %3049 = vmatpush1.bf16.msra.mxu0 0
    %3050 = vmatprep.subr.bf16.mxu0 0
    %3051 = vmatpush1.bf16.msra.mxu0 0
    %3052 = vmatprep.subr.bf16.mxu0 0
    %3053 = vmatpush1.bf16.msra.mxu0 0
    %3054 = vmatprep.subr.bf16.mxu0 0
    %3055 = vmatpush1.bf16.msra.mxu0 0
    %3056 = vmatprep.subr.bf16.mxu0 0
    %3057 = vmatpush1.bf16.msra.mxu0 0
    %3058 = vmatprep.subr.bf16.mxu0 0
    %3059 = vmatpush1.bf16.msra.mxu0 0
    %3060 = vmatprep.subr.bf16.mxu0 0
    %3061 = vmatpush1.bf16.msra.mxu0 0
    %3062 = vmatprep.subr.bf16.mxu0 0
    %3063 = vmatpush1.bf16.msra.mxu0 0
    %3064 = vmatprep.subr.bf16.mxu0 0
    %3065 = vmatpush1.bf16.msra.mxu0 0
    %3066 = vmatprep.subr.bf16.mxu0 0
    %3067 = vmatpush1.bf16.msra.mxu0 0
    %3068 = vmatprep.mubr.bf16.mxu0 0
    %3069 = vmatmul.mubr.bf16.gmra.mrb[0].mxu0 %v3031
    %v3070 = vpop.f32.mrb[0].mxu0
    %v3071 = vadd.f32 0.0, %v3070
    %v3072 = vpop.f32.mrb[0].mxu0
    %v3073 = vpop.f32.mrb[0].mxu0
    %v3074 = vpop.f32.mrb[0].mxu0
    %3075 = vdwg.mxu0
    %v3076 = vpack.c.bf16 %v3071, %v3071
    %v3081 = vunpack.c.l.b16 %v2345
    %v3082 = vunpack.c.l.b16 %v2346
    %v3083 = vunpack.c.l.b16 %v2347
    %v3084 = vunpack.c.l.b16 %v2348
    %v3085 = vpack.c.b16 %v3082, %v3081
    %v3086 = vpack.c.b16 %v3084, %v3083
    %v3090 = vsel %vm604, %v3076, 0
    %3092 = vmatprep.subr.bf16.mxu0 0
    %3093 = vmatpush1.bf16.msra.mxu0 %v3085
    %3094 = vmatprep.subr.bf16.mxu0 0
    %3095 = vmatpush1.bf16.msra.mxu0 %v3086
    %3096 = vmatprep.subr.bf16.mxu0 0
    %3097 = vmatpush1.bf16.msra.mxu0 0
    %3098 = vmatprep.subr.bf16.mxu0 0
    %3099 = vmatpush1.bf16.msra.mxu0 0
    %3100 = vmatprep.subr.bf16.mxu0 0
    %3101 = vmatpush1.bf16.msra.mxu0 0
    %3102 = vmatprep.subr.bf16.mxu0 0
    %3103 = vmatpush1.bf16.msra.mxu0 0
    %3104 = vmatprep.subr.bf16.mxu0 0
    %3105 = vmatpush1.bf16.msra.mxu0 0
    %3106 = vmatprep.subr.bf16.mxu0 0
    %3107 = vmatpush1.bf16.msra.mxu0 0
    %3108 = vmatprep.subr.bf16.mxu0 0
    %3109 = vmatpush1.bf16.msra.mxu0 0
    %3110 = vmatprep.subr.bf16.mxu0 0
    %3111 = vmatpush1.bf16.msra.mxu0 0
    %3112 = vmatprep.subr.bf16.mxu0 0
    %3113 = vmatpush1.bf16.msra.mxu0 0
    %3114 = vmatprep.subr.bf16.mxu0 0
    %3115 = vmatpush1.bf16.msra.mxu0 0
    %3116 = vmatprep.subr.bf16.mxu0 0
    %3117 = vmatpush1.bf16.msra.mxu0 0
    %3118 = vmatprep.subr.bf16.mxu0 0
    %3119 = vmatpush1.bf16.msra.mxu0 0
    %3120 = vmatprep.subr.bf16.mxu0 0
    %3121 = vmatpush1.bf16.msra.mxu0 0
    %3122 = vmatprep.subr.bf16.mxu0 0
    %3123 = vmatpush1.bf16.msra.mxu0 0
    %3124 = vmatprep.mubr.bf16.mxu0 0
    %3125 = vmatmul.mubr.bf16.gmra.mrb[0].mxu0 %v3090
    %v3126 = vpop.f32.mrb[0].mxu0
    %v3127 = vadd.f32 0.0, %v3126
    %v3128 = vpop.f32.mrb[0].mxu0
    %v3129 = vpop.f32.mrb[0].mxu0
    %v3130 = vpop.f32.mrb[0].mxu0
    %3131 = vdwg.mxu0
    %v3132 = vadd.f32 %v2961, %v3127
    %3133 = vrot.lane.b32.xlu0 %v2634, 32
    %v3134 = vpop.permute.xlu0 %3133
    %3135 = vrot.lane.b32.xlu0 %v2635, 32
    %v3136 = vpop.permute.xlu0 %3135
    %v3138 = vsel %vm604, %v3134, 0
    %v3141 = vsel %vm604, %v3136, 0
    %3143 = vmatprep.subr.bf16.mxu0 0
    %3144 = vmatpush1.bf16.xpose.msra.mxu0 %v3141
    %3145 = vmatprep.subr.bf16.mxu0 0
    %3146 = vmatpush1.bf16.xpose.msra.mxu0 0
    %3147 = vmatprep.subr.bf16.mxu0 0
    %3148 = vmatpush1.bf16.xpose.msra.mxu0 0
    %3149 = vmatprep.subr.bf16.mxu0 0
    %3150 = vmatpush1.bf16.xpose.msra.mxu0 0
    %3151 = vmatprep.subr.bf16.mxu0 0
    %3152 = vmatpush1.bf16.xpose.msra.mxu0 0
    %3153 = vmatprep.subr.bf16.mxu0 0
    %3154 = vmatpush1.bf16.xpose.msra.mxu0 0
    %3155 = vmatprep.subr.bf16.mxu0 0
    %3156 = vmatpush1.bf16.xpose.msra.mxu0 0
    %3157 = vmatprep.subr.bf16.mxu0 0
    %3158 = vmatpush1.bf16.xpose.msra.mxu0 0
    %3159 = vmatprep.subr.bf16.mxu0 0
    %3160 = vmatpush1.bf16.xpose.msra.mxu0 0
    %3161 = vmatprep.subr.bf16.mxu0 0
    %3162 = vmatpush1.bf16.xpose.msra.mxu0 0
    %3163 = vmatprep.subr.bf16.mxu0 0
    %3164 = vmatpush1.bf16.xpose.msra.mxu0 0
    %3165 = vmatprep.subr.bf16.mxu0 0
    %3166 = vmatpush1.bf16.xpose.msra.mxu0 0
    %3167 = vmatprep.subr.bf16.mxu0 0
    %3168 = vmatpush1.bf16.xpose.msra.mxu0 0
    %3169 = vmatprep.subr.bf16.mxu0 0
    %3170 = vmatpush1.bf16.xpose.msra.mxu0 0
    %3171 = vmatprep.subr.bf16.mxu0 0
    %3172 = vmatpush1.bf16.xpose.msra.mxu0 0
    %3173 = vmatprep.subr.bf16.mxu0 0
    %3174 = vmatpush1.bf16.xpose.msra.mxu0 0
    %3175 = vmatprep.mubr.bf16.mxu0 0
    %3176 = vmatmul.mubr.bf16.gmra.mrb[0].mxu0 %v3138
    %v3177 = vpop.f32.mrb[0].mxu0
    %v3178 = vadd.f32 %v603, %v3177
    %v3179 = vpop.f32.mrb[0].mxu0
    %v3180 = vpop.f32.mrb[0].mxu0
    %v3181 = vpop.f32.mrb[0].mxu0
    %3182 = vdwg.mxu0
    %v3183 = vsel %vm651, %v3178, -inf
    %3184 = vmax.xlane.f32.xlu0 %v3183
    %v3185 = vpop.xlane.xlu0 %3184
    %v3186 = vsub.f32 %v3178, %v3185
    %v3187 = vmul.f32 %v3186, 1.442695
    %v3188 = vpow.pop %v3187
    %v3189 = vsel %vm651, %v3188, 0.0
    %3190 = vadd.xlane.f32.xlu0 %v3189
    %v3191 = vpop.xlane.xlu0 %3190
    %v3192 = vrcp.pop %v3191
    %v3193 = vmul.f32 %v3188, %v3192
    %v3194 = vpack.c.bf16 %v3193, %v3193
    %3195 = vrot.lane.b32.xlu0 %v2636, 32
    %v3196 = vpop.permute.xlu0 %3195
    %v3198 = vsel %vm651, %v3194, 0
    %v3201 = vsel %vm667, %v3196, 0
    %3203 = vmatprep.subr.bf16.mxu0 0
    %3204 = vmatpush1.bf16.msra.mxu0 %v3201
    %3205 = vmatprep.subr.bf16.mxu0 0
    %3206 = vmatpush1.bf16.msra.mxu0 0
    %3207 = vmatprep.subr.bf16.mxu0 0
    %3208 = vmatpush1.bf16.msra.mxu0 0
    %3209 = vmatprep.subr.bf16.mxu0 0
    %3210 = vmatpush1.bf16.msra.mxu0 0
    %3211 = vmatprep.subr.bf16.mxu0 0
    %3212 = vmatpush1.bf16.msra.mxu0 0
    %3213 = vmatprep.subr.bf16.mxu0 0
    %3214 = vmatpush1.bf16.msra.mxu0 0
    %3215 = vmatprep.subr.bf16.mxu0 0
    %3216 = vmatpush1.bf16.msra.mxu0 0
    %3217 = vmatprep.subr.bf16.mxu0 0
    %3218 = vmatpush1.bf16.msra.mxu0 0
    %3219 = vmatprep.subr.bf16.mxu0 0
    %3220 = vmatpush1.bf16.msra.mxu0 0
    %3221 = vmatprep.subr.bf16.mxu0 0
    %3222 = vmatpush1.bf16.msra.mxu0 0
    %3223 = vmatprep.subr.bf16.mxu0 0
    %3224 = vmatpush1.bf16.msra.mxu0 0
    %3225 = vmatprep.subr.bf16.mxu0 0
    %3226 = vmatpush1.bf16.msra.mxu0 0
    %3227 = vmatprep.subr.bf16.mxu0 0
    %3228 = vmatpush1.bf16.msra.mxu0 0
    %3229 = vmatprep.subr.bf16.mxu0 0
    %3230 = vmatpush1.bf16.msra.mxu0 0
    %3231 = vmatprep.subr.bf16.mxu0 0
    %3232 = vmatpush1.bf16.msra.mxu0 0
    %3233 = vmatprep.subr.bf16.mxu0 0
    %3234 = vmatpush1.bf16.msra.mxu0 0
    %3235 = vmatprep.mubr.bf16.mxu0 0
    %3236 = vmatmul.mubr.bf16.gmra.mrb[0].mxu0 %v3198
    %v3237 = vpop.f32.mrb[0].mxu0
    %v3238 = vadd.f32 0.0, %v3237
    %v3239 = vpop.f32.mrb[0].mxu0
    %v3240 = vpop.f32.mrb[0].mxu0
    %v3241 = vpop.f32.mrb[0].mxu0
    %3242 = vdwg.mxu0
    %v3243 = vpack.c.bf16 %v3238, %v3238
    %v3248 = vunpack.c.l.b16 %v2349
    %v3249 = vunpack.c.l.b16 %v2350
    %v3250 = vunpack.c.l.b16 %v2351
    %v3251 = vunpack.c.l.b16 %v2352
    %v3252 = vpack.c.b16 %v3249, %v3248
    %v3253 = vpack.c.b16 %v3251, %v3250
    %v3257 = vsel %vm604, %v3243, 0
    %3259 = vmatprep.subr.bf16.mxu0 0
    %3260 = vmatpush1.bf16.msra.mxu0 %v3252
    %3261 = vmatprep.subr.bf16.mxu0 0
    %3262 = vmatpush1.bf16.msra.mxu0 %v3253
    %3263 = vmatprep.subr.bf16.mxu0 0
    %3264 = vmatpush1.bf16.msra.mxu0 0
    %3265 = vmatprep.subr.bf16.mxu0 0
    %3266 = vmatpush1.bf16.msra.mxu0 0
    %3267 = vmatprep.subr.bf16.mxu0 0
    %3268 = vmatpush1.bf16.msra.mxu0 0
    %3269 = vmatprep.subr.bf16.mxu0 0
    %3270 = vmatpush1.bf16.msra.mxu0 0
    %3271 = vmatprep.subr.bf16.mxu0 0
    %3272 = vmatpush1.bf16.msra.mxu0 0
    %3273 = vmatprep.subr.bf16.mxu0 0
    %3274 = vmatpush1.bf16.msra.mxu0 0
    %3275 = vmatprep.subr.bf16.mxu0 0
    %3276 = vmatpush1.bf16.msra.mxu0 0
    %3277 = vmatprep.subr.bf16.mxu0 0
    %3278 = vmatpush1.bf16.msra.mxu0 0
    %3279 = vmatprep.subr.bf16.mxu0 0
    %3280 = vmatpush1.bf16.msra.mxu0 0
    %3281 = vmatprep.subr.bf16.mxu0 0
    %3282 = vmatpush1.bf16.msra.mxu0 0
    %3283 = vmatprep.subr.bf16.mxu0 0
    %3284 = vmatpush1.bf16.msra.mxu0 0
    %3285 = vmatprep.subr.bf16.mxu0 0
    %3286 = vmatpush1.bf16.msra.mxu0 0
    %3287 = vmatprep.subr.bf16.mxu0 0
    %3288 = vmatpush1.bf16.msra.mxu0 0
    %3289 = vmatprep.subr.bf16.mxu0 0
    %3290 = vmatpush1.bf16.msra.mxu0 0
    %3291 = vmatprep.mubr.bf16.mxu0 0
    %3292 = vmatmul.mubr.bf16.gmra.mrb[0].mxu0 %v3257
    %v3293 = vpop.f32.mrb[0].mxu0
    %v3294 = vadd.f32 0.0, %v3293
    %v3295 = vpop.f32.mrb[0].mxu0
    %v3296 = vpop.f32.mrb[0].mxu0
    %v3297 = vpop.f32.mrb[0].mxu0
    %3298 = vdwg.mxu0
    %v3299 = vadd.f32 %v3132, %v3294
    %v3300 = vpack.c.bf16 %v2589, %v2589
    %v3301 = vpack.c.bf16 %v2591, %v2591
    %v3302 = vpack.c.bf16 %v2631, %v2631
    %v3304 = vsel %vm604, %v3300, 0
    %v3307 = vsel %vm604, %v3301, 0
    %3309 = vmatprep.subr.bf16.mxu0 0
    %3310 = vmatpush1.bf16.xpose.msra.mxu0 %v3307
    %3311 = vmatprep.subr.bf16.mxu0 0
    %3312 = vmatpush1.bf16.xpose.msra.mxu0 0
    %3313 = vmatprep.subr.bf16.mxu0 0
    %3314 = vmatpush1.bf16.xpose.msra.mxu0 0
    %3315 = vmatprep.subr.bf16.mxu0 0
    %3316 = vmatpush1.bf16.xpose.msra.mxu0 0
    %3317 = vmatprep.subr.bf16.mxu0 0
    %3318 = vmatpush1.bf16.xpose.msra.mxu0 0
    %3319 = vmatprep.subr.bf16.mxu0 0
    %3320 = vmatpush1.bf16.xpose.msra.mxu0 0
    %3321 = vmatprep.subr.bf16.mxu0 0
    %3322 = vmatpush1.bf16.xpose.msra.mxu0 0
    %3323 = vmatprep.subr.bf16.mxu0 0
    %3324 = vmatpush1.bf16.xpose.msra.mxu0 0
    %3325 = vmatprep.subr.bf16.mxu0 0
    %3326 = vmatpush1.bf16.xpose.msra.mxu0 0
    %3327 = vmatprep.subr.bf16.mxu0 0
    %3328 = vmatpush1.bf16.xpose.msra.mxu0 0
    %3329 = vmatprep.subr.bf16.mxu0 0
    %3330 = vmatpush1.bf16.xpose.msra.mxu0 0
    %3331 = vmatprep.subr.bf16.mxu0 0
    %3332 = vmatpush1.bf16.xpose.msra.mxu0 0
    %3333 = vmatprep.subr.bf16.mxu0 0
    %3334 = vmatpush1.bf16.xpose.msra.mxu0 0
    %3335 = vmatprep.subr.bf16.mxu0 0
    %3336 = vmatpush1.bf16.xpose.msra.mxu0 0
    %3337 = vmatprep.subr.bf16.mxu0 0
    %3338 = vmatpush1.bf16.xpose.msra.mxu0 0
    %3339 = vmatprep.subr.bf16.mxu0 0
    %3340 = vmatpush1.bf16.xpose.msra.mxu0 0
    %3341 = vmatprep.mubr.bf16.mxu0 0
    %3342 = vmatmul.mubr.bf16.gmra.mrb[0].mxu0 %v3304
    %v3343 = vpop.f32.mrb[0].mxu0
    %v3344 = vadd.f32 %v1276, %v3343
    %v3345 = vpop.f32.mrb[0].mxu0
    %v3346 = vpop.f32.mrb[0].mxu0
    %v3347 = vpop.f32.mrb[0].mxu0
    %3348 = vdwg.mxu0
    %v3349 = vsel %vm651, %v3344, -inf
    %3350 = vmax.xlane.f32.xlu0 %v3349
    %v3351 = vpop.xlane.xlu0 %3350
    %v3352 = vsub.f32 %v3344, %v3351
    %v3353 = vmul.f32 %v3352, 1.442695
    %v3354 = vpow.pop %v3353
    %v3355 = vsel %vm651, %v3354, 0.0
    %3356 = vadd.xlane.f32.xlu0 %v3355
    %v3357 = vpop.xlane.xlu0 %3356
    %v3358 = vrcp.pop %v3357
    %v3359 = vmul.f32 %v3354, %v3358
    %v3360 = vpack.c.bf16 %v3359, %v3359
    %v3362 = vsel %vm651, %v3360, 0
    %v3365 = vsel %vm667, %v3302, 0
    %3367 = vmatprep.subr.bf16.mxu0 0
    %3368 = vmatpush1.bf16.msra.mxu0 %v3365
    %3369 = vmatprep.subr.bf16.mxu0 0
    %3370 = vmatpush1.bf16.msra.mxu0 0
    %3371 = vmatprep.subr.bf16.mxu0 0
    %3372 = vmatpush1.bf16.msra.mxu0 0
    %3373 = vmatprep.subr.bf16.mxu0 0
    %3374 = vmatpush1.bf16.msra.mxu0 0
    %3375 = vmatprep.subr.bf16.mxu0 0
    %3376 = vmatpush1.bf16.msra.mxu0 0
    %3377 = vmatprep.subr.bf16.mxu0 0
    %3378 = vmatpush1.bf16.msra.mxu0 0
    %3379 = vmatprep.subr.bf16.mxu0 0
    %3380 = vmatpush1.bf16.msra.mxu0 0
    %3381 = vmatprep.subr.bf16.mxu0 0
    %3382 = vmatpush1.bf16.msra.mxu0 0
    %3383 = vmatprep.subr.bf16.mxu0 0
    %3384 = vmatpush1.bf16.msra.mxu0 0
    %3385 = vmatprep.subr.bf16.mxu0 0
    %3386 = vmatpush1.bf16.msra.mxu0 0
    %3387 = vmatprep.subr.bf16.mxu0 0
    %3388 = vmatpush1.bf16.msra.mxu0 0
    %3389 = vmatprep.subr.bf16.mxu0 0
    %3390 = vmatpush1.bf16.msra.mxu0 0
    %3391 = vmatprep.subr.bf16.mxu0 0
    %3392 = vmatpush1.bf16.msra.mxu0 0
    %3393 = vmatprep.subr.bf16.mxu0 0
    %3394 = vmatpush1.bf16.msra.mxu0 0
    %3395 = vmatprep.subr.bf16.mxu0 0
    %3396 = vmatpush1.bf16.msra.mxu0 0
    %3397 = vmatprep.subr.bf16.mxu0 0
    %3398 = vmatpush1.bf16.msra.mxu0 0
    %3399 = vmatprep.mubr.bf16.mxu0 0
    %3400 = vmatmul.mubr.bf16.gmra.mrb[0].mxu0 %v3362
    %v3401 = vpop.f32.mrb[0].mxu0
    %v3402 = vadd.f32 0.0, %v3401
    %v3403 = vpop.f32.mrb[0].mxu0
    %v3404 = vpop.f32.mrb[0].mxu0
    %v3405 = vpop.f32.mrb[0].mxu0
    %3406 = vdwg.mxu0
    %v3407 = vpack.c.bf16 %v3402, %v3402
    %3409 = vrot.lane.b32.xlu0 %v3300, 96
    %v3410 = vpop.permute.xlu0 %3409
    %3412 = vrot.lane.b32.xlu0 %v3301, 96
    %v3413 = vpop.permute.xlu0 %3412
    %v3415 = vsel %vm604, %v3410, 0
    %v3418 = vsel %vm604, %v3413, 0
    %3420 = vmatprep.subr.bf16.mxu0 0
    %3421 = vmatpush1.bf16.xpose.msra.mxu0 %v3418
    %3422 = vmatprep.subr.bf16.mxu0 0
    %3423 = vmatpush1.bf16.xpose.msra.mxu0 0
    %3424 = vmatprep.subr.bf16.mxu0 0
    %3425 = vmatpush1.bf16.xpose.msra.mxu0 0
    %3426 = vmatprep.subr.bf16.mxu0 0
    %3427 = vmatpush1.bf16.xpose.msra.mxu0 0
    %3428 = vmatprep.subr.bf16.mxu0 0
    %3429 = vmatpush1.bf16.xpose.msra.mxu0 0
    %3430 = vmatprep.subr.bf16.mxu0 0
    %3431 = vmatpush1.bf16.xpose.msra.mxu0 0
    %3432 = vmatprep.subr.bf16.mxu0 0
    %3433 = vmatpush1.bf16.xpose.msra.mxu0 0
    %3434 = vmatprep.subr.bf16.mxu0 0
    %3435 = vmatpush1.bf16.xpose.msra.mxu0 0
    %3436 = vmatprep.subr.bf16.mxu0 0
    %3437 = vmatpush1.bf16.xpose.msra.mxu0 0
    %3438 = vmatprep.subr.bf16.mxu0 0
    %3439 = vmatpush1.bf16.xpose.msra.mxu0 0
    %3440 = vmatprep.subr.bf16.mxu0 0
    %3441 = vmatpush1.bf16.xpose.msra.mxu0 0
    %3442 = vmatprep.subr.bf16.mxu0 0
    %3443 = vmatpush1.bf16.xpose.msra.mxu0 0
    %3444 = vmatprep.subr.bf16.mxu0 0
    %3445 = vmatpush1.bf16.xpose.msra.mxu0 0
    %3446 = vmatprep.subr.bf16.mxu0 0
    %3447 = vmatpush1.bf16.xpose.msra.mxu0 0
    %3448 = vmatprep.subr.bf16.mxu0 0
    %3449 = vmatpush1.bf16.xpose.msra.mxu0 0
    %3450 = vmatprep.subr.bf16.mxu0 0
    %3451 = vmatpush1.bf16.xpose.msra.mxu0 0
    %3452 = vmatprep.mubr.bf16.mxu0 0
    %3453 = vmatmul.mubr.bf16.gmra.mrb[0].mxu0 %v3415
    %v3454 = vpop.f32.mrb[0].mxu0
    %v3455 = vadd.f32 %v1276, %v3454
    %v3456 = vpop.f32.mrb[0].mxu0
    %v3457 = vpop.f32.mrb[0].mxu0
    %v3458 = vpop.f32.mrb[0].mxu0
    %3459 = vdwg.mxu0
    %v3460 = vsel %vm651, %v3455, -inf
    %3461 = vmax.xlane.f32.xlu0 %v3460
    %v3462 = vpop.xlane.xlu0 %3461
    %v3463 = vsub.f32 %v3455, %v3462
    %v3464 = vmul.f32 %v3463, 1.442695
    %v3465 = vpow.pop %v3464
    %v3466 = vsel %vm651, %v3465, 0.0
    %3467 = vadd.xlane.f32.xlu0 %v3466
    %v3468 = vpop.xlane.xlu0 %3467
    %v3469 = vrcp.pop %v3468
    %v3470 = vmul.f32 %v3465, %v3469
    %v3471 = vpack.c.bf16 %v3470, %v3470
    %3473 = vrot.lane.b32.xlu0 %v3302, 96
    %v3474 = vpop.permute.xlu0 %3473
    %v3476 = vsel %vm651, %v3471, 0
    %v3479 = vsel %vm667, %v3474, 0
    %3481 = vmatprep.subr.bf16.mxu0 0
    %3482 = vmatpush1.bf16.msra.mxu0 %v3479
    %3483 = vmatprep.subr.bf16.mxu0 0
    %3484 = vmatpush1.bf16.msra.mxu0 0
    %3485 = vmatprep.subr.bf16.mxu0 0
    %3486 = vmatpush1.bf16.msra.mxu0 0
    %3487 = vmatprep.subr.bf16.mxu0 0
    %3488 = vmatpush1.bf16.msra.mxu0 0
    %3489 = vmatprep.subr.bf16.mxu0 0
    %3490 = vmatpush1.bf16.msra.mxu0 0
    %3491 = vmatprep.subr.bf16.mxu0 0
    %3492 = vmatpush1.bf16.msra.mxu0 0
    %3493 = vmatprep.subr.bf16.mxu0 0
    %3494 = vmatpush1.bf16.msra.mxu0 0
    %3495 = vmatprep.subr.bf16.mxu0 0
    %3496 = vmatpush1.bf16.msra.mxu0 0
    %3497 = vmatprep.subr.bf16.mxu0 0
    %3498 = vmatpush1.bf16.msra.mxu0 0
    %3499 = vmatprep.subr.bf16.mxu0 0
    %3500 = vmatpush1.bf16.msra.mxu0 0
    %3501 = vmatprep.subr.bf16.mxu0 0
    %3502 = vmatpush1.bf16.msra.mxu0 0
    %3503 = vmatprep.subr.bf16.mxu0 0
    %3504 = vmatpush1.bf16.msra.mxu0 0
    %3505 = vmatprep.subr.bf16.mxu0 0
    %3506 = vmatpush1.bf16.msra.mxu0 0
    %3507 = vmatprep.subr.bf16.mxu0 0
    %3508 = vmatpush1.bf16.msra.mxu0 0
    %3509 = vmatprep.subr.bf16.mxu0 0
    %3510 = vmatpush1.bf16.msra.mxu0 0
    %3511 = vmatprep.subr.bf16.mxu0 0
    %3512 = vmatpush1.bf16.msra.mxu0 0
    %3513 = vmatprep.mubr.bf16.mxu0 0
    %3514 = vmatmul.mubr.bf16.gmra.mrb[0].mxu0 %v3476
    %v3515 = vpop.f32.mrb[0].mxu0
    %v3516 = vadd.f32 0.0, %v3515
    %v3517 = vpop.f32.mrb[0].mxu0
    %v3518 = vpop.f32.mrb[0].mxu0
    %v3519 = vpop.f32.mrb[0].mxu0
    %3520 = vdwg.mxu0
    %v3521 = vpack.c.bf16 %v3516, %v3516
    %v3523 = vsel %vm604, %v3521, 0
    %3525 = vmatprep.subr.bf16.mxu0 0
    %3526 = vmatpush1.bf16.msra.mxu0 %v2864
    %3527 = vmatprep.subr.bf16.mxu0 0
    %3528 = vmatpush1.bf16.msra.mxu0 %v2865
    %3529 = vmatprep.subr.bf16.mxu0 0
    %3530 = vmatpush1.bf16.msra.mxu0 0
    %3531 = vmatprep.subr.bf16.mxu0 0
    %3532 = vmatpush1.bf16.msra.mxu0 0
    %3533 = vmatprep.subr.bf16.mxu0 0
    %3534 = vmatpush1.bf16.msra.mxu0 0
    %3535 = vmatprep.subr.bf16.mxu0 0
    %3536 = vmatpush1.bf16.msra.mxu0 0
    %3537 = vmatprep.subr.bf16.mxu0 0
    %3538 = vmatpush1.bf16.msra.mxu0 0
    %3539 = vmatprep.subr.bf16.mxu0 0
    %3540 = vmatpush1.bf16.msra.mxu0 0
    %3541 = vmatprep.subr.bf16.mxu0 0
    %3542 = vmatpush1.bf16.msra.mxu0 0
    %3543 = vmatprep.subr.bf16.mxu0 0
    %3544 = vmatpush1.bf16.msra.mxu0 0
    %3545 = vmatprep.subr.bf16.mxu0 0
    %3546 = vmatpush1.bf16.msra.mxu0 0
    %3547 = vmatprep.subr.bf16.mxu0 0
    %3548 = vmatpush1.bf16.msra.mxu0 0
    %3549 = vmatprep.subr.bf16.mxu0 0
    %3550 = vmatpush1.bf16.msra.mxu0 0
    %3551 = vmatprep.subr.bf16.mxu0 0
    %3552 = vmatpush1.bf16.msra.mxu0 0
    %3553 = vmatprep.subr.bf16.mxu0 0
    %3554 = vmatpush1.bf16.msra.mxu0 0
    %3555 = vmatprep.subr.bf16.mxu0 0
    %3556 = vmatpush1.bf16.msra.mxu0 0
    %3557 = vmatprep.mubr.bf16.mxu0 0
    %3558 = vmatmul.mubr.bf16.gmra.mrb[0].mxu0 %v3523
    %v3559 = vpop.f32.mrb[0].mxu0
    %v3560 = vadd.f32 0.0, %v3559
    %v3561 = vpop.f32.mrb[0].mxu0
    %v3562 = vpop.f32.mrb[0].mxu0
    %v3563 = vpop.f32.mrb[0].mxu0
    %3564 = vdwg.mxu0
    %v3566 = vsel %vm604, %v3407, 0
    %3568 = vmatprep.subr.bf16.mxu0 0
    %3569 = vmatpush1.bf16.msra.mxu0 %v2919
    %3570 = vmatprep.subr.bf16.mxu0 0
    %3571 = vmatpush1.bf16.msra.mxu0 %v2920
    %3572 = vmatprep.subr.bf16.mxu0 0
    %3573 = vmatpush1.bf16.msra.mxu0 0
    %3574 = vmatprep.subr.bf16.mxu0 0
    %3575 = vmatpush1.bf16.msra.mxu0 0
    %3576 = vmatprep.subr.bf16.mxu0 0
    %3577 = vmatpush1.bf16.msra.mxu0 0
    %3578 = vmatprep.subr.bf16.mxu0 0
    %3579 = vmatpush1.bf16.msra.mxu0 0
    %3580 = vmatprep.subr.bf16.mxu0 0
    %3581 = vmatpush1.bf16.msra.mxu0 0
    %3582 = vmatprep.subr.bf16.mxu0 0
    %3583 = vmatpush1.bf16.msra.mxu0 0
    %3584 = vmatprep.subr.bf16.mxu0 0
    %3585 = vmatpush1.bf16.msra.mxu0 0
    %3586 = vmatprep.subr.bf16.mxu0 0
    %3587 = vmatpush1.bf16.msra.mxu0 0
    %3588 = vmatprep.subr.bf16.mxu0 0
    %3589 = vmatpush1.bf16.msra.mxu0 0
    %3590 = vmatprep.subr.bf16.mxu0 0
    %3591 = vmatpush1.bf16.msra.mxu0 0
    %3592 = vmatprep.subr.bf16.mxu0 0
    %3593 = vmatpush1.bf16.msra.mxu0 0
    %3594 = vmatprep.subr.bf16.mxu0 0
    %3595 = vmatpush1.bf16.msra.mxu0 0
    %3596 = vmatprep.subr.bf16.mxu0 0
    %3597 = vmatpush1.bf16.msra.mxu0 0
    %3598 = vmatprep.subr.bf16.mxu0 0
    %3599 = vmatpush1.bf16.msra.mxu0 0
    %3600 = vmatprep.mubr.bf16.mxu0 0
    %3601 = vmatmul.mubr.bf16.gmra.mrb[0].mxu0 %v3566
    %v3602 = vpop.f32.mrb[0].mxu0
    %v3603 = vadd.f32 %v3560, %v3602
    %v3604 = vpop.f32.mrb[0].mxu0
    %v3605 = vpop.f32.mrb[0].mxu0
    %v3606 = vpop.f32.mrb[0].mxu0
    %3607 = vdwg.mxu0
    %3608 = vrot.lane.b32.xlu0 %v3300, 64
    %v3609 = vpop.permute.xlu0 %3608
    %3610 = vrot.lane.b32.xlu0 %v3301, 64
    %v3611 = vpop.permute.xlu0 %3610
    %v3613 = vsel %vm604, %v3609, 0
    %v3616 = vsel %vm604, %v3611, 0
    %3618 = vmatprep.subr.bf16.mxu0 0
    %3619 = vmatpush1.bf16.xpose.msra.mxu0 %v3616
    %3620 = vmatprep.subr.bf16.mxu0 0
    %3621 = vmatpush1.bf16.xpose.msra.mxu0 0
    %3622 = vmatprep.subr.bf16.mxu0 0
    %3623 = vmatpush1.bf16.xpose.msra.mxu0 0
    %3624 = vmatprep.subr.bf16.mxu0 0
    %3625 = vmatpush1.bf16.xpose.msra.mxu0 0
    %3626 = vmatprep.subr.bf16.mxu0 0
    %3627 = vmatpush1.bf16.xpose.msra.mxu0 0
    %3628 = vmatprep.subr.bf16.mxu0 0
    %3629 = vmatpush1.bf16.xpose.msra.mxu0 0
    %3630 = vmatprep.subr.bf16.mxu0 0
    %3631 = vmatpush1.bf16.xpose.msra.mxu0 0
    %3632 = vmatprep.subr.bf16.mxu0 0
    %3633 = vmatpush1.bf16.xpose.msra.mxu0 0
    %3634 = vmatprep.subr.bf16.mxu0 0
    %3635 = vmatpush1.bf16.xpose.msra.mxu0 0
    %3636 = vmatprep.subr.bf16.mxu0 0
    %3637 = vmatpush1.bf16.xpose.msra.mxu0 0
    %3638 = vmatprep.subr.bf16.mxu0 0
    %3639 = vmatpush1.bf16.xpose.msra.mxu0 0
    %3640 = vmatprep.subr.bf16.mxu0 0
    %3641 = vmatpush1.bf16.xpose.msra.mxu0 0
    %3642 = vmatprep.subr.bf16.mxu0 0
    %3643 = vmatpush1.bf16.xpose.msra.mxu0 0
    %3644 = vmatprep.subr.bf16.mxu0 0
    %3645 = vmatpush1.bf16.xpose.msra.mxu0 0
    %3646 = vmatprep.subr.bf16.mxu0 0
    %3647 = vmatpush1.bf16.xpose.msra.mxu0 0
    %3648 = vmatprep.subr.bf16.mxu0 0
    %3649 = vmatpush1.bf16.xpose.msra.mxu0 0
    %3650 = vmatprep.mubr.bf16.mxu0 0
    %3651 = vmatmul.mubr.bf16.gmra.mrb[0].mxu0 %v3613
    %v3652 = vpop.f32.mrb[0].mxu0
    %v3653 = vadd.f32 %v1276, %v3652
    %v3654 = vpop.f32.mrb[0].mxu0
    %v3655 = vpop.f32.mrb[0].mxu0
    %v3656 = vpop.f32.mrb[0].mxu0
    %3657 = vdwg.mxu0
    %v3658 = vsel %vm651, %v3653, -inf
    %3659 = vmax.xlane.f32.xlu0 %v3658
    %v3660 = vpop.xlane.xlu0 %3659
    %v3661 = vsub.f32 %v3653, %v3660
    %v3662 = vmul.f32 %v3661, 1.442695
    %v3663 = vpow.pop %v3662
    %v3664 = vsel %vm651, %v3663, 0.0
    %3665 = vadd.xlane.f32.xlu0 %v3664
    %v3666 = vpop.xlane.xlu0 %3665
    %v3667 = vrcp.pop %v3666
    %v3668 = vmul.f32 %v3663, %v3667
    %v3669 = vpack.c.bf16 %v3668, %v3668
    %3670 = vrot.lane.b32.xlu0 %v3302, 64
    %v3671 = vpop.permute.xlu0 %3670
    %v3673 = vsel %vm651, %v3669, 0
    %v3676 = vsel %vm667, %v3671, 0
    %3678 = vmatprep.subr.bf16.mxu0 0
    %3679 = vmatpush1.bf16.msra.mxu0 %v3676
    %3680 = vmatprep.subr.bf16.mxu0 0
    %3681 = vmatpush1.bf16.msra.mxu0 0
    %3682 = vmatprep.subr.bf16.mxu0 0
    %3683 = vmatpush1.bf16.msra.mxu0 0
    %3684 = vmatprep.subr.bf16.mxu0 0
    %3685 = vmatpush1.bf16.msra.mxu0 0
    %3686 = vmatprep.subr.bf16.mxu0 0
    %3687 = vmatpush1.bf16.msra.mxu0 0
    %3688 = vmatprep.subr.bf16.mxu0 0
    %3689 = vmatpush1.bf16.msra.mxu0 0
    %3690 = vmatprep.subr.bf16.mxu0 0
    %3691 = vmatpush1.bf16.msra.mxu0 0
    %3692 = vmatprep.subr.bf16.mxu0 0
    %3693 = vmatpush1.bf16.msra.mxu0 0
    %3694 = vmatprep.subr.bf16.mxu0 0
    %3695 = vmatpush1.bf16.msra.mxu0 0
    %3696 = vmatprep.subr.bf16.mxu0 0
    %3697 = vmatpush1.bf16.msra.mxu0 0
    %3698 = vmatprep.subr.bf16.mxu0 0
    %3699 = vmatpush1.bf16.msra.mxu0 0
    %3700 = vmatprep.subr.bf16.mxu0 0
    %3701 = vmatpush1.bf16.msra.mxu0 0
    %3702 = vmatprep.subr.bf16.mxu0 0
    %3703 = vmatpush1.bf16.msra.mxu0 0
    %3704 = vmatprep.subr.bf16.mxu0 0
    %3705 = vmatpush1.bf16.msra.mxu0 0
    %3706 = vmatprep.subr.bf16.mxu0 0
    %3707 = vmatpush1.bf16.msra.mxu0 0
    %3708 = vmatprep.subr.bf16.mxu0 0
    %3709 = vmatpush1.bf16.msra.mxu0 0
    %3710 = vmatprep.mubr.bf16.mxu0 0
    %3711 = vmatmul.mubr.bf16.gmra.mrb[0].mxu0 %v3673
    %v3712 = vpop.f32.mrb[0].mxu0
    %v3713 = vadd.f32 0.0, %v3712
    %v3714 = vpop.f32.mrb[0].mxu0
    %v3715 = vpop.f32.mrb[0].mxu0
    %v3716 = vpop.f32.mrb[0].mxu0
    %3717 = vdwg.mxu0
    %v3718 = vpack.c.bf16 %v3713, %v3713
    %v3720 = vsel %vm604, %v3718, 0
    %3722 = vmatprep.subr.bf16.mxu0 0
    %3723 = vmatpush1.bf16.msra.mxu0 %v3085
    %3724 = vmatprep.subr.bf16.mxu0 0
    %3725 = vmatpush1.bf16.msra.mxu0 %v3086
    %3726 = vmatprep.subr.bf16.mxu0 0
    %3727 = vmatpush1.bf16.msra.mxu0 0
    %3728 = vmatprep.subr.bf16.mxu0 0
    %3729 = vmatpush1.bf16.msra.mxu0 0
    %3730 = vmatprep.subr.bf16.mxu0 0
    %3731 = vmatpush1.bf16.msra.mxu0 0
    %3732 = vmatprep.subr.bf16.mxu0 0
    %3733 = vmatpush1.bf16.msra.mxu0 0
    %3734 = vmatprep.subr.bf16.mxu0 0
    %3735 = vmatpush1.bf16.msra.mxu0 0
    %3736 = vmatprep.subr.bf16.mxu0 0
    %3737 = vmatpush1.bf16.msra.mxu0 0
    %3738 = vmatprep.subr.bf16.mxu0 0
    %3739 = vmatpush1.bf16.msra.mxu0 0
    %3740 = vmatprep.subr.bf16.mxu0 0
    %3741 = vmatpush1.bf16.msra.mxu0 0
    %3742 = vmatprep.subr.bf16.mxu0 0
    %3743 = vmatpush1.bf16.msra.mxu0 0
    %3744 = vmatprep.subr.bf16.mxu0 0
    %3745 = vmatpush1.bf16.msra.mxu0 0
    %3746 = vmatprep.subr.bf16.mxu0 0
    %3747 = vmatpush1.bf16.msra.mxu0 0
    %3748 = vmatprep.subr.bf16.mxu0 0
    %3749 = vmatpush1.bf16.msra.mxu0 0
    %3750 = vmatprep.subr.bf16.mxu0 0
    %3751 = vmatpush1.bf16.msra.mxu0 0
    %3752 = vmatprep.subr.bf16.mxu0 0
    %3753 = vmatpush1.bf16.msra.mxu0 0
    %3754 = vmatprep.mubr.bf16.mxu0 0
    %3755 = vmatmul.mubr.bf16.gmra.mrb[0].mxu0 %v3720
    %v3756 = vpop.f32.mrb[0].mxu0
    %v3757 = vadd.f32 0.0, %v3756
    %v3758 = vpop.f32.mrb[0].mxu0
    %v3759 = vpop.f32.mrb[0].mxu0
    %v3760 = vpop.f32.mrb[0].mxu0
    %3761 = vdwg.mxu0
    %v3762 = vadd.f32 %v3603, %v3757
    %3763 = vrot.lane.b32.xlu0 %v3300, 32
    %v3764 = vpop.permute.xlu0 %3763
    %3765 = vrot.lane.b32.xlu0 %v3301, 32
    %v3766 = vpop.permute.xlu0 %3765
    %v3768 = vsel %vm604, %v3764, 0
    %v3771 = vsel %vm604, %v3766, 0
    %3773 = vmatprep.subr.bf16.mxu0 0
    %3774 = vmatpush1.bf16.xpose.msra.mxu0 %v3771
    %3775 = vmatprep.subr.bf16.mxu0 0
    %3776 = vmatpush1.bf16.xpose.msra.mxu0 0
    %3777 = vmatprep.subr.bf16.mxu0 0
    %3778 = vmatpush1.bf16.xpose.msra.mxu0 0
    %3779 = vmatprep.subr.bf16.mxu0 0
    %3780 = vmatpush1.bf16.xpose.msra.mxu0 0
    %3781 = vmatprep.subr.bf16.mxu0 0
    %3782 = vmatpush1.bf16.xpose.msra.mxu0 0
    %3783 = vmatprep.subr.bf16.mxu0 0
    %3784 = vmatpush1.bf16.xpose.msra.mxu0 0
    %3785 = vmatprep.subr.bf16.mxu0 0
    %3786 = vmatpush1.bf16.xpose.msra.mxu0 0
    %3787 = vmatprep.subr.bf16.mxu0 0
    %3788 = vmatpush1.bf16.xpose.msra.mxu0 0
    %3789 = vmatprep.subr.bf16.mxu0 0
    %3790 = vmatpush1.bf16.xpose.msra.mxu0 0
    %3791 = vmatprep.subr.bf16.mxu0 0
    %3792 = vmatpush1.bf16.xpose.msra.mxu0 0
    %3793 = vmatprep.subr.bf16.mxu0 0
    %3794 = vmatpush1.bf16.xpose.msra.mxu0 0
    %3795 = vmatprep.subr.bf16.mxu0 0
    %3796 = vmatpush1.bf16.xpose.msra.mxu0 0
    %3797 = vmatprep.subr.bf16.mxu0 0
    %3798 = vmatpush1.bf16.xpose.msra.mxu0 0
    %3799 = vmatprep.subr.bf16.mxu0 0
    %3800 = vmatpush1.bf16.xpose.msra.mxu0 0
    %3801 = vmatprep.subr.bf16.mxu0 0
    %3802 = vmatpush1.bf16.xpose.msra.mxu0 0
    %3803 = vmatprep.subr.bf16.mxu0 0
    %3804 = vmatpush1.bf16.xpose.msra.mxu0 0
    %3805 = vmatprep.mubr.bf16.mxu0 0
    %3806 = vmatmul.mubr.bf16.gmra.mrb[0].mxu0 %v3768
    %v3807 = vpop.f32.mrb[0].mxu0
    %v3808 = vadd.f32 %v1276, %v3807
    %v3809 = vpop.f32.mrb[0].mxu0
    %v3810 = vpop.f32.mrb[0].mxu0
    %v3811 = vpop.f32.mrb[0].mxu0
    %3812 = vdwg.mxu0
    %v3813 = vsel %vm651, %v3808, -inf
    %3814 = vmax.xlane.f32.xlu0 %v3813
    %v3815 = vpop.xlane.xlu0 %3814
    %v3816 = vsub.f32 %v3808, %v3815
    %v3817 = vmul.f32 %v3816, 1.442695
    %v3818 = vpow.pop %v3817
    %v3819 = vsel %vm651, %v3818, 0.0
    %3820 = vadd.xlane.f32.xlu0 %v3819
    %v3821 = vpop.xlane.xlu0 %3820
    %v3822 = vrcp.pop %v3821
    %v3823 = vmul.f32 %v3818, %v3822
    %v3824 = vpack.c.bf16 %v3823, %v3823
    %3825 = vrot.lane.b32.xlu0 %v3302, 32
    %v3826 = vpop.permute.xlu0 %3825
    %v3828 = vsel %vm651, %v3824, 0
    %v3831 = vsel %vm667, %v3826, 0
    %3833 = vmatprep.subr.bf16.mxu0 0
    %3834 = vmatpush1.bf16.msra.mxu0 %v3831
    %3835 = vmatprep.subr.bf16.mxu0 0
    %3836 = vmatpush1.bf16.msra.mxu0 0
    %3837 = vmatprep.subr.bf16.mxu0 0
    %3838 = vmatpush1.bf16.msra.mxu0 0
    %3839 = vmatprep.subr.bf16.mxu0 0
    %3840 = vmatpush1.bf16.msra.mxu0 0
    %3841 = vmatprep.subr.bf16.mxu0 0
    %3842 = vmatpush1.bf16.msra.mxu0 0
    %3843 = vmatprep.subr.bf16.mxu0 0
    %3844 = vmatpush1.bf16.msra.mxu0 0
    %3845 = vmatprep.subr.bf16.mxu0 0
    %3846 = vmatpush1.bf16.msra.mxu0 0
    %3847 = vmatprep.subr.bf16.mxu0 0
    %3848 = vmatpush1.bf16.msra.mxu0 0
    %3849 = vmatprep.subr.bf16.mxu0 0
    %3850 = vmatpush1.bf16.msra.mxu0 0
    %3851 = vmatprep.subr.bf16.mxu0 0
    %3852 = vmatpush1.bf16.msra.mxu0 0
    %3853 = vmatprep.subr.bf16.mxu0 0
    %3854 = vmatpush1.bf16.msra.mxu0 0
    %3855 = vmatprep.subr.bf16.mxu0 0
    %3856 = vmatpush1.bf16.msra.mxu0 0
    %3857 = vmatprep.subr.bf16.mxu0 0
    %3858 = vmatpush1.bf16.msra.mxu0 0
    %3859 = vmatprep.subr.bf16.mxu0 0
    %3860 = vmatpush1.bf16.msra.mxu0 0
    %3861 = vmatprep.subr.bf16.mxu0 0
    %3862 = vmatpush1.bf16.msra.mxu0 0
    %3863 = vmatprep.subr.bf16.mxu0 0
    %3864 = vmatpush1.bf16.msra.mxu0 0
    %3865 = vmatprep.mubr.bf16.mxu0 0
    %3866 = vmatmul.mubr.bf16.gmra.mrb[0].mxu0 %v3828
    %v3867 = vpop.f32.mrb[0].mxu0
    %v3868 = vadd.f32 0.0, %v3867
    %v3869 = vpop.f32.mrb[0].mxu0
    %v3870 = vpop.f32.mrb[0].mxu0
    %v3871 = vpop.f32.mrb[0].mxu0
    %3872 = vdwg.mxu0
    %v3873 = vpack.c.bf16 %v3868, %v3868
    %v3875 = vsel %vm604, %v3873, 0
    %3877 = vmatprep.subr.bf16.mxu0 0
    %3878 = vmatpush1.bf16.msra.mxu0 %v3252
    %3879 = vmatprep.subr.bf16.mxu0 0
    %3880 = vmatpush1.bf16.msra.mxu0 %v3253
    %3881 = vmatprep.subr.bf16.mxu0 0
    %3882 = vmatpush1.bf16.msra.mxu0 0
    %3883 = vmatprep.subr.bf16.mxu0 0
    %3884 = vmatpush1.bf16.msra.mxu0 0
    %3885 = vmatprep.subr.bf16.mxu0 0
    %3886 = vmatpush1.bf16.msra.mxu0 0
    %3887 = vmatprep.subr.bf16.mxu0 0
    %3888 = vmatpush1.bf16.msra.mxu0 0
    %3889 = vmatprep.subr.bf16.mxu0 0
    %3890 = vmatpush1.bf16.msra.mxu0 0
    %3891 = vmatprep.subr.bf16.mxu0 0
    %3892 = vmatpush1.bf16.msra.mxu0 0
    %3893 = vmatprep.subr.bf16.mxu0 0
    %3894 = vmatpush1.bf16.msra.mxu0 0
    %3895 = vmatprep.subr.bf16.mxu0 0
    %3896 = vmatpush1.bf16.msra.mxu0 0
    %3897 = vmatprep.subr.bf16.mxu0 0
    %3898 = vmatpush1.bf16.msra.mxu0 0
    %3899 = vmatprep.subr.bf16.mxu0 0
    %3900 = vmatpush1.bf16.msra.mxu0 0
    %3901 = vmatprep.subr.bf16.mxu0 0
    %3902 = vmatpush1.bf16.msra.mxu0 0
    %3903 = vmatprep.subr.bf16.mxu0 0
    %3904 = vmatpush1.bf16.msra.mxu0 0
    %3905 = vmatprep.subr.bf16.mxu0 0
    %3906 = vmatpush1.bf16.msra.mxu0 0
    %3907 = vmatprep.subr.bf16.mxu0 0
    %3908 = vmatpush1.bf16.msra.mxu0 0
    %3909 = vmatprep.mubr.bf16.mxu0 0
    %3910 = vmatmul.mubr.bf16.gmra.mrb[0].mxu0 %v3875
    %v3911 = vpop.f32.mrb[0].mxu0
    %v3912 = vadd.f32 0.0, %v3911
    %v3913 = vpop.f32.mrb[0].mxu0
    %v3914 = vpop.f32.mrb[0].mxu0
    %v3915 = vpop.f32.mrb[0].mxu0
    %3916 = vdwg.mxu0
    %v3917 = vadd.f32 %v3762, %v3912
    %s3918 = scalar_lea.vmem %s11, 1
    %v3919 = vld [vmem:[%s3918] sm:$0x1]
    %v3921 = vlaneseq
    %v3922 = vshrl.u32 %v3921, 7
    %v3923 = vsub.s32 0, %v3922
    %v3924 = vrot.slane %v3919, %v3923
    %v3926 = vadd.f32 %v3299, %v3924
    %v3927 = vadd.f32 %v3917, %v3924
    %v3928 = vadd.f32 %v2301, %v3926
    %v3929 = vadd.f32 %v2302, %v3927
    %s3930 = scalar_lea.vmem %s12, 1
    %v3931 = vld [vmem:[%s3930] sm:$0x1]
    %s3932 = scalar_lea.vmem %s13, 1
    %v3933 = vld [vmem:[%s3932] sm:$0x1]
    %3934 = vadd.xlane.f32.xlu0 %v3928
    %v3935 = vpop.xlane.xlu0 %3934
    %3936 = vadd.xlane.f32.xlu0 %v3929
    %v3937 = vpop.xlane.xlu0 %3936
    %v3938 = vmul.f32 %v3935, %v233
    %v3939 = vmul.f32 %v3937, %v233
    %v3940 = vsub.f32 %v3928, %v3938
    %v3941 = vsub.f32 %v3929, %v3939
    %v3942 = vmul.f32 %v3940, %v3940
    %v3943 = vmul.f32 %v3941, %v3941
    %3944 = vadd.xlane.f32.xlu0 %v3942
    %v3945 = vpop.xlane.xlu0 %3944
    %3946 = vadd.xlane.f32.xlu0 %v3943
    %v3947 = vpop.xlane.xlu0 %3946
    %v3948 = vmul.f32 %v3945, %v233
    %v3949 = vmul.f32 %v3947, %v233
    %v3950 = vadd.f32 %v3948, 1e-05
    %v3951 = vadd.f32 %v3949, 1e-05
    %v3952 = vrsqrt.pop %v3950
    %v3953 = vrsqrt.pop %v3951
    %v3954 = vmul.f32 %v3940, %v3952
    %v3955 = vmul.f32 %v3941, %v3953
    %v3957 = vlaneseq
    %v3958 = vshrl.u32 %v3957, 7
    %v3959 = vsub.s32 0, %v3958
    %v3960 = vrot.slane %v3931, %v3959
    %v3962 = vmul.f32 %v3954, %v3960
    %v3963 = vmul.f32 %v3955, %v3960
    %v3965 = vlaneseq
    %v3966 = vshrl.u32 %v3965, 7
    %v3967 = vsub.s32 0, %v3966
    %v3968 = vrot.slane %v3933, %v3967
    %v3970 = vadd.f32 %v3962, %v3968
    %v3971 = vadd.f32 %v3963, %v3968
    %v3972 = vpack.c.bf16 %v3971, %v3970
    %s3973 = scalar_lea.vmem %s15, 2
    %v3974 = vld [vmem:[%s3973] sm:$0x3]
    %v3976 = vlaneseq
    %v3977 = vshrl.u32 %v3976, 7
    %v3978 = vsub.s32 0, %v3977
    %v3979 = vrot.slane %v3974, %v3978
    %v3980 = vlaneseq
    %v3981 = vshrl.u32 %v3980, 7
    %v3982 = vsub.s32 1, %v3981
    %v3983 = vrot.slane %v3974, %v3982
    %v4002 = vunpack.c.l.b16 %v2354
    %v4003 = vunpack.c.h.b16 %v2354
    %v4004 = vunpack.c.l.b16 %v2355
    %v4005 = vunpack.c.h.b16 %v2355
    %v4006 = vunpack.c.l.b16 %v2356
    %v4007 = vunpack.c.h.b16 %v2356
    %v4008 = vunpack.c.l.b16 %v2357
    %v4009 = vunpack.c.h.b16 %v2357
    %v4010 = vunpack.c.l.b16 %v2358
    %v4011 = vunpack.c.h.b16 %v2358
    %v4012 = vunpack.c.l.b16 %v2359
    %v4013 = vunpack.c.h.b16 %v2359
    %v4014 = vunpack.c.l.b16 %v2360
    %v4015 = vunpack.c.h.b16 %v2360
    %v4016 = vunpack.c.l.b16 %v2361
    %v4017 = vunpack.c.h.b16 %v2361
    %v4018 = vunpack.c.l.b16 %v2362
    %v4019 = vunpack.c.h.b16 %v2362
    %v4020 = vunpack.c.l.b16 %v2363
    %v4021 = vunpack.c.h.b16 %v2363
    %v4022 = vunpack.c.l.b16 %v2364
    %v4023 = vunpack.c.h.b16 %v2364
    %v4024 = vunpack.c.l.b16 %v2365
    %v4025 = vunpack.c.h.b16 %v2365
    %v4026 = vunpack.c.l.b16 %v2366
    %v4027 = vunpack.c.h.b16 %v2366
    %v4028 = vunpack.c.l.b16 %v2367
    %v4029 = vunpack.c.h.b16 %v2367
    %v4030 = vunpack.c.l.b16 %v2368
    %v4031 = vunpack.c.h.b16 %v2368
    %v4032 = vunpack.c.l.b16 %v2369
    %v4033 = vunpack.c.h.b16 %v2369
    %v4034 = vpack.c.b16 %v4004, %v4002
    %v4035 = vpack.c.b16 %v4005, %v4003
    %v4036 = vpack.c.b16 %v4008, %v4006
    %v4037 = vpack.c.b16 %v4009, %v4007
    %v4038 = vpack.c.b16 %v4012, %v4010
    %v4039 = vpack.c.b16 %v4013, %v4011
    %v4040 = vpack.c.b16 %v4016, %v4014
    %v4041 = vpack.c.b16 %v4017, %v4015
    %v4042 = vpack.c.b16 %v4020, %v4018
    %v4043 = vpack.c.b16 %v4021, %v4019
    %v4044 = vpack.c.b16 %v4024, %v4022
    %v4045 = vpack.c.b16 %v4025, %v4023
    %v4046 = vpack.c.b16 %v4028, %v4026
    %v4047 = vpack.c.b16 %v4029, %v4027
    %v4048 = vpack.c.b16 %v4032, %v4030
    %v4049 = vpack.c.b16 %v4033, %v4031
    %4066 = vmatprep.subr.bf16.mxu0 %v4035
    %4067 = vmatpush1.bf16.msra.mxu0 %v4034
    %4068 = vmatprep.subr.bf16.mxu0 %v4037
    %4069 = vmatpush1.bf16.msra.mxu0 %v4036
    %4070 = vmatprep.subr.bf16.mxu0 %v4039
    %4071 = vmatpush1.bf16.msra.mxu0 %v4038
    %4072 = vmatprep.subr.bf16.mxu0 %v4041
    %4073 = vmatpush1.bf16.msra.mxu0 %v4040
    %4074 = vmatprep.subr.bf16.mxu0 %v4043
    %4075 = vmatpush1.bf16.msra.mxu0 %v4042
    %4076 = vmatprep.subr.bf16.mxu0 %v4045
    %4077 = vmatpush1.bf16.msra.mxu0 %v4044
    %4078 = vmatprep.subr.bf16.mxu0 %v4047
    %4079 = vmatpush1.bf16.msra.mxu0 %v4046
    %4080 = vmatprep.subr.bf16.mxu0 %v4049
    %4081 = vmatpush1.bf16.msra.mxu0 %v4048
    %4082 = vmatprep.subr.bf16.mxu0 0
    %4083 = vmatpush1.bf16.msra.mxu0 0
    %4084 = vmatprep.subr.bf16.mxu0 0
    %4085 = vmatpush1.bf16.msra.mxu0 0
    %4086 = vmatprep.subr.bf16.mxu0 0
    %4087 = vmatpush1.bf16.msra.mxu0 0
    %4088 = vmatprep.subr.bf16.mxu0 0
    %4089 = vmatpush1.bf16.msra.mxu0 0
    %4090 = vmatprep.subr.bf16.mxu0 0
    %4091 = vmatpush1.bf16.msra.mxu0 0
    %4092 = vmatprep.subr.bf16.mxu0 0
    %4093 = vmatpush1.bf16.msra.mxu0 0
    %4094 = vmatprep.subr.bf16.mxu0 0
    %4095 = vmatpush1.bf16.msra.mxu0 0
    %4096 = vmatprep.subr.bf16.mxu0 0
    %4097 = vmatpush1.bf16.msra.mxu0 0
    %4098 = vmatprep.mubr.bf16.mxu0 0
    %4099 = vmatmul.mubr.bf16.gmra.mrb[0].mxu0 %v3972
    %v4100 = vpop.f32.mrb[0].mxu0
    %v4101 = vadd.f32 %v3979, %v4100
    %v4102 = vpop.f32.mrb[0].mxu0
    %v4103 = vadd.f32 %v3983, %v4102
    %v4104 = vpop.f32.mrb[0].mxu0
    %v4105 = vadd.f32 %v3979, %v4104
    %v4106 = vpop.f32.mrb[0].mxu0
    %v4107 = vadd.f32 %v3983, %v4106
    %4108 = vdwg.mxu0
    %v4109 = vmul.f32 %v4101, 0.5
    %v4110 = vmul.f32 %v4103, 0.5
    %v4111 = vmul.f32 %v4105, 0.5
    %v4112 = vmul.f32 %v4107, 0.5
    %v4113 = vmul.f32 %v4101, 0.044715
    %v4114 = vmul.f32 %v4103, 0.044715
    %v4115 = vmul.f32 %v4105, 0.044715
    %v4116 = vmul.f32 %v4107, 0.044715
    %v4117 = vmul.f32 %v4113, %v4101
    %v4118 = vmul.f32 %v4114, %v4103
    %v4119 = vmul.f32 %v4115, %v4105
    %v4120 = vmul.f32 %v4116, %v4107
    %v4121 = vmul.f32 %v4117, %v4101
    %v4122 = vmul.f32 %v4118, %v4103
    %v4123 = vmul.f32 %v4119, %v4105
    %v4124 = vmul.f32 %v4120, %v4107
    %v4125 = vadd.f32 %v4101, %v4121
    %v4126 = vadd.f32 %v4103, %v4122
    %v4127 = vadd.f32 %v4105, %v4123
    %v4128 = vadd.f32 %v4107, %v4124
    %v4129 = vmul.f32 %v4125, 0.7978846
    %v4130 = vmul.f32 %v4126, 0.7978846
    %v4131 = vmul.f32 %v4127, 0.7978846
    %v4132 = vmul.f32 %v4128, 0.7978846
    %v4133 = vtanh.pop %v4129
    %v4134 = vtanh.pop %v4130
    %v4135 = vtanh.pop %v4131
    %v4136 = vtanh.pop %v4132
    %v4137 = vadd.f32 %v4133, 1.0
    %v4138 = vadd.f32 %v4134, 1.0
    %v4139 = vadd.f32 %v4135, 1.0
    %v4140 = vadd.f32 %v4136, 1.0
    %v4141 = vmul.f32 %v4109, %v4137
    %v4142 = vmul.f32 %v4110, %v4138
    %v4143 = vmul.f32 %v4111, %v4139
    %v4144 = vmul.f32 %v4112, %v4140
    %v4145 = vpack.c.bf16 %v4143, %v4141
    %v4146 = vpack.c.bf16 %v4144, %v4142
    %s4147 = scalar_lea.vmem %s17, 1
    %v4148 = vld [vmem:[%s4147] sm:$0x1]
    %v4150 = vlaneseq
    %v4151 = vshrl.u32 %v4150, 7
    %v4152 = vsub.s32 0, %v4151
    %v4153 = vrot.slane %v4148, %v4152
    %v4187 = vunpack.c.l.b16 %v2371
    %v4188 = vunpack.c.l.b16 %v2372
    %v4189 = vunpack.c.l.b16 %v2373
    %v4190 = vunpack.c.l.b16 %v2374
    %v4191 = vunpack.c.l.b16 %v2375
    %v4192 = vunpack.c.l.b16 %v2376
    %v4193 = vunpack.c.l.b16 %v2377
    %v4194 = vunpack.c.l.b16 %v2378
    %v4195 = vunpack.c.l.b16 %v2379
    %v4196 = vunpack.c.l.b16 %v2380
    %v4197 = vunpack.c.l.b16 %v2381
    %v4198 = vunpack.c.l.b16 %v2382
    %v4199 = vunpack.c.l.b16 %v2383
    %v4200 = vunpack.c.l.b16 %v2384
    %v4201 = vunpack.c.l.b16 %v2385
    %v4202 = vunpack.c.l.b16 %v2386
    %v4203 = vunpack.c.l.b16 %v2387
    %v4204 = vunpack.c.l.b16 %v2388
    %v4205 = vunpack.c.l.b16 %v2389
    %v4206 = vunpack.c.l.b16 %v2390
    %v4207 = vunpack.c.l.b16 %v2391
    %v4208 = vunpack.c.l.b16 %v2392
    %v4209 = vunpack.c.l.b16 %v2393
    %v4210 = vunpack.c.l.b16 %v2394
    %v4211 = vunpack.c.l.b16 %v2395
    %v4212 = vunpack.c.l.b16 %v2396
    %v4213 = vunpack.c.l.b16 %v2397
    %v4214 = vunpack.c.l.b16 %v2398
    %v4215 = vunpack.c.l.b16 %v2399
    %v4216 = vunpack.c.l.b16 %v2400
    %v4217 = vunpack.c.l.b16 %v2401
    %v4218 = vunpack.c.l.b16 %v2402
    %v4219 = vpack.c.b16 %v4188, %v4187
    %v4220 = vpack.c.b16 %v4190, %v4189
    %v4221 = vpack.c.b16 %v4192, %v4191
    %v4222 = vpack.c.b16 %v4194, %v4193
    %v4223 = vpack.c.b16 %v4196, %v4195
    %v4224 = vpack.c.b16 %v4198, %v4197
    %v4225 = vpack.c.b16 %v4200, %v4199
    %v4226 = vpack.c.b16 %v4202, %v4201
    %v4227 = vpack.c.b16 %v4204, %v4203
    %v4228 = vpack.c.b16 %v4206, %v4205
    %v4229 = vpack.c.b16 %v4208, %v4207
    %v4230 = vpack.c.b16 %v4210, %v4209
    %v4231 = vpack.c.b16 %v4212, %v4211
    %v4232 = vpack.c.b16 %v4214, %v4213
    %v4233 = vpack.c.b16 %v4216, %v4215
    %v4234 = vpack.c.b16 %v4218, %v4217
    %4251 = vmatprep.subr.bf16.mxu0 0
    %4252 = vmatpush1.bf16.msra.mxu0 %v4219
    %4253 = vmatprep.subr.bf16.mxu0 0
    %4254 = vmatpush1.bf16.msra.mxu0 %v4220
    %4255 = vmatprep.subr.bf16.mxu0 0
    %4256 = vmatpush1.bf16.msra.mxu0 %v4221
    %4257 = vmatprep.subr.bf16.mxu0 0
    %4258 = vmatpush1.bf16.msra.mxu0 %v4222
    %4259 = vmatprep.subr.bf16.mxu0 0
    %4260 = vmatpush1.bf16.msra.mxu0 %v4223
    %4261 = vmatprep.subr.bf16.mxu0 0
    %4262 = vmatpush1.bf16.msra.mxu0 %v4224
    %4263 = vmatprep.subr.bf16.mxu0 0
    %4264 = vmatpush1.bf16.msra.mxu0 %v4225
    %4265 = vmatprep.subr.bf16.mxu0 0
    %4266 = vmatpush1.bf16.msra.mxu0 %v4226
    %4267 = vmatprep.subr.bf16.mxu0 0
    %4268 = vmatpush1.bf16.msra.mxu0 %v4227
    %4269 = vmatprep.subr.bf16.mxu0 0
    %4270 = vmatpush1.bf16.msra.mxu0 %v4228
    %4271 = vmatprep.subr.bf16.mxu0 0
    %4272 = vmatpush1.bf16.msra.mxu0 %v4229
    %4273 = vmatprep.subr.bf16.mxu0 0
    %4274 = vmatpush1.bf16.msra.mxu0 %v4230
    %4275 = vmatprep.subr.bf16.mxu0 0
    %4276 = vmatpush1.bf16.msra.mxu0 %v4231
    %4277 = vmatprep.subr.bf16.mxu0 0
    %4278 = vmatpush1.bf16.msra.mxu0 %v4232
    %4279 = vmatprep.subr.bf16.mxu0 0
    %4280 = vmatpush1.bf16.msra.mxu0 %v4233
    %4281 = vmatprep.subr.bf16.mxu0 0
    %4282 = vmatpush1.bf16.msra.mxu0 %v4234
    %4283 = vmatprep.mubr.bf16.mxu0 %v4146
    %4284 = vmatmul.mubr.bf16.gmra.mrb[0].mxu0 %v4145
    %v4285 = vpop.f32.mrb[0].mxu0
    %v4286 = vadd.f32 %v4153, %v4285
    %v4287 = vpop.f32.mrb[0].mxu0
    %v4288 = vpop.f32.mrb[0].mxu0
    %v4289 = vadd.f32 %v4153, %v4288
    %v4290 = vpop.f32.mrb[0].mxu0
    %4291 = vdwg.mxu0
    %v4292 = vadd.f32 %v3970, %v4286
    %v4293 = vadd.f32 %v3971, %v4289
    %s4294 = scalar_lea.vmem %s18, 1
    %v4295 = vld [vmem:[%s4294] sm:$0x1]
    %s4296 = scalar_lea.vmem %s19, 1
    %v4297 = vld [vmem:[%s4296] sm:$0x1]
    %4298 = vadd.xlane.f32.xlu0 %v4292
    %v4299 = vpop.xlane.xlu0 %4298
    %4300 = vadd.xlane.f32.xlu0 %v4293
    %v4301 = vpop.xlane.xlu0 %4300
    %v4302 = vmul.f32 %v4299, %v233
    %v4303 = vmul.f32 %v4301, %v233
    %v4304 = vsub.f32 %v4292, %v4302
    %v4305 = vsub.f32 %v4293, %v4303
    %v4306 = vmul.f32 %v4304, %v4304
    %v4307 = vmul.f32 %v4305, %v4305
    %4308 = vadd.xlane.f32.xlu0 %v4306
    %v4309 = vpop.xlane.xlu0 %4308
    %4310 = vadd.xlane.f32.xlu0 %v4307
    %v4311 = vpop.xlane.xlu0 %4310
    %v4312 = vmul.f32 %v4309, %v233
    %v4313 = vmul.f32 %v4311, %v233
    %v4314 = vadd.f32 %v4312, 1e-05
    %v4315 = vadd.f32 %v4313, 1e-05
    %v4316 = vrsqrt.pop %v4314
    %v4317 = vrsqrt.pop %v4315
    %v4318 = vmul.f32 %v4304, %v4316
    %v4319 = vmul.f32 %v4305, %v4317
    %v4321 = vlaneseq
    %v4322 = vshrl.u32 %v4321, 7
    %v4323 = vsub.s32 0, %v4322
    %v4324 = vrot.slane %v4295, %v4323
    %v4326 = vmul.f32 %v4318, %v4324
    %v4327 = vmul.f32 %v4319, %v4324
    %v4329 = vlaneseq
    %v4330 = vshrl.u32 %v4329, 7
    %v4331 = vsub.s32 0, %v4330
    %v4332 = vrot.slane %v4297, %v4331
    %v4334 = vadd.f32 %v4326, %v4332
    %v4335 = vadd.f32 %v4327, %v4332
    %v4337 = vrot.slane %v4335, 7
    %vm4339 = vcmask 1040384
    %v4340 = vsel %vm4339, %v4334, %v4337
    %v4341 = vpack.c.bf16 %v4340, %v4340
    %v4342 = vld [vmem:[%s20] sm:$0xf]
    %v4343 = vld [vmem:[%s20 + $0x4] sm:$0xf]
    %v4344 = vld [vmem:[%s20 + $0x8] sm:$0xf]
    %v4345 = vld [vmem:[%s20 + $0xc] sm:$0xf]
    %v4346 = vld [vmem:[%s20 + $0x10] sm:$0xf]
    %v4347 = vld [vmem:[%s20 + $0x14] sm:$0xf]
    %v4348 = vld [vmem:[%s20 + $0x18] sm:$0xf]
    %v4349 = vld [vmem:[%s20 + $0x1c] sm:$0xf]
    %v4350 = vld [vmem:[%s20 + $0x20] sm:$0xf]
    %v4351 = vld [vmem:[%s20 + $0x24] sm:$0xf]
    %v4352 = vld [vmem:[%s20 + $0x28] sm:$0xf]
    %v4353 = vld [vmem:[%s20 + $0x2c] sm:$0xf]
    %v4354 = vld [vmem:[%s20 + $0x30] sm:$0xf]
    %v4355 = vld [vmem:[%s20 + $0x34] sm:$0xf]
    %v4356 = vld [vmem:[%s20 + $0x38] sm:$0xf]
    %v4357 = vld [vmem:[%s20 + $0x3c] sm:$0xf]
    %v4358 = vld [vmem:[%s21] sm:$0x1]
    %v4360 = vlaneseq
    %v4361 = vshrl.u32 %v4360, 7
    %v4362 = vsub.s32 0, %v4361
    %v4363 = vrot.slane %v4358, %v4362
    %v4381 = vunpack.c.l.b16 %v4342
    %v4382 = vunpack.c.l.b16 %v4343
    %v4383 = vunpack.c.l.b16 %v4344
    %v4384 = vunpack.c.l.b16 %v4345
    %v4385 = vunpack.c.l.b16 %v4346
    %v4386 = vunpack.c.l.b16 %v4347
    %v4387 = vunpack.c.l.b16 %v4348
    %v4388 = vunpack.c.l.b16 %v4349
    %v4389 = vunpack.c.l.b16 %v4350
    %v4390 = vunpack.c.l.b16 %v4351
    %v4391 = vunpack.c.l.b16 %v4352
    %v4392 = vunpack.c.l.b16 %v4353
    %v4393 = vunpack.c.l.b16 %v4354
    %v4394 = vunpack.c.l.b16 %v4355
    %v4395 = vunpack.c.l.b16 %v4356
    %v4396 = vunpack.c.l.b16 %v4357
    %v4397 = vpack.c.b16 %v4382, %v4381
    %v4398 = vpack.c.b16 %v4384, %v4383
    %v4399 = vpack.c.b16 %v4386, %v4385
    %v4400 = vpack.c.b16 %v4388, %v4387
    %v4401 = vpack.c.b16 %v4390, %v4389
    %v4402 = vpack.c.b16 %v4392, %v4391
    %v4403 = vpack.c.b16 %v4394, %v4393
    %v4404 = vpack.c.b16 %v4396, %v4395
    %4413 = vmatprep.subr.bf16.mxu0 0
    %4414 = vmatpush1.bf16.msra.mxu0 %v4397
    %4415 = vmatprep.subr.bf16.mxu0 0
    %4416 = vmatpush1.bf16.msra.mxu0 %v4398
    %4417 = vmatprep.subr.bf16.mxu0 0
    %4418 = vmatpush1.bf16.msra.mxu0 %v4399
    %4419 = vmatprep.subr.bf16.mxu0 0
    %4420 = vmatpush1.bf16.msra.mxu0 %v4400
    %4421 = vmatprep.subr.bf16.mxu0 0
    %4422 = vmatpush1.bf16.msra.mxu0 %v4401
    %4423 = vmatprep.subr.bf16.mxu0 0
    %4424 = vmatpush1.bf16.msra.mxu0 %v4402
    %4425 = vmatprep.subr.bf16.mxu0 0
    %4426 = vmatpush1.bf16.msra.mxu0 %v4403
    %4427 = vmatprep.subr.bf16.mxu0 0
    %4428 = vmatpush1.bf16.msra.mxu0 %v4404
    %4429 = vmatprep.subr.bf16.mxu0 0
    %4430 = vmatpush1.bf16.msra.mxu0 0
    %4431 = vmatprep.subr.bf16.mxu0 0
    %4432 = vmatpush1.bf16.msra.mxu0 0
    %4433 = vmatprep.subr.bf16.mxu0 0
    %4434 = vmatpush1.bf16.msra.mxu0 0
    %4435 = vmatprep.subr.bf16.mxu0 0
    %4436 = vmatpush1.bf16.msra.mxu0 0
    %4437 = vmatprep.subr.bf16.mxu0 0
    %4438 = vmatpush1.bf16.msra.mxu0 0
    %4439 = vmatprep.subr.bf16.mxu0 0
    %4440 = vmatpush1.bf16.msra.mxu0 0
    %4441 = vmatprep.subr.bf16.mxu0 0
    %4442 = vmatpush1.bf16.msra.mxu0 0
    %4443 = vmatprep.subr.bf16.mxu0 0
    %4444 = vmatpush1.bf16.msra.mxu0 0
    %4445 = vmatprep.mubr.bf16.mxu0 0
    %4446 = vmatmul.mubr.bf16.gmra.mrb[0].mxu0 %v4341
    %v4447 = vpop.f32.mrb[0].mxu0
    %v4448 = vadd.f32 %v4363, %v4447
    %v4449 = vpop.f32.mrb[0].mxu0
    %v4450 = vpop.f32.mrb[0].mxu0
    %v4451 = vpop.f32.mrb[0].mxu0
    %4452 = vdwg.mxu0
    %v4453 = vtanh.pop %v4448
    %v4454 = vpack.c.bf16 %v4453, %v4453
    %v4455 = vld [vmem:[%s22] sm:$0xf]
    %v4456 = vld [vmem:[%s22 + $0x4] sm:$0xf]
    %v4457 = vld [vmem:[%s22 + $0x8] sm:$0xf]
    %v4458 = vld [vmem:[%s22 + $0xc] sm:$0xf]
    %v4459 = vld [vmem:[%s22 + $0x10] sm:$0xf]
    %v4460 = vld [vmem:[%s22 + $0x14] sm:$0xf]
    %v4461 = vld [vmem:[%s22 + $0x18] sm:$0xf]
    %v4462 = vld [vmem:[%s22 + $0x1c] sm:$0xf]
    %v4463 = vld [vmem:[%s22 + $0x20] sm:$0xf]
    %v4464 = vld [vmem:[%s22 + $0x24] sm:$0xf]
    %v4465 = vld [vmem:[%s22 + $0x28] sm:$0xf]
    %v4466 = vld [vmem:[%s22 + $0x2c] sm:$0xf]
    %v4467 = vld [vmem:[%s22 + $0x30] sm:$0xf]
    %v4468 = vld [vmem:[%s22 + $0x34] sm:$0xf]
    %v4469 = vld [vmem:[%s22 + $0x38] sm:$0xf]
    %v4470 = vld [vmem:[%s22 + $0x3c] sm:$0xf]
    %v4471 = vld [vmem:[%s23] sm:$0x1]
    %v4473 = vlaneseq
    %v4474 = vshrl.u32 %v4473, 7
    %v4475 = vsub.s32 0, %v4474
    %v4476 = vrot.slane %v4471, %v4475
    %v4494 = vunpack.c.l.b16 %v4455
    %v4495 = vunpack.c.l.b16 %v4456
    %v4496 = vunpack.c.l.b16 %v4457
    %v4497 = vunpack.c.l.b16 %v4458
    %v4498 = vunpack.c.l.b16 %v4459
    %v4499 = vunpack.c.l.b16 %v4460
    %v4500 = vunpack.c.l.b16 %v4461
    %v4501 = vunpack.c.l.b16 %v4462
    %v4502 = vunpack.c.l.b16 %v4463
    %v4503 = vunpack.c.l.b16 %v4464
    %v4504 = vunpack.c.l.b16 %v4465
    %v4505 = vunpack.c.l.b16 %v4466
    %v4506 = vunpack.c.l.b16 %v4467
    %v4507 = vunpack.c.l.b16 %v4468
    %v4508 = vunpack.c.l.b16 %v4469
    %v4509 = vunpack.c.l.b16 %v4470
    %v4510 = vpack.c.b16 %v4495, %v4494
    %v4511 = vpack.c.b16 %v4497, %v4496
    %v4512 = vpack.c.b16 %v4499, %v4498
    %v4513 = vpack.c.b16 %v4501, %v4500
    %v4514 = vpack.c.b16 %v4503, %v4502
    %v4515 = vpack.c.b16 %v4505, %v4504
    %v4516 = vpack.c.b16 %v4507, %v4506
    %v4517 = vpack.c.b16 %v4509, %v4508
    %4526 = vmatprep.subr.bf16.mxu0 0
    %4527 = vmatpush1.bf16.msra.mxu0 %v4510
    %4528 = vmatprep.subr.bf16.mxu0 0
    %4529 = vmatpush1.bf16.msra.mxu0 %v4511
    %4530 = vmatprep.subr.bf16.mxu0 0
    %4531 = vmatpush1.bf16.msra.mxu0 %v4512
    %4532 = vmatprep.subr.bf16.mxu0 0
    %4533 = vmatpush1.bf16.msra.mxu0 %v4513
    %4534 = vmatprep.subr.bf16.mxu0 0
    %4535 = vmatpush1.bf16.msra.mxu0 %v4514
    %4536 = vmatprep.subr.bf16.mxu0 0
    %4537 = vmatpush1.bf16.msra.mxu0 %v4515
    %4538 = vmatprep.subr.bf16.mxu0 0
    %4539 = vmatpush1.bf16.msra.mxu0 %v4516
    %4540 = vmatprep.subr.bf16.mxu0 0
    %4541 = vmatpush1.bf16.msra.mxu0 %v4517
    %4542 = vmatprep.subr.bf16.mxu0 0
    %4543 = vmatpush1.bf16.msra.mxu0 0
    %4544 = vmatprep.subr.bf16.mxu0 0
    %4545 = vmatpush1.bf16.msra.mxu0 0
    %4546 = vmatprep.subr.bf16.mxu0 0
    %4547 = vmatpush1.bf16.msra.mxu0 0
    %4548 = vmatprep.subr.bf16.mxu0 0
    %4549 = vmatpush1.bf16.msra.mxu0 0
    %4550 = vmatprep.subr.bf16.mxu0 0
    %4551 = vmatpush1.bf16.msra.mxu0 0
    %4552 = vmatprep.subr.bf16.mxu0 0
    %4553 = vmatpush1.bf16.msra.mxu0 0
    %4554 = vmatprep.subr.bf16.mxu0 0
    %4555 = vmatpush1.bf16.msra.mxu0 0
    %4556 = vmatprep.subr.bf16.mxu0 0
    %4557 = vmatpush1.bf16.msra.mxu0 0
    %4558 = vmatprep.mubr.bf16.mxu0 0
    %4559 = vmatmul.mubr.bf16.gmra.mrb[0].mxu0 %v4454
    %v4560 = vpop.f32.mrb[0].mxu0
    %v4561 = vadd.f32 %v4476, %v4560
    %v4562 = vpop.f32.mrb[0].mxu0
    %v4563 = vpop.f32.mrb[0].mxu0
    %v4564 = vpop.f32.mrb[0].mxu0
    %4565 = vdwg.mxu0
    %vm4566 = vcmask 9216
    %4567 = vst.msk [vmem:[#allocation5] sm:$0x3] %vm4566, %v4561
    %vm4568 = vcmask 8192
    %v4569 = vsel %vm4568, %v4561, -inf
    %4570 = vmax.xlane.f32.xlu0 %v4569
    %v4571 = vpop.xlane.xlu0 %4570
    %v4572 = vsub.f32 %v4561, %v4571
    %v4573 = vmul.f32 %v4572, 1.442695
    %v4574 = vpow.pop %v4573
    %v4575 = vsel %vm4568, %v4574, 0.0
    %4576 = vadd.xlane.f32.xlu0 %v4575
    %v4577 = vpop.xlane.xlu0 %4576
    %v4578 = vlog2.pop %v4577
    %v4579 = vmul.f32 %v4578, 0.6931472
    %v4580 = vadd.f32 %v4571, %v4579
    %s4581 = sld [smem:[#allocation2]]
    %v4582 = vstv %s4581
    %vm4583 = vcmp.eq.s32.totalorder %v96, %v4582
    %v4584 = vsel %vm4583, 1, 0
    %v4585 = vcvt.s32.f32 %v4584
    %v4586 = vmul.f32 %v4561, %v4585
    %v4587 = vsel %vm4568, %v4586, 0.0
    %4588 = vadd.xlane.f32.xlu0 %v4587
    %v4589 = vpop.xlane.xlu0 %4588
    %v4590 = vsub.f32 %v4580, %v4589
    %v4591 = vadd.f32 %v4590, 0.0
    %vm4592 = vcmask 9217
    %v4593 = vsel %vm4592, %v4561, -inf
    %4594 = vmax.xlane.f32.xlu0 %v4593
    %v4595 = vpop.xlane.xlu0 %4594
    %v4596 = vsub.f32 %v4561, %v4595
    %v4597 = vmul.f32 %v4596, 1.442695
    %v4598 = vpow.pop %v4597
    %v4599 = vsel %vm4592, %v4598, 0.0
    %4600 = vadd.xlane.f32.xlu0 %v4599
    %v4601 = vpop.xlane.xlu0 %4600
    %v4602 = vlog2.pop %v4601
    %v4603 = vmul.f32 %v4602, 0.6931472
    %v4604 = vadd.f32 %v4595, %v4603
    %s4605 = sld [smem:[#allocation2 + $0x1]]
    %v4606 = vstv %s4605
    %vm4607 = vcmp.eq.s32.totalorder %v96, %v4606
    %v4608 = vsel %vm4607, 1, 0
    %v4609 = vcvt.s32.f32 %v4608
    %v4610 = vmul.f32 %v4561, %v4609
    %v4611 = vsel %vm4592, %v4610, 0.0
    %4612 = vadd.xlane.f32.xlu0 %v4611
    %v4613 = vpop.xlane.xlu0 %4612
    %v4614 = vsub.f32 %v4604, %v4613
    %v4616 = vrot.slane %v4614, 1
    %v4618 = vadd.f32 %v4591, %v4616
    %v4619 = vmul.f32 %v4618, 0.5
    %vm4620 = vcmask 0
    %4621 = vst.msk [vmem:[#allocation6] sm:$0x1] %vm4620, %v4619
    // Predicated region
    $region102: #{idiomaticity_classifier_forward.1} parent=1 // pred_check
      _
    $region103: #{idiomaticity_classifier_forward.1} parent=1 // pred_check_branch
      %4623 = sbr.rel (0) target = $region105
    $region104: #{idiomaticity_classifier_forward.1} parent=1 // pred_region
      %s4625 = ssub.s32 32, 32
      %4626 = vsyncadd [#allocation3], %s4625
      %s4628 = sshll.u32 [#allocation5], 4
      %s4629 = int_to_ptr.vmem [resolvable:$true] %s4628
      %4631 = dma.vmem_to_hbm [thread:$0]  %s4629, 32, %s24, [#allocation3]
    $region105: #{idiomaticity_classifier_forward.1} parent=1 // pred_fallthru
      _
    // Predicated region
    $region106: #{idiomaticity_classifier_forward.1} parent=1 // pred_check
      _
    $region107: #{idiomaticity_classifier_forward.1} parent=1 // pred_check_branch
      %4633 = sbr.rel (0) target = $region109
    $region108: #{idiomaticity_classifier_forward.1} parent=1 // pred_region
      %s4635 = ssub.s32 16, 16
      %4636 = vsyncadd [#allocation7], %s4635
      %s4638 = sshll.u32 [#allocation6], 4
      %s4639 = int_to_ptr.vmem [resolvable:$true] %s4638
      %4641 = dma.vmem_to_hbm [thread:$0]  %s4639, 16, %s25, [#allocation7]
    $region109: #{idiomaticity_classifier_forward.1} parent=1 // pred_fallthru
      _
    // Predicated region
    $region110: #{idiomaticity_classifier_forward.1} parent=1 // pred_check
      _
    $region111: #{idiomaticity_classifier_forward.1} parent=1 // pred_check_branch
      %4643 = sbr.rel (0) target = $region113
    $region112: #{idiomaticity_classifier_forward.1} parent=1 // pred_region
      %4644 = dma.done [#allocation3], 32
    $region113: #{idiomaticity_classifier_forward.1} parent=1 // pred_fallthru
      _
    // Predicated region
    $region114: #{idiomaticity_classifier_forward.1} parent=1 // pred_check
      _
    $region115: #{idiomaticity_classifier_forward.1} parent=1 // pred_check_branch
      %4646 = sbr.rel (0) target = $region117
    $region116: #{idiomaticity_classifier_forward.1} parent=1 // pred_region
      %4647 = dma.done [#allocation7], 16
    $region117: #{idiomaticity_classifier_forward.1} parent=1 // pred_fallthru
      _
    %4648 = vsyncpa [#allocation3], 1
    %4649 = vsyncpa [#allocation7], 1
    %4650 = vsyncpa [#allocation4], 1

</llo_original>
